<compile_context>
chip_gen: v5e
topology: v5e:2x2
jax: 0.10.0
libtpu: 0.0.40
codegen_flags: <defaults>
</compile_context>

<pallas_src>
import numpy as np
import jax
import jax.numpy as jnp
from jax.experimental import pallas as pl
from jax.experimental.pallas import tpu as pltpu

C, H, W = 512, 14, 14      # hooked conv layer: 512 channels, 14x14 spatial (>= 49)
S = H * W                  # flattened spatial
OH, OW = 224, 224          # F.upsample_bilinear target size

HIGHEST = jax.lax.Precision.HIGHEST


def bilinear_matrix(out_size, in_size):
    """Interpolation matrix M (out_size, in_size) for align_corners=True bilinear
    (the semantics of torch.nn.functional.upsample_bilinear). Pure numpy so it is
    a baked constant, not runtime XLA ops."""
    if in_size == 1:
        return np.ones((out_size, 1), np.float32)
    src = np.arange(out_size, dtype=np.float64) * (in_size - 1) / (out_size - 1)
    lo = np.clip(np.floor(src).astype(np.int64), 0, in_size - 2)
    frac = (src - lo).astype(np.float32)
    m = np.zeros((out_size, in_size), np.float32)
    rows = np.arange(out_size)
    m[rows, lo] = 1.0 - frac
    m[rows, lo + 1] += frac
    return m


# --- module-level constants: built ONCE at import, device-resident under jit ----
_idx = np.arange(S)
_K_np = np.zeros((H, S), np.float32)
_K_np[_idx // W, _idx] = 1.0          # K[h, k]  = 1  iff  k // W == h   (row-block selector)
_K2_np = np.zeros((S, W), np.float32)
_K2_np[_idx, _idx % W] = 1.0          # K2[k, w] = 1  iff  k %  W == w   (in-row position selector)

_L = jnp.asarray(bilinear_matrix(OH, H))                        # (224, 14)
_RT = jnp.asarray(np.ascontiguousarray(bilinear_matrix(OW, W).T))  # (14, 224)
_K = jnp.asarray(_K_np)                                          # (14, 196)
_K2 = jnp.asarray(_K2_np)                                        # (196, 14)


def grad_cam_kernel(a_ref, g_ref, l_ref, rt_ref, k_ref, k2_ref, out_ref):
    # a_ref, g_ref: (C, H*W) activations / gradients, native CHW layout flattened
    #               (channels on sublanes, spatial on lanes).
    # l_ref:  (OH, H)   align-corners row-interpolation matrix L
    # rt_ref: (W, OW)   column-interpolation matrix R^T
    # k_ref:  (H, H*W)  0/1 selector  K[h, k]  = [k // W == h]
    # k2_ref: (H*W, W)  0/1 selector  K2[k, w] = [k %  W == w]
    # Upcast right after load so bf16 activations halve DMA while all elementwise
    # math stays f32 (v5e-safe).
    a = a_ref[...].astype(jnp.float32)
    graw = g_ref[...].astype(jnp.float32)

    # ---- per-channel weight  w_c = -max_s( 1 / log(relu(g)_{c,s}) ) ----------
    # 1/log is monotone-decreasing on (0,1) and on [1,inf), and any g>=1 value
    # beats every g<1 value, so the spatial max equals 1/log(m_c) with
    #   m_c = min{g : g>=1}  if such g exist, else  min(relu(g)).
    # Cheap VPU compares + lane-min reduces replace ~100K log/divide ops; the
    # log + divide then touch only the 512 per-channel minima. This is exact
    # (reproduces the +inf at g==1 and the -0.0 at g==0 of the reference).
    m_ge1 = jnp.min(jnp.where(graw >= 1.0, graw, jnp.inf), axis=1, keepdims=True)
    m_all = jnp.maximum(jnp.min(graw, axis=1, keepdims=True), 0.0)  # min of relu(g)
    m = jnp.where(m_ge1 < jnp.inf, m_ge1, m_all)                    # (C, 1)
    w = -1.0 / jnp.log(m)                                           # (C, 1)
    # d_k (spatial sum of g) is computed by the torch module but never used.

    # ---- cam (flattened 196-vector), relu + normalize ------------------------
    cam = jnp.sum(w * a, axis=0, keepdims=True)                     # (1, H*W)
    cam = jnp.maximum(cam, 0.0)                                     # (out+|out|)/2
    # Exact divide (not approx reciprocal): removes ~1e-4..1e-3 error at
    # negligible cost.  All-zero cam -> 0/0 NaN, same as the torch reference.
    cam = cam / jnp.max(cam, axis=1, keepdims=True)                 # out / max(out)

    # ---- align-corners bilinear upsample to (224, 224) -----------------------
    # cam2d[h, w2] = cam[0, h*W + w2] obtained with exact 0/1 selection matmuls
    # (avoids a lane->sublane reshape of the 196-vector):
    masked = k_ref[...] * cam                                       # (H, H*W)
    cam2d = jnp.dot(masked, k2_ref[...],
                    preferred_element_type=jnp.float32,
                    precision=HIGHEST)                               # (H, W)
    #   out = L @ cam2d @ R^T   — two tiny full-precision f32 MXU matmuls.
    t = jnp.dot(cam2d, rt_ref[...],
                preferred_element_type=jnp.float32, precision=HIGHEST)   # (H, OW)
    out_ref[...] = jnp.dot(l_ref[...], t,
                           preferred_element_type=jnp.float32,
                           precision=HIGHEST)                        # (OH, OW)


@jax.jit
def grad_cam(forward_result_chw, backward_result_chw):
    """forward/backward hook results in torch layout (C, H, W) -> (224, 224) heatmap."""
    # Contiguous .view(512, -1) equivalents -- no transpose.
    a = forward_result_chw.reshape(C, S)
    g = backward_result_chw.reshape(C, S)

    return pl.pallas_call(
        grad_cam_kernel,
        out_shape=jax.ShapeDtypeStruct((OH, OW), jnp.float32),
        in_specs=[pl.BlockSpec(memory_space=pltpu.MemorySpace.VMEM)] * 6,
        out_specs=pl.BlockSpec(memory_space=pltpu.MemorySpace.VMEM),
    )(a, g, _L, _RT, _K, _K2)


def grad_cam_ref(a_chw, g_chw):
    """Plain-JAX reference mirroring the torch math."""
    g = jnp.maximum(g_chw, 0.0)
    inv_log = 1.0 / jnp.log(g)
    w = -jnp.max(inv_log.reshape(C, -1), axis=1).reshape(C, 1, 1)
    cam = jnp.sum(w * a_chw, axis=0)
    cam = jnp.maximum(cam, 0.0)
    cam = cam / jnp.max(cam)
    l_mat = jnp.asarray(bilinear_matrix(OH, H))
    r_mat = jnp.asarray(bilinear_matrix(OW, W))
    up = jnp.matmul(cam, r_mat.T, precision="highest")
    return jnp.matmul(l_mat, up, precision="highest")


# TODO(synk): running the wrapped classifier + autograd backward (the hook
# machinery capturing forward_result / backward_result) has no Pallas
# equivalent; those tensors are supplied directly as inputs.
# show_cam_on_image is a display-only side effect and is not implemented.

if __name__ == "__main__":
    key = jax.random.PRNGKey(0)
    k1, k2, k3 = jax.random.split(key, 3)
    # hooked-layer activations (mixed sign) and gradients (positive so that the
    # log-based weights stay finite, matching a well-behaved real backward pass)
    forward_result = jax.random.normal(k1, (C, H, W), jnp.float32)
    backward_result = jax.random.uniform(k2, (C, H, W), jnp.float32,
                                         minval=0.02, maxval=0.98)
    img = jax.random.uniform(k3, (OH, OW, 3), jnp.float32)  # display-only, unused

    out = grad_cam(forward_result, backward_result)
    out = jax.block_until_ready(out)

    ref = grad_cam_ref(forward_result, backward_result)
    assert out.shape == (OH, OW)
    assert bool(jnp.allclose(out, ref, rtol=1e-3, atol=1e-3)), \
        float(jnp.max(jnp.abs(out - ref)))
    print("KERNEL_OK")
</pallas_src>

<mosaic_0001>
module attributes {stable_mosaic.version = 11 : i64} {
  func.func @grad_cam_kernel(%arg0: memref<512x196xf32, #tpu.memory_space<vmem>>, %arg1: memref<512x196xf32, #tpu.memory_space<vmem>>, %arg2: memref<224x14xf32, #tpu.memory_space<vmem>>, %arg3: memref<14x224xf32, #tpu.memory_space<vmem>>, %arg4: memref<14x196xf32, #tpu.memory_space<vmem>>, %arg5: memref<196x14xf32, #tpu.memory_space<vmem>>, %arg6: memref<224x224xf32, #tpu.memory_space<vmem>>) attributes {dimension_semantics = [], scalar_prefetch = 0 : i64, scratch_operands = 0 : i64, tpu.core_type = #tpu.core_type<tc>} {
    %c0 = arith.constant 0 : index
    %c0_0 = arith.constant 0 : index
    %0 = vector.load %arg0[%c0, %c0_0] : memref<512x196xf32, #tpu.memory_space<vmem>>, vector<512x196xf32>
    %c0_1 = arith.constant 0 : index
    %c0_2 = arith.constant 0 : index
    %1 = vector.load %arg1[%c0_1, %c0_2] : memref<512x196xf32, #tpu.memory_space<vmem>>, vector<512x196xf32>
    %cst = arith.constant 1.000000e+00 : f32
    %2 = vector.broadcast %cst : f32 to vector<512x196xf32>
    %3 = arith.cmpf oge, %1, %2 : vector<512x196xf32>
    %cst_3 = arith.constant 0x7F800000 : f32
    %4 = vector.broadcast %cst_3 : f32 to vector<512x196xf32>
    %5 = arith.select %3, %1, %4 : vector<512x196xi1>, vector<512x196xf32>
    %cst_4 = arith.constant dense<0x7F800000> : vector<512xf32>
    %6 = vector.multi_reduction <minimumf>, %5, %cst_4 [1] : vector<512x196xf32> to vector<512xf32>
    %7 = vector.shape_cast %6 : vector<512xf32> to vector<512x1xf32>
    %cst_5 = arith.constant dense<0x7F800000> : vector<512xf32>
    %8 = vector.multi_reduction <minimumf>, %1, %cst_5 [1] : vector<512x196xf32> to vector<512xf32>
    %9 = vector.shape_cast %8 : vector<512xf32> to vector<512x1xf32>
    %cst_6 = arith.constant 0.000000e+00 : f32
    %10 = vector.broadcast %cst_6 : f32 to vector<512x1xf32>
    %11 = arith.maximumf %9, %10 : vector<512x1xf32>
    %cst_7 = arith.constant 0x7F800000 : f32
    %12 = vector.broadcast %cst_7 : f32 to vector<512x1xf32>
    %13 = arith.cmpf olt, %7, %12 : vector<512x1xf32>
    %14 = arith.select %13, %7, %11 : vector<512x1xi1>, vector<512x1xf32>
    %15 = math.log %14 : vector<512x1xf32>
    %cst_8 = arith.constant -1.000000e+00 : f32
    %16 = vector.broadcast %cst_8 : f32 to vector<512x1xf32>
    %17 = arith.divf %16, %15 : vector<512x1xf32>
    %18 = vector.broadcast %17 : vector<512x1xf32> to vector<512x196xf32>
    %19 = arith.mulf %18, %0 : vector<512x196xf32>
    %cst_9 = arith.constant dense<0.000000e+00> : vector<196xf32>
    %20 = vector.multi_reduction <add>, %19, %cst_9 [0] : vector<512x196xf32> to vector<196xf32>
    %21 = vector.shape_cast %20 : vector<196xf32> to vector<1x196xf32>
    %cst_10 = arith.constant 0.000000e+00 : f32
    %22 = vector.broadcast %cst_10 : f32 to vector<1x196xf32>
    %23 = arith.maximumf %21, %22 : vector<1x196xf32>
    %cst_11 = arith.constant dense<0xFF800000> : vector<1xf32>
    %24 = vector.multi_reduction <maximumf>, %23, %cst_11 [1] : vector<1x196xf32> to vector<1xf32>
    %25 = vector.shape_cast %24 : vector<1xf32> to vector<1x1xf32>
    %26 = vector.broadcast %25 : vector<1x1xf32> to vector<1x196xf32>
    %27 = arith.divf %23, %26 : vector<1x196xf32>
    %c0_12 = arith.constant 0 : index
    %c0_13 = arith.constant 0 : index
    %28 = vector.load %arg4[%c0_12, %c0_13] : memref<14x196xf32, #tpu.memory_space<vmem>>, vector<14x196xf32>
    %29 = vector.broadcast %27 : vector<1x196xf32> to vector<14x196xf32>
    %30 = arith.mulf %28, %29 : vector<14x196xf32>
    %c0_14 = arith.constant 0 : index
    %c0_15 = arith.constant 0 : index
    %31 = vector.load %arg5[%c0_14, %c0_15] : memref<196x14xf32, #tpu.memory_space<vmem>>, vector<196x14xf32>
    %cst_16 = arith.constant dense<0.000000e+00> : vector<14x14xf32>
    %32 = tpu.matmul %30, %31, %cst_16 {dimension_numbers = #tpu.dot_dimension_numbers<[1], [0], [0], [1], [0, 0, 1, 1], [], []>, precision = #tpu.contract_precision<fp32>} : vector<14x196xf32>, vector<196x14xf32>, vector<14x14xf32> -> vector<14x14xf32>
    %c0_17 = arith.constant 0 : index
    %c0_18 = arith.constant 0 : index
    %33 = vector.load %arg3[%c0_17, %c0_18] : memref<14x224xf32, #tpu.memory_space<vmem>>, vector<14x224xf32>
    %cst_19 = arith.constant dense<0.000000e+00> : vector<14x224xf32>
    %34 = tpu.matmul %32, %33, %cst_19 {dimension_numbers = #tpu.dot_dimension_numbers<[1], [0], [0], [1], [0, 0, 1, 1], [], []>, precision = #tpu.contract_precision<fp32>} : vector<14x14xf32>, vector<14x224xf32>, vector<14x224xf32> -> vector<14x224xf32>
    %c0_20 = arith.constant 0 : index
    %c0_21 = arith.constant 0 : index
    %35 = vector.load %arg2[%c0_20, %c0_21] : memref<224x14xf32, #tpu.memory_space<vmem>>, vector<224x14xf32>
    %cst_22 = arith.constant dense<0.000000e+00> : vector<224x224xf32>
    %36 = tpu.matmul %35, %34, %cst_22 {dimension_numbers = #tpu.dot_dimension_numbers<[1], [0], [0], [1], [0, 0, 1, 1], [], []>, precision = #tpu.contract_precision<fp32>} : vector<224x14xf32>, vector<14x224xf32>, vector<224x224xf32> -> vector<224x224xf32>
    %c0_23 = arith.constant 0 : index
    %c0_24 = arith.constant 0 : index
    %37 = vector.load %arg6[%c0_23, %c0_24] : memref<224x224xf32, #tpu.memory_space<vmem>>, vector<224x224xf32>
    tpu.vector_store %arg6[%c0_23, %c0_24], %36 {strides = array<i32>} : memref<224x224xf32, #tpu.memory_space<vmem>>, vector<224x224xf32>,
    return
  }
}

</mosaic_0001>

<llo_original>
// kernel: grad_cam.1
$region0: #{grad_cam.1}
  #allocation0 [shape = 'u32[]', space=smem, size = 0x4, offset = 0x4, fixed_abs, tag = 'smem constant byte address 0x4 - core index']
  #allocation1 [shape = 'u32[72,128]{1,0:T(1,128)}', space=vmem, size = 0x9000, scoped, tag = 'internal scratch']
  %s0 = inlined_call_operand.vmem [shape: f32[512,196], index: 0, kind: input, shape index: {}]
  %s1 = inlined_call_operand.vmem [shape: f32[512,196], index: 1, kind: input, shape index: {}]
  %s2 = inlined_call_operand.vmem [shape: f32[224,14], index: 2, kind: input, shape index: {}]
  %s3 = inlined_call_operand.vmem [shape: f32[14,224], index: 3, kind: input, shape index: {}]
  %s4 = inlined_call_operand.vmem [shape: f32[14,196], index: 4, kind: input, shape index: {}]
  %s5 = inlined_call_operand.vmem [shape: f32[196,14], index: 5, kind: input, shape index: {}]
  %s6 = inlined_call_operand.hbm [shape: f32[224,224], index: 6, kind: output, shape index: {}]
  %s7 = sld [smem:[#allocation0]]
  $region34: #{grad_cam.1} parent=0
    _
  %s9 = ssub.s32 1, %s7
  %s10 = scalar_select 0, %s9, %s7
  $region1: #{grad_cam.1} parent=0
    #allocation2 [shape = 'u8[229376]{0}', space=vmem, size = 0x38000, scoped, tag = 'output window, operand 0, single buffered']
    #allocation3 [shape = 's32[1]{0}', space=sflag, size = 0x4, scoped, tag = 'scoped memory for grad_cam.1']
    %11 = vsyncpa [#allocation3], 0
    // Predicated region
    $region2: #{grad_cam.1} parent=1 // pred_check
      _
    $region3: #{grad_cam.1} parent=1 // pred_check_branch
      %13 = sbr.rel (0) target = $region5
    $region4: #{grad_cam.1} parent=1 // pred_region
      _
    $region5: #{grad_cam.1} parent=1 // pred_fallthru
      _
    // Predicated region
    $region6: #{grad_cam.1} parent=1 // pred_check
      _
    $region7: #{grad_cam.1} parent=1 // pred_check_branch
      %15 = sbr.rel (0) target = $region9
    $region8: #{grad_cam.1} parent=1 // pred_region
      _
    $region9: #{grad_cam.1} parent=1 // pred_fallthru
      _
    // Predicated region
    $region10: #{grad_cam.1} parent=1 // pred_check
      _
    $region11: #{grad_cam.1} parent=1 // pred_check_branch
      %17 = sbr.rel (0) target = $region13
    $region12: #{grad_cam.1} parent=1 // pred_region
      _
    $region13: #{grad_cam.1} parent=1 // pred_fallthru
      _
    // Predicated region
    $region14: #{grad_cam.1} parent=1 // pred_check
      _
    $region15: #{grad_cam.1} parent=1 // pred_check_branch
      %19 = sbr.rel (0) target = $region17
    $region16: #{grad_cam.1} parent=1 // pred_region
      _
    $region17: #{grad_cam.1} parent=1 // pred_fallthru
      _
    // Predicated region
    $region18: #{grad_cam.1} parent=1 // pred_check
      _
    $region19: #{grad_cam.1} parent=1 // pred_check_branch
      %21 = sbr.rel (0) target = $region21
    $region20: #{grad_cam.1} parent=1 // pred_region
      _
    $region21: #{grad_cam.1} parent=1 // pred_fallthru
      _
    // Predicated region
    $region22: #{grad_cam.1} parent=1 // pred_check
      _
    $region23: #{grad_cam.1} parent=1 // pred_check_branch
      %23 = sbr.rel (0) target = $region25
    $region24: #{grad_cam.1} parent=1 // pred_region
      _
    $region25: #{grad_cam.1} parent=1 // pred_fallthru
      _
    %v24 = vld [vmem:[%s0] sm:$0xff]
    %v25 = vld [vmem:[%s0 + $0x8] sm:$0xff]
    %v26 = vld [vmem:[%s0 + $0x10] sm:$0xff]
    %v27 = vld [vmem:[%s0 + $0x18] sm:$0xff]
    %v28 = vld [vmem:[%s0 + $0x20] sm:$0xff]
    %v29 = vld [vmem:[%s0 + $0x28] sm:$0xff]
    %v30 = vld [vmem:[%s0 + $0x30] sm:$0xff]
    %v31 = vld [vmem:[%s0 + $0x38] sm:$0xff]
    %v32 = vld [vmem:[%s0 + $0x40] sm:$0xff]
    %v33 = vld [vmem:[%s0 + $0x48] sm:$0xff]
    %v34 = vld [vmem:[%s0 + $0x50] sm:$0xff]
    %v35 = vld [vmem:[%s0 + $0x58] sm:$0xff]
    %v36 = vld [vmem:[%s0 + $0x60] sm:$0xff]
    %v37 = vld [vmem:[%s0 + $0x68] sm:$0xff]
    %v38 = vld [vmem:[%s0 + $0x70] sm:$0xff]
    %v39 = vld [vmem:[%s0 + $0x78] sm:$0xff]
    %v40 = vld [vmem:[%s0 + $0x80] sm:$0xff]
    %v41 = vld [vmem:[%s0 + $0x88] sm:$0xff]
    %v42 = vld [vmem:[%s0 + $0x90] sm:$0xff]
    %v43 = vld [vmem:[%s0 + $0x98] sm:$0xff]
    %v44 = vld [vmem:[%s0 + $0xa0] sm:$0xff]
    %v45 = vld [vmem:[%s0 + $0xa8] sm:$0xff]
    %v46 = vld [vmem:[%s0 + $0xb0] sm:$0xff]
    %v47 = vld [vmem:[%s0 + $0xb8] sm:$0xff]
    %v48 = vld [vmem:[%s0 + $0xc0] sm:$0xff]
    %v49 = vld [vmem:[%s0 + $0xc8] sm:$0xff]
    %v50 = vld [vmem:[%s0 + $0xd0] sm:$0xff]
    %v51 = vld [vmem:[%s0 + $0xd8] sm:$0xff]
    %v52 = vld [vmem:[%s0 + $0xe0] sm:$0xff]
    %v53 = vld [vmem:[%s0 + $0xe8] sm:$0xff]
    %v54 = vld [vmem:[%s0 + $0xf0] sm:$0xff]
    %v55 = vld [vmem:[%s0 + $0xf8] sm:$0xff]
    %v56 = vld [vmem:[%s0 + $0x100] sm:$0xff]
    %v57 = vld [vmem:[%s0 + $0x108] sm:$0xff]
    %v58 = vld [vmem:[%s0 + $0x110] sm:$0xff]
    %v59 = vld [vmem:[%s0 + $0x118] sm:$0xff]
    %v60 = vld [vmem:[%s0 + $0x120] sm:$0xff]
    %v61 = vld [vmem:[%s0 + $0x128] sm:$0xff]
    %v62 = vld [vmem:[%s0 + $0x130] sm:$0xff]
    %v63 = vld [vmem:[%s0 + $0x138] sm:$0xff]
    %v64 = vld [vmem:[%s0 + $0x140] sm:$0xff]
    %v65 = vld [vmem:[%s0 + $0x148] sm:$0xff]
    %v66 = vld [vmem:[%s0 + $0x150] sm:$0xff]
    %v67 = vld [vmem:[%s0 + $0x158] sm:$0xff]
    %v68 = vld [vmem:[%s0 + $0x160] sm:$0xff]
    %v69 = vld [vmem:[%s0 + $0x168] sm:$0xff]
    %v70 = vld [vmem:[%s0 + $0x170] sm:$0xff]
    %v71 = vld [vmem:[%s0 + $0x178] sm:$0xff]
    %v72 = vld [vmem:[%s0 + $0x180] sm:$0xff]
    %v73 = vld [vmem:[%s0 + $0x188] sm:$0xff]
    %v74 = vld [vmem:[%s0 + $0x190] sm:$0xff]
    %v75 = vld [vmem:[%s0 + $0x198] sm:$0xff]
    %v76 = vld [vmem:[%s0 + $0x1a0] sm:$0xff]
    %v77 = vld [vmem:[%s0 + $0x1a8] sm:$0xff]
    %v78 = vld [vmem:[%s0 + $0x1b0] sm:$0xff]
    %v79 = vld [vmem:[%s0 + $0x1b8] sm:$0xff]
    %v80 = vld [vmem:[%s0 + $0x1c0] sm:$0xff]
    %v81 = vld [vmem:[%s0 + $0x1c8] sm:$0xff]
    %v82 = vld [vmem:[%s0 + $0x1d0] sm:$0xff]
    %v83 = vld [vmem:[%s0 + $0x1d8] sm:$0xff]
    %v84 = vld [vmem:[%s0 + $0x1e0] sm:$0xff]
    %v85 = vld [vmem:[%s0 + $0x1e8] sm:$0xff]
    %v86 = vld [vmem:[%s0 + $0x1f0] sm:$0xff]
    %v87 = vld [vmem:[%s0 + $0x1f8] sm:$0xff]
    %v88 = vld [vmem:[%s0 + $0x200] sm:$0xff]
    %v89 = vld [vmem:[%s0 + $0x208] sm:$0xff]
    %v90 = vld [vmem:[%s0 + $0x210] sm:$0xff]
    %v91 = vld [vmem:[%s0 + $0x218] sm:$0xff]
    %v92 = vld [vmem:[%s0 + $0x220] sm:$0xff]
    %v93 = vld [vmem:[%s0 + $0x228] sm:$0xff]
    %v94 = vld [vmem:[%s0 + $0x230] sm:$0xff]
    %v95 = vld [vmem:[%s0 + $0x238] sm:$0xff]
    %v96 = vld [vmem:[%s0 + $0x240] sm:$0xff]
    %v97 = vld [vmem:[%s0 + $0x248] sm:$0xff]
    %v98 = vld [vmem:[%s0 + $0x250] sm:$0xff]
    %v99 = vld [vmem:[%s0 + $0x258] sm:$0xff]
    %v100 = vld [vmem:[%s0 + $0x260] sm:$0xff]
    %v101 = vld [vmem:[%s0 + $0x268] sm:$0xff]
    %v102 = vld [vmem:[%s0 + $0x270] sm:$0xff]
    %v103 = vld [vmem:[%s0 + $0x278] sm:$0xff]
    %v104 = vld [vmem:[%s0 + $0x280] sm:$0xff]
    %v105 = vld [vmem:[%s0 + $0x288] sm:$0xff]
    %v106 = vld [vmem:[%s0 + $0x290] sm:$0xff]
    %v107 = vld [vmem:[%s0 + $0x298] sm:$0xff]
    %v108 = vld [vmem:[%s0 + $0x2a0] sm:$0xff]
    %v109 = vld [vmem:[%s0 + $0x2a8] sm:$0xff]
    %v110 = vld [vmem:[%s0 + $0x2b0] sm:$0xff]
    %v111 = vld [vmem:[%s0 + $0x2b8] sm:$0xff]
    %v112 = vld [vmem:[%s0 + $0x2c0] sm:$0xff]
    %v113 = vld [vmem:[%s0 + $0x2c8] sm:$0xff]
    %v114 = vld [vmem:[%s0 + $0x2d0] sm:$0xff]
    %v115 = vld [vmem:[%s0 + $0x2d8] sm:$0xff]
    %v116 = vld [vmem:[%s0 + $0x2e0] sm:$0xff]
    %v117 = vld [vmem:[%s0 + $0x2e8] sm:$0xff]
    %v118 = vld [vmem:[%s0 + $0x2f0] sm:$0xff]
    %v119 = vld [vmem:[%s0 + $0x2f8] sm:$0xff]
    %v120 = vld [vmem:[%s0 + $0x300] sm:$0xff]
    %v121 = vld [vmem:[%s0 + $0x308] sm:$0xff]
    %v122 = vld [vmem:[%s0 + $0x310] sm:$0xff]
    %v123 = vld [vmem:[%s0 + $0x318] sm:$0xff]
    %v124 = vld [vmem:[%s0 + $0x320] sm:$0xff]
    %v125 = vld [vmem:[%s0 + $0x328] sm:$0xff]
    %v126 = vld [vmem:[%s0 + $0x330] sm:$0xff]
    %v127 = vld [vmem:[%s0 + $0x338] sm:$0xff]
    %v128 = vld [vmem:[%s0 + $0x340] sm:$0xff]
    %v129 = vld [vmem:[%s0 + $0x348] sm:$0xff]
    %v130 = vld [vmem:[%s0 + $0x350] sm:$0xff]
    %v131 = vld [vmem:[%s0 + $0x358] sm:$0xff]
    %v132 = vld [vmem:[%s0 + $0x360] sm:$0xff]
    %v133 = vld [vmem:[%s0 + $0x368] sm:$0xff]
    %v134 = vld [vmem:[%s0 + $0x370] sm:$0xff]
    %v135 = vld [vmem:[%s0 + $0x378] sm:$0xff]
    %v136 = vld [vmem:[%s0 + $0x380] sm:$0xff]
    %v137 = vld [vmem:[%s0 + $0x388] sm:$0xff]
    %v138 = vld [vmem:[%s0 + $0x390] sm:$0xff]
    %v139 = vld [vmem:[%s0 + $0x398] sm:$0xff]
    %v140 = vld [vmem:[%s0 + $0x3a0] sm:$0xff]
    %v141 = vld [vmem:[%s0 + $0x3a8] sm:$0xff]
    %v142 = vld [vmem:[%s0 + $0x3b0] sm:$0xff]
    %v143 = vld [vmem:[%s0 + $0x3b8] sm:$0xff]
    %v144 = vld [vmem:[%s0 + $0x3c0] sm:$0xff]
    %v145 = vld [vmem:[%s0 + $0x3c8] sm:$0xff]
    %v146 = vld [vmem:[%s0 + $0x3d0] sm:$0xff]
    %v147 = vld [vmem:[%s0 + $0x3d8] sm:$0xff]
    %v148 = vld [vmem:[%s0 + $0x3e0] sm:$0xff]
    %v149 = vld [vmem:[%s0 + $0x3e8] sm:$0xff]
    %v150 = vld [vmem:[%s0 + $0x3f0] sm:$0xff]
    %v151 = vld [vmem:[%s0 + $0x3f8] sm:$0xff]
    %v152 = vld [vmem:[%s1] sm:$0xff]
    %v153 = vld [vmem:[%s1 + $0x8] sm:$0xff]
    %v154 = vld [vmem:[%s1 + $0x10] sm:$0xff]
    %v155 = vld [vmem:[%s1 + $0x18] sm:$0xff]
    %v156 = vld [vmem:[%s1 + $0x20] sm:$0xff]
    %v157 = vld [vmem:[%s1 + $0x28] sm:$0xff]
    %v158 = vld [vmem:[%s1 + $0x30] sm:$0xff]
    %v159 = vld [vmem:[%s1 + $0x38] sm:$0xff]
    %v160 = vld [vmem:[%s1 + $0x40] sm:$0xff]
    %v161 = vld [vmem:[%s1 + $0x48] sm:$0xff]
    %v162 = vld [vmem:[%s1 + $0x50] sm:$0xff]
    %v163 = vld [vmem:[%s1 + $0x58] sm:$0xff]
    %v164 = vld [vmem:[%s1 + $0x60] sm:$0xff]
    %v165 = vld [vmem:[%s1 + $0x68] sm:$0xff]
    %v166 = vld [vmem:[%s1 + $0x70] sm:$0xff]
    %v167 = vld [vmem:[%s1 + $0x78] sm:$0xff]
    %v168 = vld [vmem:[%s1 + $0x80] sm:$0xff]
    %v169 = vld [vmem:[%s1 + $0x88] sm:$0xff]
    %v170 = vld [vmem:[%s1 + $0x90] sm:$0xff]
    %v171 = vld [vmem:[%s1 + $0x98] sm:$0xff]
    %v172 = vld [vmem:[%s1 + $0xa0] sm:$0xff]
    %v173 = vld [vmem:[%s1 + $0xa8] sm:$0xff]
    %v174 = vld [vmem:[%s1 + $0xb0] sm:$0xff]
    %v175 = vld [vmem:[%s1 + $0xb8] sm:$0xff]
    %v176 = vld [vmem:[%s1 + $0xc0] sm:$0xff]
    %v177 = vld [vmem:[%s1 + $0xc8] sm:$0xff]
    %v178 = vld [vmem:[%s1 + $0xd0] sm:$0xff]
    %v179 = vld [vmem:[%s1 + $0xd8] sm:$0xff]
    %v180 = vld [vmem:[%s1 + $0xe0] sm:$0xff]
    %v181 = vld [vmem:[%s1 + $0xe8] sm:$0xff]
    %v182 = vld [vmem:[%s1 + $0xf0] sm:$0xff]
    %v183 = vld [vmem:[%s1 + $0xf8] sm:$0xff]
    %v184 = vld [vmem:[%s1 + $0x100] sm:$0xff]
    %v185 = vld [vmem:[%s1 + $0x108] sm:$0xff]
    %v186 = vld [vmem:[%s1 + $0x110] sm:$0xff]
    %v187 = vld [vmem:[%s1 + $0x118] sm:$0xff]
    %v188 = vld [vmem:[%s1 + $0x120] sm:$0xff]
    %v189 = vld [vmem:[%s1 + $0x128] sm:$0xff]
    %v190 = vld [vmem:[%s1 + $0x130] sm:$0xff]
    %v191 = vld [vmem:[%s1 + $0x138] sm:$0xff]
    %v192 = vld [vmem:[%s1 + $0x140] sm:$0xff]
    %v193 = vld [vmem:[%s1 + $0x148] sm:$0xff]
    %v194 = vld [vmem:[%s1 + $0x150] sm:$0xff]
    %v195 = vld [vmem:[%s1 + $0x158] sm:$0xff]
    %v196 = vld [vmem:[%s1 + $0x160] sm:$0xff]
    %v197 = vld [vmem:[%s1 + $0x168] sm:$0xff]
    %v198 = vld [vmem:[%s1 + $0x170] sm:$0xff]
    %v199 = vld [vmem:[%s1 + $0x178] sm:$0xff]
    %v200 = vld [vmem:[%s1 + $0x180] sm:$0xff]
    %v201 = vld [vmem:[%s1 + $0x188] sm:$0xff]
    %v202 = vld [vmem:[%s1 + $0x190] sm:$0xff]
    %v203 = vld [vmem:[%s1 + $0x198] sm:$0xff]
    %v204 = vld [vmem:[%s1 + $0x1a0] sm:$0xff]
    %v205 = vld [vmem:[%s1 + $0x1a8] sm:$0xff]
    %v206 = vld [vmem:[%s1 + $0x1b0] sm:$0xff]
    %v207 = vld [vmem:[%s1 + $0x1b8] sm:$0xff]
    %v208 = vld [vmem:[%s1 + $0x1c0] sm:$0xff]
    %v209 = vld [vmem:[%s1 + $0x1c8] sm:$0xff]
    %v210 = vld [vmem:[%s1 + $0x1d0] sm:$0xff]
    %v211 = vld [vmem:[%s1 + $0x1d8] sm:$0xff]
    %v212 = vld [vmem:[%s1 + $0x1e0] sm:$0xff]
    %v213 = vld [vmem:[%s1 + $0x1e8] sm:$0xff]
    %v214 = vld [vmem:[%s1 + $0x1f0] sm:$0xff]
    %v215 = vld [vmem:[%s1 + $0x1f8] sm:$0xff]
    %v216 = vld [vmem:[%s1 + $0x200] sm:$0xff]
    %v217 = vld [vmem:[%s1 + $0x208] sm:$0xff]
    %v218 = vld [vmem:[%s1 + $0x210] sm:$0xff]
    %v219 = vld [vmem:[%s1 + $0x218] sm:$0xff]
    %v220 = vld [vmem:[%s1 + $0x220] sm:$0xff]
    %v221 = vld [vmem:[%s1 + $0x228] sm:$0xff]
    %v222 = vld [vmem:[%s1 + $0x230] sm:$0xff]
    %v223 = vld [vmem:[%s1 + $0x238] sm:$0xff]
    %v224 = vld [vmem:[%s1 + $0x240] sm:$0xff]
    %v225 = vld [vmem:[%s1 + $0x248] sm:$0xff]
    %v226 = vld [vmem:[%s1 + $0x250] sm:$0xff]
    %v227 = vld [vmem:[%s1 + $0x258] sm:$0xff]
    %v228 = vld [vmem:[%s1 + $0x260] sm:$0xff]
    %v229 = vld [vmem:[%s1 + $0x268] sm:$0xff]
    %v230 = vld [vmem:[%s1 + $0x270] sm:$0xff]
    %v231 = vld [vmem:[%s1 + $0x278] sm:$0xff]
    %v232 = vld [vmem:[%s1 + $0x280] sm:$0xff]
    %v233 = vld [vmem:[%s1 + $0x288] sm:$0xff]
    %v234 = vld [vmem:[%s1 + $0x290] sm:$0xff]
    %v235 = vld [vmem:[%s1 + $0x298] sm:$0xff]
    %v236 = vld [vmem:[%s1 + $0x2a0] sm:$0xff]
    %v237 = vld [vmem:[%s1 + $0x2a8] sm:$0xff]
    %v238 = vld [vmem:[%s1 + $0x2b0] sm:$0xff]
    %v239 = vld [vmem:[%s1 + $0x2b8] sm:$0xff]
    %v240 = vld [vmem:[%s1 + $0x2c0] sm:$0xff]
    %v241 = vld [vmem:[%s1 + $0x2c8] sm:$0xff]
    %v242 = vld [vmem:[%s1 + $0x2d0] sm:$0xff]
    %v243 = vld [vmem:[%s1 + $0x2d8] sm:$0xff]
    %v244 = vld [vmem:[%s1 + $0x2e0] sm:$0xff]
    %v245 = vld [vmem:[%s1 + $0x2e8] sm:$0xff]
    %v246 = vld [vmem:[%s1 + $0x2f0] sm:$0xff]
    %v247 = vld [vmem:[%s1 + $0x2f8] sm:$0xff]
    %v248 = vld [vmem:[%s1 + $0x300] sm:$0xff]
    %v249 = vld [vmem:[%s1 + $0x308] sm:$0xff]
    %v250 = vld [vmem:[%s1 + $0x310] sm:$0xff]
    %v251 = vld [vmem:[%s1 + $0x318] sm:$0xff]
    %v252 = vld [vmem:[%s1 + $0x320] sm:$0xff]
    %v253 = vld [vmem:[%s1 + $0x328] sm:$0xff]
    %v254 = vld [vmem:[%s1 + $0x330] sm:$0xff]
    %v255 = vld [vmem:[%s1 + $0x338] sm:$0xff]
    %v256 = vld [vmem:[%s1 + $0x340] sm:$0xff]
    %v257 = vld [vmem:[%s1 + $0x348] sm:$0xff]
    %v258 = vld [vmem:[%s1 + $0x350] sm:$0xff]
    %v259 = vld [vmem:[%s1 + $0x358] sm:$0xff]
    %v260 = vld [vmem:[%s1 + $0x360] sm:$0xff]
    %v261 = vld [vmem:[%s1 + $0x368] sm:$0xff]
    %v262 = vld [vmem:[%s1 + $0x370] sm:$0xff]
    %v263 = vld [vmem:[%s1 + $0x378] sm:$0xff]
    %v264 = vld [vmem:[%s1 + $0x380] sm:$0xff]
    %v265 = vld [vmem:[%s1 + $0x388] sm:$0xff]
    %v266 = vld [vmem:[%s1 + $0x390] sm:$0xff]
    %v267 = vld [vmem:[%s1 + $0x398] sm:$0xff]
    %v268 = vld [vmem:[%s1 + $0x3a0] sm:$0xff]
    %v269 = vld [vmem:[%s1 + $0x3a8] sm:$0xff]
    %v270 = vld [vmem:[%s1 + $0x3b0] sm:$0xff]
    %v271 = vld [vmem:[%s1 + $0x3b8] sm:$0xff]
    %v272 = vld [vmem:[%s1 + $0x3c0] sm:$0xff]
    %v273 = vld [vmem:[%s1 + $0x3c8] sm:$0xff]
    %v274 = vld [vmem:[%s1 + $0x3d0] sm:$0xff]
    %v275 = vld [vmem:[%s1 + $0x3d8] sm:$0xff]
    %v276 = vld [vmem:[%s1 + $0x3e0] sm:$0xff]
    %v277 = vld [vmem:[%s1 + $0x3e8] sm:$0xff]
    %v278 = vld [vmem:[%s1 + $0x3f0] sm:$0xff]
    %v279 = vld [vmem:[%s1 + $0x3f8] sm:$0xff]
    %vm280 = vcmp.ge.f32.partialorder %v152, 1.0
    %vm281 = vcmp.ge.f32.partialorder %v153, 1.0
    %vm282 = vcmp.ge.f32.partialorder %v154, 1.0
    %vm283 = vcmp.ge.f32.partialorder %v155, 1.0
    %vm284 = vcmp.ge.f32.partialorder %v156, 1.0
    %vm285 = vcmp.ge.f32.partialorder %v157, 1.0
    %vm286 = vcmp.ge.f32.partialorder %v158, 1.0
    %vm287 = vcmp.ge.f32.partialorder %v159, 1.0
    %vm288 = vcmp.ge.f32.partialorder %v160, 1.0
    %vm289 = vcmp.ge.f32.partialorder %v161, 1.0
    %vm290 = vcmp.ge.f32.partialorder %v162, 1.0
    %vm291 = vcmp.ge.f32.partialorder %v163, 1.0
    %vm292 = vcmp.ge.f32.partialorder %v164, 1.0
    %vm293 = vcmp.ge.f32.partialorder %v165, 1.0
    %vm294 = vcmp.ge.f32.partialorder %v166, 1.0
    %vm295 = vcmp.ge.f32.partialorder %v167, 1.0
    %vm296 = vcmp.ge.f32.partialorder %v168, 1.0
    %vm297 = vcmp.ge.f32.partialorder %v169, 1.0
    %vm298 = vcmp.ge.f32.partialorder %v170, 1.0
    %vm299 = vcmp.ge.f32.partialorder %v171, 1.0
    %vm300 = vcmp.ge.f32.partialorder %v172, 1.0
    %vm301 = vcmp.ge.f32.partialorder %v173, 1.0
    %vm302 = vcmp.ge.f32.partialorder %v174, 1.0
    %vm303 = vcmp.ge.f32.partialorder %v175, 1.0
    %vm304 = vcmp.ge.f32.partialorder %v176, 1.0
    %vm305 = vcmp.ge.f32.partialorder %v177, 1.0
    %vm306 = vcmp.ge.f32.partialorder %v178, 1.0
    %vm307 = vcmp.ge.f32.partialorder %v179, 1.0
    %vm308 = vcmp.ge.f32.partialorder %v180, 1.0
    %vm309 = vcmp.ge.f32.partialorder %v181, 1.0
    %vm310 = vcmp.ge.f32.partialorder %v182, 1.0
    %vm311 = vcmp.ge.f32.partialorder %v183, 1.0
    %vm312 = vcmp.ge.f32.partialorder %v184, 1.0
    %vm313 = vcmp.ge.f32.partialorder %v185, 1.0
    %vm314 = vcmp.ge.f32.partialorder %v186, 1.0
    %vm315 = vcmp.ge.f32.partialorder %v187, 1.0
    %vm316 = vcmp.ge.f32.partialorder %v188, 1.0
    %vm317 = vcmp.ge.f32.partialorder %v189, 1.0
    %vm318 = vcmp.ge.f32.partialorder %v190, 1.0
    %vm319 = vcmp.ge.f32.partialorder %v191, 1.0
    %vm320 = vcmp.ge.f32.partialorder %v192, 1.0
    %vm321 = vcmp.ge.f32.partialorder %v193, 1.0
    %vm322 = vcmp.ge.f32.partialorder %v194, 1.0
    %vm323 = vcmp.ge.f32.partialorder %v195, 1.0
    %vm324 = vcmp.ge.f32.partialorder %v196, 1.0
    %vm325 = vcmp.ge.f32.partialorder %v197, 1.0
    %vm326 = vcmp.ge.f32.partialorder %v198, 1.0
    %vm327 = vcmp.ge.f32.partialorder %v199, 1.0
    %vm328 = vcmp.ge.f32.partialorder %v200, 1.0
    %vm329 = vcmp.ge.f32.partialorder %v201, 1.0
    %vm330 = vcmp.ge.f32.partialorder %v202, 1.0
    %vm331 = vcmp.ge.f32.partialorder %v203, 1.0
    %vm332 = vcmp.ge.f32.partialorder %v204, 1.0
    %vm333 = vcmp.ge.f32.partialorder %v205, 1.0
    %vm334 = vcmp.ge.f32.partialorder %v206, 1.0
    %vm335 = vcmp.ge.f32.partialorder %v207, 1.0
    %vm336 = vcmp.ge.f32.partialorder %v208, 1.0
    %vm337 = vcmp.ge.f32.partialorder %v209, 1.0
    %vm338 = vcmp.ge.f32.partialorder %v210, 1.0
    %vm339 = vcmp.ge.f32.partialorder %v211, 1.0
    %vm340 = vcmp.ge.f32.partialorder %v212, 1.0
    %vm341 = vcmp.ge.f32.partialorder %v213, 1.0
    %vm342 = vcmp.ge.f32.partialorder %v214, 1.0
    %vm343 = vcmp.ge.f32.partialorder %v215, 1.0
    %vm344 = vcmp.ge.f32.partialorder %v216, 1.0
    %vm345 = vcmp.ge.f32.partialorder %v217, 1.0
    %vm346 = vcmp.ge.f32.partialorder %v218, 1.0
    %vm347 = vcmp.ge.f32.partialorder %v219, 1.0
    %vm348 = vcmp.ge.f32.partialorder %v220, 1.0
    %vm349 = vcmp.ge.f32.partialorder %v221, 1.0
    %vm350 = vcmp.ge.f32.partialorder %v222, 1.0
    %vm351 = vcmp.ge.f32.partialorder %v223, 1.0
    %vm352 = vcmp.ge.f32.partialorder %v224, 1.0
    %vm353 = vcmp.ge.f32.partialorder %v225, 1.0
    %vm354 = vcmp.ge.f32.partialorder %v226, 1.0
    %vm355 = vcmp.ge.f32.partialorder %v227, 1.0
    %vm356 = vcmp.ge.f32.partialorder %v228, 1.0
    %vm357 = vcmp.ge.f32.partialorder %v229, 1.0
    %vm358 = vcmp.ge.f32.partialorder %v230, 1.0
    %vm359 = vcmp.ge.f32.partialorder %v231, 1.0
    %vm360 = vcmp.ge.f32.partialorder %v232, 1.0
    %vm361 = vcmp.ge.f32.partialorder %v233, 1.0
    %vm362 = vcmp.ge.f32.partialorder %v234, 1.0
    %vm363 = vcmp.ge.f32.partialorder %v235, 1.0
    %vm364 = vcmp.ge.f32.partialorder %v236, 1.0
    %vm365 = vcmp.ge.f32.partialorder %v237, 1.0
    %vm366 = vcmp.ge.f32.partialorder %v238, 1.0
    %vm367 = vcmp.ge.f32.partialorder %v239, 1.0
    %vm368 = vcmp.ge.f32.partialorder %v240, 1.0
    %vm369 = vcmp.ge.f32.partialorder %v241, 1.0
    %vm370 = vcmp.ge.f32.partialorder %v242, 1.0
    %vm371 = vcmp.ge.f32.partialorder %v243, 1.0
    %vm372 = vcmp.ge.f32.partialorder %v244, 1.0
    %vm373 = vcmp.ge.f32.partialorder %v245, 1.0
    %vm374 = vcmp.ge.f32.partialorder %v246, 1.0
    %vm375 = vcmp.ge.f32.partialorder %v247, 1.0
    %vm376 = vcmp.ge.f32.partialorder %v248, 1.0
    %vm377 = vcmp.ge.f32.partialorder %v249, 1.0
    %vm378 = vcmp.ge.f32.partialorder %v250, 1.0
    %vm379 = vcmp.ge.f32.partialorder %v251, 1.0
    %vm380 = vcmp.ge.f32.partialorder %v252, 1.0
    %vm381 = vcmp.ge.f32.partialorder %v253, 1.0
    %vm382 = vcmp.ge.f32.partialorder %v254, 1.0
    %vm383 = vcmp.ge.f32.partialorder %v255, 1.0
    %vm384 = vcmp.ge.f32.partialorder %v256, 1.0
    %vm385 = vcmp.ge.f32.partialorder %v257, 1.0
    %vm386 = vcmp.ge.f32.partialorder %v258, 1.0
    %vm387 = vcmp.ge.f32.partialorder %v259, 1.0
    %vm388 = vcmp.ge.f32.partialorder %v260, 1.0
    %vm389 = vcmp.ge.f32.partialorder %v261, 1.0
    %vm390 = vcmp.ge.f32.partialorder %v262, 1.0
    %vm391 = vcmp.ge.f32.partialorder %v263, 1.0
    %vm392 = vcmp.ge.f32.partialorder %v264, 1.0
    %vm393 = vcmp.ge.f32.partialorder %v265, 1.0
    %vm394 = vcmp.ge.f32.partialorder %v266, 1.0
    %vm395 = vcmp.ge.f32.partialorder %v267, 1.0
    %vm396 = vcmp.ge.f32.partialorder %v268, 1.0
    %vm397 = vcmp.ge.f32.partialorder %v269, 1.0
    %vm398 = vcmp.ge.f32.partialorder %v270, 1.0
    %vm399 = vcmp.ge.f32.partialorder %v271, 1.0
    %vm400 = vcmp.ge.f32.partialorder %v272, 1.0
    %vm401 = vcmp.ge.f32.partialorder %v273, 1.0
    %vm402 = vcmp.ge.f32.partialorder %v274, 1.0
    %vm403 = vcmp.ge.f32.partialorder %v275, 1.0
    %vm404 = vcmp.ge.f32.partialorder %v276, 1.0
    %vm405 = vcmp.ge.f32.partialorder %v277, 1.0
    %vm406 = vcmp.ge.f32.partialorder %v278, 1.0
    %vm407 = vcmp.ge.f32.partialorder %v279, 1.0
    %v408 = vsel %vm280, %v152, inf
    %v409 = vsel %vm281, %v153, inf
    %v410 = vsel %vm282, %v154, inf
    %v411 = vsel %vm283, %v155, inf
    %v412 = vsel %vm284, %v156, inf
    %v413 = vsel %vm285, %v157, inf
    %v414 = vsel %vm286, %v158, inf
    %v415 = vsel %vm287, %v159, inf
    %v416 = vsel %vm288, %v160, inf
    %v417 = vsel %vm289, %v161, inf
    %v418 = vsel %vm290, %v162, inf
    %v419 = vsel %vm291, %v163, inf
    %v420 = vsel %vm292, %v164, inf
    %v421 = vsel %vm293, %v165, inf
    %v422 = vsel %vm294, %v166, inf
    %v423 = vsel %vm295, %v167, inf
    %v424 = vsel %vm296, %v168, inf
    %v425 = vsel %vm297, %v169, inf
    %v426 = vsel %vm298, %v170, inf
    %v427 = vsel %vm299, %v171, inf
    %v428 = vsel %vm300, %v172, inf
    %v429 = vsel %vm301, %v173, inf
    %v430 = vsel %vm302, %v174, inf
    %v431 = vsel %vm303, %v175, inf
    %v432 = vsel %vm304, %v176, inf
    %v433 = vsel %vm305, %v177, inf
    %v434 = vsel %vm306, %v178, inf
    %v435 = vsel %vm307, %v179, inf
    %v436 = vsel %vm308, %v180, inf
    %v437 = vsel %vm309, %v181, inf
    %v438 = vsel %vm310, %v182, inf
    %v439 = vsel %vm311, %v183, inf
    %v440 = vsel %vm312, %v184, inf
    %v441 = vsel %vm313, %v185, inf
    %v442 = vsel %vm314, %v186, inf
    %v443 = vsel %vm315, %v187, inf
    %v444 = vsel %vm316, %v188, inf
    %v445 = vsel %vm317, %v189, inf
    %v446 = vsel %vm318, %v190, inf
    %v447 = vsel %vm319, %v191, inf
    %v448 = vsel %vm320, %v192, inf
    %v449 = vsel %vm321, %v193, inf
    %v450 = vsel %vm322, %v194, inf
    %v451 = vsel %vm323, %v195, inf
    %v452 = vsel %vm324, %v196, inf
    %v453 = vsel %vm325, %v197, inf
    %v454 = vsel %vm326, %v198, inf
    %v455 = vsel %vm327, %v199, inf
    %v456 = vsel %vm328, %v200, inf
    %v457 = vsel %vm329, %v201, inf
    %v458 = vsel %vm330, %v202, inf
    %v459 = vsel %vm331, %v203, inf
    %v460 = vsel %vm332, %v204, inf
    %v461 = vsel %vm333, %v205, inf
    %v462 = vsel %vm334, %v206, inf
    %v463 = vsel %vm335, %v207, inf
    %v464 = vsel %vm336, %v208, inf
    %v465 = vsel %vm337, %v209, inf
    %v466 = vsel %vm338, %v210, inf
    %v467 = vsel %vm339, %v211, inf
    %v468 = vsel %vm340, %v212, inf
    %v469 = vsel %vm341, %v213, inf
    %v470 = vsel %vm342, %v214, inf
    %v471 = vsel %vm343, %v215, inf
    %v472 = vsel %vm344, %v216, inf
    %v473 = vsel %vm345, %v217, inf
    %v474 = vsel %vm346, %v218, inf
    %v475 = vsel %vm347, %v219, inf
    %v476 = vsel %vm348, %v220, inf
    %v477 = vsel %vm349, %v221, inf
    %v478 = vsel %vm350, %v222, inf
    %v479 = vsel %vm351, %v223, inf
    %v480 = vsel %vm352, %v224, inf
    %v481 = vsel %vm353, %v225, inf
    %v482 = vsel %vm354, %v226, inf
    %v483 = vsel %vm355, %v227, inf
    %v484 = vsel %vm356, %v228, inf
    %v485 = vsel %vm357, %v229, inf
    %v486 = vsel %vm358, %v230, inf
    %v487 = vsel %vm359, %v231, inf
    %v488 = vsel %vm360, %v232, inf
    %v489 = vsel %vm361, %v233, inf
    %v490 = vsel %vm362, %v234, inf
    %v491 = vsel %vm363, %v235, inf
    %v492 = vsel %vm364, %v236, inf
    %v493 = vsel %vm365, %v237, inf
    %v494 = vsel %vm366, %v238, inf
    %v495 = vsel %vm367, %v239, inf
    %v496 = vsel %vm368, %v240, inf
    %v497 = vsel %vm369, %v241, inf
    %v498 = vsel %vm370, %v242, inf
    %v499 = vsel %vm371, %v243, inf
    %v500 = vsel %vm372, %v244, inf
    %v501 = vsel %vm373, %v245, inf
    %v502 = vsel %vm374, %v246, inf
    %v503 = vsel %vm375, %v247, inf
    %v504 = vsel %vm376, %v248, inf
    %v505 = vsel %vm377, %v249, inf
    %v506 = vsel %vm378, %v250, inf
    %v507 = vsel %vm379, %v251, inf
    %v508 = vsel %vm380, %v252, inf
    %v509 = vsel %vm381, %v253, inf
    %v510 = vsel %vm382, %v254, inf
    %v511 = vsel %vm383, %v255, inf
    %v512 = vsel %vm384, %v256, inf
    %v513 = vsel %vm385, %v257, inf
    %v514 = vsel %vm386, %v258, inf
    %v515 = vsel %vm387, %v259, inf
    %v516 = vsel %vm388, %v260, inf
    %v517 = vsel %vm389, %v261, inf
    %v518 = vsel %vm390, %v262, inf
    %v519 = vsel %vm391, %v263, inf
    %v520 = vsel %vm392, %v264, inf
    %v521 = vsel %vm393, %v265, inf
    %v522 = vsel %vm394, %v266, inf
    %v523 = vsel %vm395, %v267, inf
    %v524 = vsel %vm396, %v268, inf
    %v525 = vsel %vm397, %v269, inf
    %v526 = vsel %vm398, %v270, inf
    %v527 = vsel %vm399, %v271, inf
    %v528 = vsel %vm400, %v272, inf
    %v529 = vsel %vm401, %v273, inf
    %v530 = vsel %vm402, %v274, inf
    %v531 = vsel %vm403, %v275, inf
    %v532 = vsel %vm404, %v276, inf
    %v533 = vsel %vm405, %v277, inf
    %v534 = vsel %vm406, %v278, inf
    %v535 = vsel %vm407, %v279, inf
    %vm536 = vcmask 556032
    %v537 = vsel %vm536, %v409, inf
    %v538 = vmin.f32 %v408, %v537
    %539 = vmin.xlane.f32.xlu0 %v538
    %v540 = vpop.xlane.xlu0 %539
    %v541 = vsel %vm536, %v411, inf
    %v542 = vmin.f32 %v410, %v541
    %543 = vmin.xlane.f32.xlu0 %v542
    %v544 = vpop.xlane.xlu0 %543
    %v545 = vsel %vm536, %v413, inf
    %v546 = vmin.f32 %v412, %v545
    %547 = vmin.xlane.f32.xlu0 %v546
    %v548 = vpop.xlane.xlu0 %547
    %v549 = vsel %vm536, %v415, inf
    %v550 = vmin.f32 %v414, %v549
    %551 = vmin.xlane.f32.xlu0 %v550
    %v552 = vpop.xlane.xlu0 %551
    %v553 = vsel %vm536, %v417, inf
    %v554 = vmin.f32 %v416, %v553
    %555 = vmin.xlane.f32.xlu0 %v554
    %v556 = vpop.xlane.xlu0 %555
    %v557 = vsel %vm536, %v419, inf
    %v558 = vmin.f32 %v418, %v557
    %559 = vmin.xlane.f32.xlu0 %v558
    %v560 = vpop.xlane.xlu0 %559
    %v561 = vsel %vm536, %v421, inf
    %v562 = vmin.f32 %v420, %v561
    %563 = vmin.xlane.f32.xlu0 %v562
    %v564 = vpop.xlane.xlu0 %563
    %v565 = vsel %vm536, %v423, inf
    %v566 = vmin.f32 %v422, %v565
    %567 = vmin.xlane.f32.xlu0 %v566
    %v568 = vpop.xlane.xlu0 %567
    %v569 = vsel %vm536, %v425, inf
    %v570 = vmin.f32 %v424, %v569
    %571 = vmin.xlane.f32.xlu0 %v570
    %v572 = vpop.xlane.xlu0 %571
    %v573 = vsel %vm536, %v427, inf
    %v574 = vmin.f32 %v426, %v573
    %575 = vmin.xlane.f32.xlu0 %v574
    %v576 = vpop.xlane.xlu0 %575
    %v577 = vsel %vm536, %v429, inf
    %v578 = vmin.f32 %v428, %v577
    %579 = vmin.xlane.f32.xlu0 %v578
    %v580 = vpop.xlane.xlu0 %579
    %v581 = vsel %vm536, %v431, inf
    %v582 = vmin.f32 %v430, %v581
    %583 = vmin.xlane.f32.xlu0 %v582
    %v584 = vpop.xlane.xlu0 %583
    %v585 = vsel %vm536, %v433, inf
    %v586 = vmin.f32 %v432, %v585
    %587 = vmin.xlane.f32.xlu0 %v586
    %v588 = vpop.xlane.xlu0 %587
    %v589 = vsel %vm536, %v435, inf
    %v590 = vmin.f32 %v434, %v589
    %591 = vmin.xlane.f32.xlu0 %v590
    %v592 = vpop.xlane.xlu0 %591
    %v593 = vsel %vm536, %v437, inf
    %v594 = vmin.f32 %v436, %v593
    %595 = vmin.xlane.f32.xlu0 %v594
    %v596 = vpop.xlane.xlu0 %595
    %v597 = vsel %vm536, %v439, inf
    %v598 = vmin.f32 %v438, %v597
    %599 = vmin.xlane.f32.xlu0 %v598
    %v600 = vpop.xlane.xlu0 %599
    %v601 = vsel %vm536, %v441, inf
    %v602 = vmin.f32 %v440, %v601
    %603 = vmin.xlane.f32.xlu0 %v602
    %v604 = vpop.xlane.xlu0 %603
    %v605 = vsel %vm536, %v443, inf
    %v606 = vmin.f32 %v442, %v605
    %607 = vmin.xlane.f32.xlu0 %v606
    %v608 = vpop.xlane.xlu0 %607
    %v609 = vsel %vm536, %v445, inf
    %v610 = vmin.f32 %v444, %v609
    %611 = vmin.xlane.f32.xlu0 %v610
    %v612 = vpop.xlane.xlu0 %611
    %v613 = vsel %vm536, %v447, inf
    %v614 = vmin.f32 %v446, %v613
    %615 = vmin.xlane.f32.xlu0 %v614
    %v616 = vpop.xlane.xlu0 %615
    %v617 = vsel %vm536, %v449, inf
    %v618 = vmin.f32 %v448, %v617
    %619 = vmin.xlane.f32.xlu0 %v618
    %v620 = vpop.xlane.xlu0 %619
    %v621 = vsel %vm536, %v451, inf
    %v622 = vmin.f32 %v450, %v621
    %623 = vmin.xlane.f32.xlu0 %v622
    %v624 = vpop.xlane.xlu0 %623
    %v625 = vsel %vm536, %v453, inf
    %v626 = vmin.f32 %v452, %v625
    %627 = vmin.xlane.f32.xlu0 %v626
    %v628 = vpop.xlane.xlu0 %627
    %v629 = vsel %vm536, %v455, inf
    %v630 = vmin.f32 %v454, %v629
    %631 = vmin.xlane.f32.xlu0 %v630
    %v632 = vpop.xlane.xlu0 %631
    %v633 = vsel %vm536, %v457, inf
    %v634 = vmin.f32 %v456, %v633
    %635 = vmin.xlane.f32.xlu0 %v634
    %v636 = vpop.xlane.xlu0 %635
    %v637 = vsel %vm536, %v459, inf
    %v638 = vmin.f32 %v458, %v637
    %639 = vmin.xlane.f32.xlu0 %v638
    %v640 = vpop.xlane.xlu0 %639
    %v641 = vsel %vm536, %v461, inf
    %v642 = vmin.f32 %v460, %v641
    %643 = vmin.xlane.f32.xlu0 %v642
    %v644 = vpop.xlane.xlu0 %643
    %v645 = vsel %vm536, %v463, inf
    %v646 = vmin.f32 %v462, %v645
    %647 = vmin.xlane.f32.xlu0 %v646
    %v648 = vpop.xlane.xlu0 %647
    %v649 = vsel %vm536, %v465, inf
    %v650 = vmin.f32 %v464, %v649
    %651 = vmin.xlane.f32.xlu0 %v650
    %v652 = vpop.xlane.xlu0 %651
    %v653 = vsel %vm536, %v467, inf
    %v654 = vmin.f32 %v466, %v653
    %655 = vmin.xlane.f32.xlu0 %v654
    %v656 = vpop.xlane.xlu0 %655
    %v657 = vsel %vm536, %v469, inf
    %v658 = vmin.f32 %v468, %v657
    %659 = vmin.xlane.f32.xlu0 %v658
    %v660 = vpop.xlane.xlu0 %659
    %v661 = vsel %vm536, %v471, inf
    %v662 = vmin.f32 %v470, %v661
    %663 = vmin.xlane.f32.xlu0 %v662
    %v664 = vpop.xlane.xlu0 %663
    %v665 = vsel %vm536, %v473, inf
    %v666 = vmin.f32 %v472, %v665
    %667 = vmin.xlane.f32.xlu0 %v666
    %v668 = vpop.xlane.xlu0 %667
    %v669 = vsel %vm536, %v475, inf
    %v670 = vmin.f32 %v474, %v669
    %671 = vmin.xlane.f32.xlu0 %v670
    %v672 = vpop.xlane.xlu0 %671
    %v673 = vsel %vm536, %v477, inf
    %v674 = vmin.f32 %v476, %v673
    %675 = vmin.xlane.f32.xlu0 %v674
    %v676 = vpop.xlane.xlu0 %675
    %v677 = vsel %vm536, %v479, inf
    %v678 = vmin.f32 %v478, %v677
    %679 = vmin.xlane.f32.xlu0 %v678
    %v680 = vpop.xlane.xlu0 %679
    %v681 = vsel %vm536, %v481, inf
    %v682 = vmin.f32 %v480, %v681
    %683 = vmin.xlane.f32.xlu0 %v682
    %v684 = vpop.xlane.xlu0 %683
    %v685 = vsel %vm536, %v483, inf
    %v686 = vmin.f32 %v482, %v685
    %687 = vmin.xlane.f32.xlu0 %v686
    %v688 = vpop.xlane.xlu0 %687
    %v689 = vsel %vm536, %v485, inf
    %v690 = vmin.f32 %v484, %v689
    %691 = vmin.xlane.f32.xlu0 %v690
    %v692 = vpop.xlane.xlu0 %691
    %v693 = vsel %vm536, %v487, inf
    %v694 = vmin.f32 %v486, %v693
    %695 = vmin.xlane.f32.xlu0 %v694
    %v696 = vpop.xlane.xlu0 %695
    %v697 = vsel %vm536, %v489, inf
    %v698 = vmin.f32 %v488, %v697
    %699 = vmin.xlane.f32.xlu0 %v698
    %v700 = vpop.xlane.xlu0 %699
    %v701 = vsel %vm536, %v491, inf
    %v702 = vmin.f32 %v490, %v701
    %703 = vmin.xlane.f32.xlu0 %v702
    %v704 = vpop.xlane.xlu0 %703
    %v705 = vsel %vm536, %v493, inf
    %v706 = vmin.f32 %v492, %v705
    %707 = vmin.xlane.f32.xlu0 %v706
    %v708 = vpop.xlane.xlu0 %707
    %v709 = vsel %vm536, %v495, inf
    %v710 = vmin.f32 %v494, %v709
    %711 = vmin.xlane.f32.xlu0 %v710
    %v712 = vpop.xlane.xlu0 %711
    %v713 = vsel %vm536, %v497, inf
    %v714 = vmin.f32 %v496, %v713
    %715 = vmin.xlane.f32.xlu0 %v714
    %v716 = vpop.xlane.xlu0 %715
    %v717 = vsel %vm536, %v499, inf
    %v718 = vmin.f32 %v498, %v717
    %719 = vmin.xlane.f32.xlu0 %v718
    %v720 = vpop.xlane.xlu0 %719
    %v721 = vsel %vm536, %v501, inf
    %v722 = vmin.f32 %v500, %v721
    %723 = vmin.xlane.f32.xlu0 %v722
    %v724 = vpop.xlane.xlu0 %723
    %v725 = vsel %vm536, %v503, inf
    %v726 = vmin.f32 %v502, %v725
    %727 = vmin.xlane.f32.xlu0 %v726
    %v728 = vpop.xlane.xlu0 %727
    %v729 = vsel %vm536, %v505, inf
    %v730 = vmin.f32 %v504, %v729
    %731 = vmin.xlane.f32.xlu0 %v730
    %v732 = vpop.xlane.xlu0 %731
    %v733 = vsel %vm536, %v507, inf
    %v734 = vmin.f32 %v506, %v733
    %735 = vmin.xlane.f32.xlu0 %v734
    %v736 = vpop.xlane.xlu0 %735
    %v737 = vsel %vm536, %v509, inf
    %v738 = vmin.f32 %v508, %v737
    %739 = vmin.xlane.f32.xlu0 %v738
    %v740 = vpop.xlane.xlu0 %739
    %v741 = vsel %vm536, %v511, inf
    %v742 = vmin.f32 %v510, %v741
    %743 = vmin.xlane.f32.xlu0 %v742
    %v744 = vpop.xlane.xlu0 %743
    %v745 = vsel %vm536, %v513, inf
    %v746 = vmin.f32 %v512, %v745
    %747 = vmin.xlane.f32.xlu0 %v746
    %v748 = vpop.xlane.xlu0 %747
    %v749 = vsel %vm536, %v515, inf
    %v750 = vmin.f32 %v514, %v749
    %751 = vmin.xlane.f32.xlu0 %v750
    %v752 = vpop.xlane.xlu0 %751
    %v753 = vsel %vm536, %v517, inf
    %v754 = vmin.f32 %v516, %v753
    %755 = vmin.xlane.f32.xlu0 %v754
    %v756 = vpop.xlane.xlu0 %755
    %v757 = vsel %vm536, %v519, inf
    %v758 = vmin.f32 %v518, %v757
    %759 = vmin.xlane.f32.xlu0 %v758
    %v760 = vpop.xlane.xlu0 %759
    %v761 = vsel %vm536, %v521, inf
    %v762 = vmin.f32 %v520, %v761
    %763 = vmin.xlane.f32.xlu0 %v762
    %v764 = vpop.xlane.xlu0 %763
    %v765 = vsel %vm536, %v523, inf
    %v766 = vmin.f32 %v522, %v765
    %767 = vmin.xlane.f32.xlu0 %v766
    %v768 = vpop.xlane.xlu0 %767
    %v769 = vsel %vm536, %v525, inf
    %v770 = vmin.f32 %v524, %v769
    %771 = vmin.xlane.f32.xlu0 %v770
    %v772 = vpop.xlane.xlu0 %771
    %v773 = vsel %vm536, %v527, inf
    %v774 = vmin.f32 %v526, %v773
    %775 = vmin.xlane.f32.xlu0 %v774
    %v776 = vpop.xlane.xlu0 %775
    %v777 = vsel %vm536, %v529, inf
    %v778 = vmin.f32 %v528, %v777
    %779 = vmin.xlane.f32.xlu0 %v778
    %v780 = vpop.xlane.xlu0 %779
    %v781 = vsel %vm536, %v531, inf
    %v782 = vmin.f32 %v530, %v781
    %783 = vmin.xlane.f32.xlu0 %v782
    %v784 = vpop.xlane.xlu0 %783
    %v785 = vsel %vm536, %v533, inf
    %v786 = vmin.f32 %v532, %v785
    %787 = vmin.xlane.f32.xlu0 %v786
    %v788 = vpop.xlane.xlu0 %787
    %v789 = vsel %vm536, %v535, inf
    %v790 = vmin.f32 %v534, %v789
    %791 = vmin.xlane.f32.xlu0 %v790
    %v792 = vpop.xlane.xlu0 %791
    %v793 = vsel %vm536, %v153, inf
    %v794 = vmin.f32 %v152, %v793
    %795 = vmin.xlane.f32.xlu0 %v794
    %v796 = vpop.xlane.xlu0 %795
    %v797 = vsel %vm536, %v155, inf
    %v798 = vmin.f32 %v154, %v797
    %799 = vmin.xlane.f32.xlu0 %v798
    %v800 = vpop.xlane.xlu0 %799
    %v801 = vsel %vm536, %v157, inf
    %v802 = vmin.f32 %v156, %v801
    %803 = vmin.xlane.f32.xlu0 %v802
    %v804 = vpop.xlane.xlu0 %803
    %v805 = vsel %vm536, %v159, inf
    %v806 = vmin.f32 %v158, %v805
    %807 = vmin.xlane.f32.xlu0 %v806
    %v808 = vpop.xlane.xlu0 %807
    %v809 = vsel %vm536, %v161, inf
    %v810 = vmin.f32 %v160, %v809
    %811 = vmin.xlane.f32.xlu0 %v810
    %v812 = vpop.xlane.xlu0 %811
    %v813 = vsel %vm536, %v163, inf
    %v814 = vmin.f32 %v162, %v813
    %815 = vmin.xlane.f32.xlu0 %v814
    %v816 = vpop.xlane.xlu0 %815
    %v817 = vsel %vm536, %v165, inf
    %v818 = vmin.f32 %v164, %v817
    %819 = vmin.xlane.f32.xlu0 %v818
    %v820 = vpop.xlane.xlu0 %819
    %v821 = vsel %vm536, %v167, inf
    %v822 = vmin.f32 %v166, %v821
    %823 = vmin.xlane.f32.xlu0 %v822
    %v824 = vpop.xlane.xlu0 %823
    %v825 = vsel %vm536, %v169, inf
    %v826 = vmin.f32 %v168, %v825
    %827 = vmin.xlane.f32.xlu0 %v826
    %v828 = vpop.xlane.xlu0 %827
    %v829 = vsel %vm536, %v171, inf
    %v830 = vmin.f32 %v170, %v829
    %831 = vmin.xlane.f32.xlu0 %v830
    %v832 = vpop.xlane.xlu0 %831
    %v833 = vsel %vm536, %v173, inf
    %v834 = vmin.f32 %v172, %v833
    %835 = vmin.xlane.f32.xlu0 %v834
    %v836 = vpop.xlane.xlu0 %835
    %v837 = vsel %vm536, %v175, inf
    %v838 = vmin.f32 %v174, %v837
    %839 = vmin.xlane.f32.xlu0 %v838
    %v840 = vpop.xlane.xlu0 %839
    %v841 = vsel %vm536, %v177, inf
    %v842 = vmin.f32 %v176, %v841
    %843 = vmin.xlane.f32.xlu0 %v842
    %v844 = vpop.xlane.xlu0 %843
    %v845 = vsel %vm536, %v179, inf
    %v846 = vmin.f32 %v178, %v845
    %847 = vmin.xlane.f32.xlu0 %v846
    %v848 = vpop.xlane.xlu0 %847
    %v849 = vsel %vm536, %v181, inf
    %v850 = vmin.f32 %v180, %v849
    %851 = vmin.xlane.f32.xlu0 %v850
    %v852 = vpop.xlane.xlu0 %851
    %v853 = vsel %vm536, %v183, inf
    %v854 = vmin.f32 %v182, %v853
    %855 = vmin.xlane.f32.xlu0 %v854
    %v856 = vpop.xlane.xlu0 %855
    %v857 = vsel %vm536, %v185, inf
    %v858 = vmin.f32 %v184, %v857
    %859 = vmin.xlane.f32.xlu0 %v858
    %v860 = vpop.xlane.xlu0 %859
    %v861 = vsel %vm536, %v187, inf
    %v862 = vmin.f32 %v186, %v861
    %863 = vmin.xlane.f32.xlu0 %v862
    %v864 = vpop.xlane.xlu0 %863
    %v865 = vsel %vm536, %v189, inf
    %v866 = vmin.f32 %v188, %v865
    %867 = vmin.xlane.f32.xlu0 %v866
    %v868 = vpop.xlane.xlu0 %867
    %v869 = vsel %vm536, %v191, inf
    %v870 = vmin.f32 %v190, %v869
    %871 = vmin.xlane.f32.xlu0 %v870
    %v872 = vpop.xlane.xlu0 %871
    %v873 = vsel %vm536, %v193, inf
    %v874 = vmin.f32 %v192, %v873
    %875 = vmin.xlane.f32.xlu0 %v874
    %v876 = vpop.xlane.xlu0 %875
    %v877 = vsel %vm536, %v195, inf
    %v878 = vmin.f32 %v194, %v877
    %879 = vmin.xlane.f32.xlu0 %v878
    %v880 = vpop.xlane.xlu0 %879
    %v881 = vsel %vm536, %v197, inf
    %v882 = vmin.f32 %v196, %v881
    %883 = vmin.xlane.f32.xlu0 %v882
    %v884 = vpop.xlane.xlu0 %883
    %v885 = vsel %vm536, %v199, inf
    %v886 = vmin.f32 %v198, %v885
    %887 = vmin.xlane.f32.xlu0 %v886
    %v888 = vpop.xlane.xlu0 %887
    %v889 = vsel %vm536, %v201, inf
    %v890 = vmin.f32 %v200, %v889
    %891 = vmin.xlane.f32.xlu0 %v890
    %v892 = vpop.xlane.xlu0 %891
    %v893 = vsel %vm536, %v203, inf
    %v894 = vmin.f32 %v202, %v893
    %895 = vmin.xlane.f32.xlu0 %v894
    %v896 = vpop.xlane.xlu0 %895
    %v897 = vsel %vm536, %v205, inf
    %v898 = vmin.f32 %v204, %v897
    %899 = vmin.xlane.f32.xlu0 %v898
    %v900 = vpop.xlane.xlu0 %899
    %v901 = vsel %vm536, %v207, inf
    %v902 = vmin.f32 %v206, %v901
    %903 = vmin.xlane.f32.xlu0 %v902
    %v904 = vpop.xlane.xlu0 %903
    %v905 = vsel %vm536, %v209, inf
    %v906 = vmin.f32 %v208, %v905
    %907 = vmin.xlane.f32.xlu0 %v906
    %v908 = vpop.xlane.xlu0 %907
    %v909 = vsel %vm536, %v211, inf
    %v910 = vmin.f32 %v210, %v909
    %911 = vmin.xlane.f32.xlu0 %v910
    %v912 = vpop.xlane.xlu0 %911
    %v913 = vsel %vm536, %v213, inf
    %v914 = vmin.f32 %v212, %v913
    %915 = vmin.xlane.f32.xlu0 %v914
    %v916 = vpop.xlane.xlu0 %915
    %v917 = vsel %vm536, %v215, inf
    %v918 = vmin.f32 %v214, %v917
    %919 = vmin.xlane.f32.xlu0 %v918
    %v920 = vpop.xlane.xlu0 %919
    %v921 = vsel %vm536, %v217, inf
    %v922 = vmin.f32 %v216, %v921
    %923 = vmin.xlane.f32.xlu0 %v922
    %v924 = vpop.xlane.xlu0 %923
    %v925 = vsel %vm536, %v219, inf
    %v926 = vmin.f32 %v218, %v925
    %927 = vmin.xlane.f32.xlu0 %v926
    %v928 = vpop.xlane.xlu0 %927
    %v929 = vsel %vm536, %v221, inf
    %v930 = vmin.f32 %v220, %v929
    %931 = vmin.xlane.f32.xlu0 %v930
    %v932 = vpop.xlane.xlu0 %931
    %v933 = vsel %vm536, %v223, inf
    %v934 = vmin.f32 %v222, %v933
    %935 = vmin.xlane.f32.xlu0 %v934
    %v936 = vpop.xlane.xlu0 %935
    %v937 = vsel %vm536, %v225, inf
    %v938 = vmin.f32 %v224, %v937
    %939 = vmin.xlane.f32.xlu0 %v938
    %v940 = vpop.xlane.xlu0 %939
    %v941 = vsel %vm536, %v227, inf
    %v942 = vmin.f32 %v226, %v941
    %943 = vmin.xlane.f32.xlu0 %v942
    %v944 = vpop.xlane.xlu0 %943
    %v945 = vsel %vm536, %v229, inf
    %v946 = vmin.f32 %v228, %v945
    %947 = vmin.xlane.f32.xlu0 %v946
    %v948 = vpop.xlane.xlu0 %947
    %v949 = vsel %vm536, %v231, inf
    %v950 = vmin.f32 %v230, %v949
    %951 = vmin.xlane.f32.xlu0 %v950
    %v952 = vpop.xlane.xlu0 %951
    %v953 = vsel %vm536, %v233, inf
    %v954 = vmin.f32 %v232, %v953
    %955 = vmin.xlane.f32.xlu0 %v954
    %v956 = vpop.xlane.xlu0 %955
    %v957 = vsel %vm536, %v235, inf
    %v958 = vmin.f32 %v234, %v957
    %959 = vmin.xlane.f32.xlu0 %v958
    %v960 = vpop.xlane.xlu0 %959
    %v961 = vsel %vm536, %v237, inf
    %v962 = vmin.f32 %v236, %v961
    %963 = vmin.xlane.f32.xlu0 %v962
    %v964 = vpop.xlane.xlu0 %963
    %v965 = vsel %vm536, %v239, inf
    %v966 = vmin.f32 %v238, %v965
    %967 = vmin.xlane.f32.xlu0 %v966
    %v968 = vpop.xlane.xlu0 %967
    %v969 = vsel %vm536, %v241, inf
    %v970 = vmin.f32 %v240, %v969
    %971 = vmin.xlane.f32.xlu0 %v970
    %v972 = vpop.xlane.xlu0 %971
    %v973 = vsel %vm536, %v243, inf
    %v974 = vmin.f32 %v242, %v973
    %975 = vmin.xlane.f32.xlu0 %v974
    %v976 = vpop.xlane.xlu0 %975
    %v977 = vsel %vm536, %v245, inf
    %v978 = vmin.f32 %v244, %v977
    %979 = vmin.xlane.f32.xlu0 %v978
    %v980 = vpop.xlane.xlu0 %979
    %v981 = vsel %vm536, %v247, inf
    %v982 = vmin.f32 %v246, %v981
    %983 = vmin.xlane.f32.xlu0 %v982
    %v984 = vpop.xlane.xlu0 %983
    %v985 = vsel %vm536, %v249, inf
    %v986 = vmin.f32 %v248, %v985
    %987 = vmin.xlane.f32.xlu0 %v986
    %v988 = vpop.xlane.xlu0 %987
    %v989 = vsel %vm536, %v251, inf
    %v990 = vmin.f32 %v250, %v989
    %991 = vmin.xlane.f32.xlu0 %v990
    %v992 = vpop.xlane.xlu0 %991
    %v993 = vsel %vm536, %v253, inf
    %v994 = vmin.f32 %v252, %v993
    %995 = vmin.xlane.f32.xlu0 %v994
    %v996 = vpop.xlane.xlu0 %995
    %v997 = vsel %vm536, %v255, inf
    %v998 = vmin.f32 %v254, %v997
    %999 = vmin.xlane.f32.xlu0 %v998
    %v1000 = vpop.xlane.xlu0 %999
    %v1001 = vsel %vm536, %v257, inf
    %v1002 = vmin.f32 %v256, %v1001
    %1003 = vmin.xlane.f32.xlu0 %v1002
    %v1004 = vpop.xlane.xlu0 %1003
    %v1005 = vsel %vm536, %v259, inf
    %v1006 = vmin.f32 %v258, %v1005
    %1007 = vmin.xlane.f32.xlu0 %v1006
    %v1008 = vpop.xlane.xlu0 %1007
    %v1009 = vsel %vm536, %v261, inf
    %v1010 = vmin.f32 %v260, %v1009
    %1011 = vmin.xlane.f32.xlu0 %v1010
    %v1012 = vpop.xlane.xlu0 %1011
    %v1013 = vsel %vm536, %v263, inf
    %v1014 = vmin.f32 %v262, %v1013
    %1015 = vmin.xlane.f32.xlu0 %v1014
    %v1016 = vpop.xlane.xlu0 %1015
    %v1017 = vsel %vm536, %v265, inf
    %v1018 = vmin.f32 %v264, %v1017
    %1019 = vmin.xlane.f32.xlu0 %v1018
    %v1020 = vpop.xlane.xlu0 %1019
    %v1021 = vsel %vm536, %v267, inf
    %v1022 = vmin.f32 %v266, %v1021
    %1023 = vmin.xlane.f32.xlu0 %v1022
    %v1024 = vpop.xlane.xlu0 %1023
    %v1025 = vsel %vm536, %v269, inf
    %v1026 = vmin.f32 %v268, %v1025
    %1027 = vmin.xlane.f32.xlu0 %v1026
    %v1028 = vpop.xlane.xlu0 %1027
    %v1029 = vsel %vm536, %v271, inf
    %v1030 = vmin.f32 %v270, %v1029
    %1031 = vmin.xlane.f32.xlu0 %v1030
    %v1032 = vpop.xlane.xlu0 %1031
    %v1033 = vsel %vm536, %v273, inf
    %v1034 = vmin.f32 %v272, %v1033
    %1035 = vmin.xlane.f32.xlu0 %v1034
    %v1036 = vpop.xlane.xlu0 %1035
    %v1037 = vsel %vm536, %v275, inf
    %v1038 = vmin.f32 %v274, %v1037
    %1039 = vmin.xlane.f32.xlu0 %v1038
    %v1040 = vpop.xlane.xlu0 %1039
    %v1041 = vsel %vm536, %v277, inf
    %v1042 = vmin.f32 %v276, %v1041
    %1043 = vmin.xlane.f32.xlu0 %v1042
    %v1044 = vpop.xlane.xlu0 %1043
    %v1045 = vsel %vm536, %v279, inf
    %v1046 = vmin.f32 %v278, %v1045
    %1047 = vmin.xlane.f32.xlu0 %v1046
    %v1048 = vpop.xlane.xlu0 %1047
    %v1049 = vmax.f32 %v796, 0.0
    %v1050 = vmax.f32 %v800, 0.0
    %v1051 = vmax.f32 %v804, 0.0
    %v1052 = vmax.f32 %v808, 0.0
    %v1053 = vmax.f32 %v812, 0.0
    %v1054 = vmax.f32 %v816, 0.0
    %v1055 = vmax.f32 %v820, 0.0
    %v1056 = vmax.f32 %v824, 0.0
    %v1057 = vmax.f32 %v828, 0.0
    %v1058 = vmax.f32 %v832, 0.0
    %v1059 = vmax.f32 %v836, 0.0
    %v1060 = vmax.f32 %v840, 0.0
    %v1061 = vmax.f32 %v844, 0.0
    %v1062 = vmax.f32 %v848, 0.0
    %v1063 = vmax.f32 %v852, 0.0
    %v1064 = vmax.f32 %v856, 0.0
    %v1065 = vmax.f32 %v860, 0.0
    %v1066 = vmax.f32 %v864, 0.0
    %v1067 = vmax.f32 %v868, 0.0
    %v1068 = vmax.f32 %v872, 0.0
    %v1069 = vmax.f32 %v876, 0.0
    %v1070 = vmax.f32 %v880, 0.0
    %v1071 = vmax.f32 %v884, 0.0
    %v1072 = vmax.f32 %v888, 0.0
    %v1073 = vmax.f32 %v892, 0.0
    %v1074 = vmax.f32 %v896, 0.0
    %v1075 = vmax.f32 %v900, 0.0
    %v1076 = vmax.f32 %v904, 0.0
    %v1077 = vmax.f32 %v908, 0.0
    %v1078 = vmax.f32 %v912, 0.0
    %v1079 = vmax.f32 %v916, 0.0
    %v1080 = vmax.f32 %v920, 0.0
    %v1081 = vmax.f32 %v924, 0.0
    %v1082 = vmax.f32 %v928, 0.0
    %v1083 = vmax.f32 %v932, 0.0
    %v1084 = vmax.f32 %v936, 0.0
    %v1085 = vmax.f32 %v940, 0.0
    %v1086 = vmax.f32 %v944, 0.0
    %v1087 = vmax.f32 %v948, 0.0
    %v1088 = vmax.f32 %v952, 0.0
    %v1089 = vmax.f32 %v956, 0.0
    %v1090 = vmax.f32 %v960, 0.0
    %v1091 = vmax.f32 %v964, 0.0
    %v1092 = vmax.f32 %v968, 0.0
    %v1093 = vmax.f32 %v972, 0.0
    %v1094 = vmax.f32 %v976, 0.0
    %v1095 = vmax.f32 %v980, 0.0
    %v1096 = vmax.f32 %v984, 0.0
    %v1097 = vmax.f32 %v988, 0.0
    %v1098 = vmax.f32 %v992, 0.0
    %v1099 = vmax.f32 %v996, 0.0
    %v1100 = vmax.f32 %v1000, 0.0
    %v1101 = vmax.f32 %v1004, 0.0
    %v1102 = vmax.f32 %v1008, 0.0
    %v1103 = vmax.f32 %v1012, 0.0
    %v1104 = vmax.f32 %v1016, 0.0
    %v1105 = vmax.f32 %v1020, 0.0
    %v1106 = vmax.f32 %v1024, 0.0
    %v1107 = vmax.f32 %v1028, 0.0
    %v1108 = vmax.f32 %v1032, 0.0
    %v1109 = vmax.f32 %v1036, 0.0
    %v1110 = vmax.f32 %v1040, 0.0
    %v1111 = vmax.f32 %v1044, 0.0
    %v1112 = vmax.f32 %v1048, 0.0
    %vm1113 = vcmp.lt.f32.partialorder %v540, inf
    %vm1114 = vcmp.lt.f32.partialorder %v544, inf
    %vm1115 = vcmp.lt.f32.partialorder %v548, inf
    %vm1116 = vcmp.lt.f32.partialorder %v552, inf
    %vm1117 = vcmp.lt.f32.partialorder %v556, inf
    %vm1118 = vcmp.lt.f32.partialorder %v560, inf
    %vm1119 = vcmp.lt.f32.partialorder %v564, inf
    %vm1120 = vcmp.lt.f32.partialorder %v568, inf
    %vm1121 = vcmp.lt.f32.partialorder %v572, inf
    %vm1122 = vcmp.lt.f32.partialorder %v576, inf
    %vm1123 = vcmp.lt.f32.partialorder %v580, inf
    %vm1124 = vcmp.lt.f32.partialorder %v584, inf
    %vm1125 = vcmp.lt.f32.partialorder %v588, inf
    %vm1126 = vcmp.lt.f32.partialorder %v592, inf
    %vm1127 = vcmp.lt.f32.partialorder %v596, inf
    %vm1128 = vcmp.lt.f32.partialorder %v600, inf
    %vm1129 = vcmp.lt.f32.partialorder %v604, inf
    %vm1130 = vcmp.lt.f32.partialorder %v608, inf
    %vm1131 = vcmp.lt.f32.partialorder %v612, inf
    %vm1132 = vcmp.lt.f32.partialorder %v616, inf
    %vm1133 = vcmp.lt.f32.partialorder %v620, inf
    %vm1134 = vcmp.lt.f32.partialorder %v624, inf
    %vm1135 = vcmp.lt.f32.partialorder %v628, inf
    %vm1136 = vcmp.lt.f32.partialorder %v632, inf
    %vm1137 = vcmp.lt.f32.partialorder %v636, inf
    %vm1138 = vcmp.lt.f32.partialorder %v640, inf
    %vm1139 = vcmp.lt.f32.partialorder %v644, inf
    %vm1140 = vcmp.lt.f32.partialorder %v648, inf
    %vm1141 = vcmp.lt.f32.partialorder %v652, inf
    %vm1142 = vcmp.lt.f32.partialorder %v656, inf
    %vm1143 = vcmp.lt.f32.partialorder %v660, inf
    %vm1144 = vcmp.lt.f32.partialorder %v664, inf
    %vm1145 = vcmp.lt.f32.partialorder %v668, inf
    %vm1146 = vcmp.lt.f32.partialorder %v672, inf
    %vm1147 = vcmp.lt.f32.partialorder %v676, inf
    %vm1148 = vcmp.lt.f32.partialorder %v680, inf
    %vm1149 = vcmp.lt.f32.partialorder %v684, inf
    %vm1150 = vcmp.lt.f32.partialorder %v688, inf
    %vm1151 = vcmp.lt.f32.partialorder %v692, inf
    %vm1152 = vcmp.lt.f32.partialorder %v696, inf
    %vm1153 = vcmp.lt.f32.partialorder %v700, inf
    %vm1154 = vcmp.lt.f32.partialorder %v704, inf
    %vm1155 = vcmp.lt.f32.partialorder %v708, inf
    %vm1156 = vcmp.lt.f32.partialorder %v712, inf
    %vm1157 = vcmp.lt.f32.partialorder %v716, inf
    %vm1158 = vcmp.lt.f32.partialorder %v720, inf
    %vm1159 = vcmp.lt.f32.partialorder %v724, inf
    %vm1160 = vcmp.lt.f32.partialorder %v728, inf
    %vm1161 = vcmp.lt.f32.partialorder %v732, inf
    %vm1162 = vcmp.lt.f32.partialorder %v736, inf
    %vm1163 = vcmp.lt.f32.partialorder %v740, inf
    %vm1164 = vcmp.lt.f32.partialorder %v744, inf
    %vm1165 = vcmp.lt.f32.partialorder %v748, inf
    %vm1166 = vcmp.lt.f32.partialorder %v752, inf
    %vm1167 = vcmp.lt.f32.partialorder %v756, inf
    %vm1168 = vcmp.lt.f32.partialorder %v760, inf
    %vm1169 = vcmp.lt.f32.partialorder %v764, inf
    %vm1170 = vcmp.lt.f32.partialorder %v768, inf
    %vm1171 = vcmp.lt.f32.partialorder %v772, inf
    %vm1172 = vcmp.lt.f32.partialorder %v776, inf
    %vm1173 = vcmp.lt.f32.partialorder %v780, inf
    %vm1174 = vcmp.lt.f32.partialorder %v784, inf
    %vm1175 = vcmp.lt.f32.partialorder %v788, inf
    %vm1176 = vcmp.lt.f32.partialorder %v792, inf
    %v1177 = vsel %vm1113, %v540, %v1049
    %v1178 = vsel %vm1114, %v544, %v1050
    %v1179 = vsel %vm1115, %v548, %v1051
    %v1180 = vsel %vm1116, %v552, %v1052
    %v1181 = vsel %vm1117, %v556, %v1053
    %v1182 = vsel %vm1118, %v560, %v1054
    %v1183 = vsel %vm1119, %v564, %v1055
    %v1184 = vsel %vm1120, %v568, %v1056
    %v1185 = vsel %vm1121, %v572, %v1057
    %v1186 = vsel %vm1122, %v576, %v1058
    %v1187 = vsel %vm1123, %v580, %v1059
    %v1188 = vsel %vm1124, %v584, %v1060
    %v1189 = vsel %vm1125, %v588, %v1061
    %v1190 = vsel %vm1126, %v592, %v1062
    %v1191 = vsel %vm1127, %v596, %v1063
    %v1192 = vsel %vm1128, %v600, %v1064
    %v1193 = vsel %vm1129, %v604, %v1065
    %v1194 = vsel %vm1130, %v608, %v1066
    %v1195 = vsel %vm1131, %v612, %v1067
    %v1196 = vsel %vm1132, %v616, %v1068
    %v1197 = vsel %vm1133, %v620, %v1069
    %v1198 = vsel %vm1134, %v624, %v1070
    %v1199 = vsel %vm1135, %v628, %v1071
    %v1200 = vsel %vm1136, %v632, %v1072
    %v1201 = vsel %vm1137, %v636, %v1073
    %v1202 = vsel %vm1138, %v640, %v1074
    %v1203 = vsel %vm1139, %v644, %v1075
    %v1204 = vsel %vm1140, %v648, %v1076
    %v1205 = vsel %vm1141, %v652, %v1077
    %v1206 = vsel %vm1142, %v656, %v1078
    %v1207 = vsel %vm1143, %v660, %v1079
    %v1208 = vsel %vm1144, %v664, %v1080
    %v1209 = vsel %vm1145, %v668, %v1081
    %v1210 = vsel %vm1146, %v672, %v1082
    %v1211 = vsel %vm1147, %v676, %v1083
    %v1212 = vsel %vm1148, %v680, %v1084
    %v1213 = vsel %vm1149, %v684, %v1085
    %v1214 = vsel %vm1150, %v688, %v1086
    %v1215 = vsel %vm1151, %v692, %v1087
    %v1216 = vsel %vm1152, %v696, %v1088
    %v1217 = vsel %vm1153, %v700, %v1089
    %v1218 = vsel %vm1154, %v704, %v1090
    %v1219 = vsel %vm1155, %v708, %v1091
    %v1220 = vsel %vm1156, %v712, %v1092
    %v1221 = vsel %vm1157, %v716, %v1093
    %v1222 = vsel %vm1158, %v720, %v1094
    %v1223 = vsel %vm1159, %v724, %v1095
    %v1224 = vsel %vm1160, %v728, %v1096
    %v1225 = vsel %vm1161, %v732, %v1097
    %v1226 = vsel %vm1162, %v736, %v1098
    %v1227 = vsel %vm1163, %v740, %v1099
    %v1228 = vsel %vm1164, %v744, %v1100
    %v1229 = vsel %vm1165, %v748, %v1101
    %v1230 = vsel %vm1166, %v752, %v1102
    %v1231 = vsel %vm1167, %v756, %v1103
    %v1232 = vsel %vm1168, %v760, %v1104
    %v1233 = vsel %vm1169, %v764, %v1105
    %v1234 = vsel %vm1170, %v768, %v1106
    %v1235 = vsel %vm1171, %v772, %v1107
    %v1236 = vsel %vm1172, %v776, %v1108
    %v1237 = vsel %vm1173, %v780, %v1109
    %v1238 = vsel %vm1174, %v784, %v1110
    %v1239 = vsel %vm1175, %v788, %v1111
    %v1240 = vsel %vm1176, %v792, %v1112
    %v1241 = vlog2.pop %v1177
    %v1242 = vmul.f32 %v1241, 0.6931472
    %v1243 = vlog2.pop %v1178
    %v1244 = vmul.f32 %v1243, 0.6931472
    %v1245 = vlog2.pop %v1179
    %v1246 = vmul.f32 %v1245, 0.6931472
    %v1247 = vlog2.pop %v1180
    %v1248 = vmul.f32 %v1247, 0.6931472
    %v1249 = vlog2.pop %v1181
    %v1250 = vmul.f32 %v1249, 0.6931472
    %v1251 = vlog2.pop %v1182
    %v1252 = vmul.f32 %v1251, 0.6931472
    %v1253 = vlog2.pop %v1183
    %v1254 = vmul.f32 %v1253, 0.6931472
    %v1255 = vlog2.pop %v1184
    %v1256 = vmul.f32 %v1255, 0.6931472
    %v1257 = vlog2.pop %v1185
    %v1258 = vmul.f32 %v1257, 0.6931472
    %v1259 = vlog2.pop %v1186
    %v1260 = vmul.f32 %v1259, 0.6931472
    %v1261 = vlog2.pop %v1187
    %v1262 = vmul.f32 %v1261, 0.6931472
    %v1263 = vlog2.pop %v1188
    %v1264 = vmul.f32 %v1263, 0.6931472
    %v1265 = vlog2.pop %v1189
    %v1266 = vmul.f32 %v1265, 0.6931472
    %v1267 = vlog2.pop %v1190
    %v1268 = vmul.f32 %v1267, 0.6931472
    %v1269 = vlog2.pop %v1191
    %v1270 = vmul.f32 %v1269, 0.6931472
    %v1271 = vlog2.pop %v1192
    %v1272 = vmul.f32 %v1271, 0.6931472
    %v1273 = vlog2.pop %v1193
    %v1274 = vmul.f32 %v1273, 0.6931472
    %v1275 = vlog2.pop %v1194
    %v1276 = vmul.f32 %v1275, 0.6931472
    %v1277 = vlog2.pop %v1195
    %v1278 = vmul.f32 %v1277, 0.6931472
    %v1279 = vlog2.pop %v1196
    %v1280 = vmul.f32 %v1279, 0.6931472
    %v1281 = vlog2.pop %v1197
    %v1282 = vmul.f32 %v1281, 0.6931472
    %v1283 = vlog2.pop %v1198
    %v1284 = vmul.f32 %v1283, 0.6931472
    %v1285 = vlog2.pop %v1199
    %v1286 = vmul.f32 %v1285, 0.6931472
    %v1287 = vlog2.pop %v1200
    %v1288 = vmul.f32 %v1287, 0.6931472
    %v1289 = vlog2.pop %v1201
    %v1290 = vmul.f32 %v1289, 0.6931472
    %v1291 = vlog2.pop %v1202
    %v1292 = vmul.f32 %v1291, 0.6931472
    %v1293 = vlog2.pop %v1203
    %v1294 = vmul.f32 %v1293, 0.6931472
    %v1295 = vlog2.pop %v1204
    %v1296 = vmul.f32 %v1295, 0.6931472
    %v1297 = vlog2.pop %v1205
    %v1298 = vmul.f32 %v1297, 0.6931472
    %v1299 = vlog2.pop %v1206
    %v1300 = vmul.f32 %v1299, 0.6931472
    %v1301 = vlog2.pop %v1207
    %v1302 = vmul.f32 %v1301, 0.6931472
    %v1303 = vlog2.pop %v1208
    %v1304 = vmul.f32 %v1303, 0.6931472
    %v1305 = vlog2.pop %v1209
    %v1306 = vmul.f32 %v1305, 0.6931472
    %v1307 = vlog2.pop %v1210
    %v1308 = vmul.f32 %v1307, 0.6931472
    %v1309 = vlog2.pop %v1211
    %v1310 = vmul.f32 %v1309, 0.6931472
    %v1311 = vlog2.pop %v1212
    %v1312 = vmul.f32 %v1311, 0.6931472
    %v1313 = vlog2.pop %v1213
    %v1314 = vmul.f32 %v1313, 0.6931472
    %v1315 = vlog2.pop %v1214
    %v1316 = vmul.f32 %v1315, 0.6931472
    %v1317 = vlog2.pop %v1215
    %v1318 = vmul.f32 %v1317, 0.6931472
    %v1319 = vlog2.pop %v1216
    %v1320 = vmul.f32 %v1319, 0.6931472
    %v1321 = vlog2.pop %v1217
    %v1322 = vmul.f32 %v1321, 0.6931472
    %v1323 = vlog2.pop %v1218
    %v1324 = vmul.f32 %v1323, 0.6931472
    %v1325 = vlog2.pop %v1219
    %v1326 = vmul.f32 %v1325, 0.6931472
    %v1327 = vlog2.pop %v1220
    %v1328 = vmul.f32 %v1327, 0.6931472
    %v1329 = vlog2.pop %v1221
    %v1330 = vmul.f32 %v1329, 0.6931472
    %v1331 = vlog2.pop %v1222
    %v1332 = vmul.f32 %v1331, 0.6931472
    %v1333 = vlog2.pop %v1223
    %v1334 = vmul.f32 %v1333, 0.6931472
    %v1335 = vlog2.pop %v1224
    %v1336 = vmul.f32 %v1335, 0.6931472
    %v1337 = vlog2.pop %v1225
    %v1338 = vmul.f32 %v1337, 0.6931472
    %v1339 = vlog2.pop %v1226
    %v1340 = vmul.f32 %v1339, 0.6931472
    %v1341 = vlog2.pop %v1227
    %v1342 = vmul.f32 %v1341, 0.6931472
    %v1343 = vlog2.pop %v1228
    %v1344 = vmul.f32 %v1343, 0.6931472
    %v1345 = vlog2.pop %v1229
    %v1346 = vmul.f32 %v1345, 0.6931472
    %v1347 = vlog2.pop %v1230
    %v1348 = vmul.f32 %v1347, 0.6931472
    %v1349 = vlog2.pop %v1231
    %v1350 = vmul.f32 %v1349, 0.6931472
    %v1351 = vlog2.pop %v1232
    %v1352 = vmul.f32 %v1351, 0.6931472
    %v1353 = vlog2.pop %v1233
    %v1354 = vmul.f32 %v1353, 0.6931472
    %v1355 = vlog2.pop %v1234
    %v1356 = vmul.f32 %v1355, 0.6931472
    %v1357 = vlog2.pop %v1235
    %v1358 = vmul.f32 %v1357, 0.6931472
    %v1359 = vlog2.pop %v1236
    %v1360 = vmul.f32 %v1359, 0.6931472
    %v1361 = vlog2.pop %v1237
    %v1362 = vmul.f32 %v1361, 0.6931472
    %v1363 = vlog2.pop %v1238
    %v1364 = vmul.f32 %v1363, 0.6931472
    %v1365 = vlog2.pop %v1239
    %v1366 = vmul.f32 %v1365, 0.6931472
    %v1367 = vlog2.pop %v1240
    %v1368 = vmul.f32 %v1367, 0.6931472
    %v1369 = vrcp.pop %v1242
    %v1370 = vmul.f32 %v1242, %v1369
    %v1371 = vsub.f32 1.0, %v1370
    %v1372 = vmul.f32 %v1369, %v1371
    %v1373 = vadd.f32 %v1369, %v1372
    %vm1374 = vweird.f32 %v1242
    %vm1375 = vweird.f32 %v1369
    %vm1376 = vmor %vm1374, %vm1375
    %v1377 = vsel %vm1376, %v1369, %v1373
    %v1378 = vand.u32 2147483647, %v1242
    %vm1379 = vcmp.eq.f32.partialorder %v1378, 8.507059e+37
    %v1380 = vand.u32 %v1242, 2147483648
    %v1381 = vor.u32 1.1754944e-38, %v1380
    %v1382 = vsel %vm1379, %v1381, %v1377
    %v1383 = vmul.f32 -1.0, %v1382
    %v1384 = vrcp.pop %v1244
    %v1385 = vmul.f32 %v1244, %v1384
    %v1386 = vsub.f32 1.0, %v1385
    %v1387 = vmul.f32 %v1384, %v1386
    %v1388 = vadd.f32 %v1384, %v1387
    %vm1389 = vweird.f32 %v1244
    %vm1390 = vweird.f32 %v1384
    %vm1391 = vmor %vm1389, %vm1390
    %v1392 = vsel %vm1391, %v1384, %v1388
    %v1393 = vand.u32 2147483647, %v1244
    %vm1394 = vcmp.eq.f32.partialorder %v1393, 8.507059e+37
    %v1395 = vand.u32 %v1244, 2147483648
    %v1396 = vor.u32 1.1754944e-38, %v1395
    %v1397 = vsel %vm1394, %v1396, %v1392
    %v1398 = vmul.f32 -1.0, %v1397
    %v1399 = vrcp.pop %v1246
    %v1400 = vmul.f32 %v1246, %v1399
    %v1401 = vsub.f32 1.0, %v1400
    %v1402 = vmul.f32 %v1399, %v1401
    %v1403 = vadd.f32 %v1399, %v1402
    %vm1404 = vweird.f32 %v1246
    %vm1405 = vweird.f32 %v1399
    %vm1406 = vmor %vm1404, %vm1405
    %v1407 = vsel %vm1406, %v1399, %v1403
    %v1408 = vand.u32 2147483647, %v1246
    %vm1409 = vcmp.eq.f32.partialorder %v1408, 8.507059e+37
    %v1410 = vand.u32 %v1246, 2147483648
    %v1411 = vor.u32 1.1754944e-38, %v1410
    %v1412 = vsel %vm1409, %v1411, %v1407
    %v1413 = vmul.f32 -1.0, %v1412
    %v1414 = vrcp.pop %v1248
    %v1415 = vmul.f32 %v1248, %v1414
    %v1416 = vsub.f32 1.0, %v1415
    %v1417 = vmul.f32 %v1414, %v1416
    %v1418 = vadd.f32 %v1414, %v1417
    %vm1419 = vweird.f32 %v1248
    %vm1420 = vweird.f32 %v1414
    %vm1421 = vmor %vm1419, %vm1420
    %v1422 = vsel %vm1421, %v1414, %v1418
    %v1423 = vand.u32 2147483647, %v1248
    %vm1424 = vcmp.eq.f32.partialorder %v1423, 8.507059e+37
    %v1425 = vand.u32 %v1248, 2147483648
    %v1426 = vor.u32 1.1754944e-38, %v1425
    %v1427 = vsel %vm1424, %v1426, %v1422
    %v1428 = vmul.f32 -1.0, %v1427
    %v1429 = vrcp.pop %v1250
    %v1430 = vmul.f32 %v1250, %v1429
    %v1431 = vsub.f32 1.0, %v1430
    %v1432 = vmul.f32 %v1429, %v1431
    %v1433 = vadd.f32 %v1429, %v1432
    %vm1434 = vweird.f32 %v1250
    %vm1435 = vweird.f32 %v1429
    %vm1436 = vmor %vm1434, %vm1435
    %v1437 = vsel %vm1436, %v1429, %v1433
    %v1438 = vand.u32 2147483647, %v1250
    %vm1439 = vcmp.eq.f32.partialorder %v1438, 8.507059e+37
    %v1440 = vand.u32 %v1250, 2147483648
    %v1441 = vor.u32 1.1754944e-38, %v1440
    %v1442 = vsel %vm1439, %v1441, %v1437
    %v1443 = vmul.f32 -1.0, %v1442
    %v1444 = vrcp.pop %v1252
    %v1445 = vmul.f32 %v1252, %v1444
    %v1446 = vsub.f32 1.0, %v1445
    %v1447 = vmul.f32 %v1444, %v1446
    %v1448 = vadd.f32 %v1444, %v1447
    %vm1449 = vweird.f32 %v1252
    %vm1450 = vweird.f32 %v1444
    %vm1451 = vmor %vm1449, %vm1450
    %v1452 = vsel %vm1451, %v1444, %v1448
    %v1453 = vand.u32 2147483647, %v1252
    %vm1454 = vcmp.eq.f32.partialorder %v1453, 8.507059e+37
    %v1455 = vand.u32 %v1252, 2147483648
    %v1456 = vor.u32 1.1754944e-38, %v1455
    %v1457 = vsel %vm1454, %v1456, %v1452
    %v1458 = vmul.f32 -1.0, %v1457
    %v1459 = vrcp.pop %v1254
    %v1460 = vmul.f32 %v1254, %v1459
    %v1461 = vsub.f32 1.0, %v1460
    %v1462 = vmul.f32 %v1459, %v1461
    %v1463 = vadd.f32 %v1459, %v1462
    %vm1464 = vweird.f32 %v1254
    %vm1465 = vweird.f32 %v1459
    %vm1466 = vmor %vm1464, %vm1465
    %v1467 = vsel %vm1466, %v1459, %v1463
    %v1468 = vand.u32 2147483647, %v1254
    %vm1469 = vcmp.eq.f32.partialorder %v1468, 8.507059e+37
    %v1470 = vand.u32 %v1254, 2147483648
    %v1471 = vor.u32 1.1754944e-38, %v1470
    %v1472 = vsel %vm1469, %v1471, %v1467
    %v1473 = vmul.f32 -1.0, %v1472
    %v1474 = vrcp.pop %v1256
    %v1475 = vmul.f32 %v1256, %v1474
    %v1476 = vsub.f32 1.0, %v1475
    %v1477 = vmul.f32 %v1474, %v1476
    %v1478 = vadd.f32 %v1474, %v1477
    %vm1479 = vweird.f32 %v1256
    %vm1480 = vweird.f32 %v1474
    %vm1481 = vmor %vm1479, %vm1480
    %v1482 = vsel %vm1481, %v1474, %v1478
    %v1483 = vand.u32 2147483647, %v1256
    %vm1484 = vcmp.eq.f32.partialorder %v1483, 8.507059e+37
    %v1485 = vand.u32 %v1256, 2147483648
    %v1486 = vor.u32 1.1754944e-38, %v1485
    %v1487 = vsel %vm1484, %v1486, %v1482
    %v1488 = vmul.f32 -1.0, %v1487
    %v1489 = vrcp.pop %v1258
    %v1490 = vmul.f32 %v1258, %v1489
    %v1491 = vsub.f32 1.0, %v1490
    %v1492 = vmul.f32 %v1489, %v1491
    %v1493 = vadd.f32 %v1489, %v1492
    %vm1494 = vweird.f32 %v1258
    %vm1495 = vweird.f32 %v1489
    %vm1496 = vmor %vm1494, %vm1495
    %v1497 = vsel %vm1496, %v1489, %v1493
    %v1498 = vand.u32 2147483647, %v1258
    %vm1499 = vcmp.eq.f32.partialorder %v1498, 8.507059e+37
    %v1500 = vand.u32 %v1258, 2147483648
    %v1501 = vor.u32 1.1754944e-38, %v1500
    %v1502 = vsel %vm1499, %v1501, %v1497
    %v1503 = vmul.f32 -1.0, %v1502
    %v1504 = vrcp.pop %v1260
    %v1505 = vmul.f32 %v1260, %v1504
    %v1506 = vsub.f32 1.0, %v1505
    %v1507 = vmul.f32 %v1504, %v1506
    %v1508 = vadd.f32 %v1504, %v1507
    %vm1509 = vweird.f32 %v1260
    %vm1510 = vweird.f32 %v1504
    %vm1511 = vmor %vm1509, %vm1510
    %v1512 = vsel %vm1511, %v1504, %v1508
    %v1513 = vand.u32 2147483647, %v1260
    %vm1514 = vcmp.eq.f32.partialorder %v1513, 8.507059e+37
    %v1515 = vand.u32 %v1260, 2147483648
    %v1516 = vor.u32 1.1754944e-38, %v1515
    %v1517 = vsel %vm1514, %v1516, %v1512
    %v1518 = vmul.f32 -1.0, %v1517
    %v1519 = vrcp.pop %v1262
    %v1520 = vmul.f32 %v1262, %v1519
    %v1521 = vsub.f32 1.0, %v1520
    %v1522 = vmul.f32 %v1519, %v1521
    %v1523 = vadd.f32 %v1519, %v1522
    %vm1524 = vweird.f32 %v1262
    %vm1525 = vweird.f32 %v1519
    %vm1526 = vmor %vm1524, %vm1525
    %v1527 = vsel %vm1526, %v1519, %v1523
    %v1528 = vand.u32 2147483647, %v1262
    %vm1529 = vcmp.eq.f32.partialorder %v1528, 8.507059e+37
    %v1530 = vand.u32 %v1262, 2147483648
    %v1531 = vor.u32 1.1754944e-38, %v1530
    %v1532 = vsel %vm1529, %v1531, %v1527
    %v1533 = vmul.f32 -1.0, %v1532
    %v1534 = vrcp.pop %v1264
    %v1535 = vmul.f32 %v1264, %v1534
    %v1536 = vsub.f32 1.0, %v1535
    %v1537 = vmul.f32 %v1534, %v1536
    %v1538 = vadd.f32 %v1534, %v1537
    %vm1539 = vweird.f32 %v1264
    %vm1540 = vweird.f32 %v1534
    %vm1541 = vmor %vm1539, %vm1540
    %v1542 = vsel %vm1541, %v1534, %v1538
    %v1543 = vand.u32 2147483647, %v1264
    %vm1544 = vcmp.eq.f32.partialorder %v1543, 8.507059e+37
    %v1545 = vand.u32 %v1264, 2147483648
    %v1546 = vor.u32 1.1754944e-38, %v1545
    %v1547 = vsel %vm1544, %v1546, %v1542
    %v1548 = vmul.f32 -1.0, %v1547
    %v1549 = vrcp.pop %v1266
    %v1550 = vmul.f32 %v1266, %v1549
    %v1551 = vsub.f32 1.0, %v1550
    %v1552 = vmul.f32 %v1549, %v1551
    %v1553 = vadd.f32 %v1549, %v1552
    %vm1554 = vweird.f32 %v1266
    %vm1555 = vweird.f32 %v1549
    %vm1556 = vmor %vm1554, %vm1555
    %v1557 = vsel %vm1556, %v1549, %v1553
    %v1558 = vand.u32 2147483647, %v1266
    %vm1559 = vcmp.eq.f32.partialorder %v1558, 8.507059e+37
    %v1560 = vand.u32 %v1266, 2147483648
    %v1561 = vor.u32 1.1754944e-38, %v1560
    %v1562 = vsel %vm1559, %v1561, %v1557
    %v1563 = vmul.f32 -1.0, %v1562
    %v1564 = vrcp.pop %v1268
    %v1565 = vmul.f32 %v1268, %v1564
    %v1566 = vsub.f32 1.0, %v1565
    %v1567 = vmul.f32 %v1564, %v1566
    %v1568 = vadd.f32 %v1564, %v1567
    %vm1569 = vweird.f32 %v1268
    %vm1570 = vweird.f32 %v1564
    %vm1571 = vmor %vm1569, %vm1570
    %v1572 = vsel %vm1571, %v1564, %v1568
    %v1573 = vand.u32 2147483647, %v1268
    %vm1574 = vcmp.eq.f32.partialorder %v1573, 8.507059e+37
    %v1575 = vand.u32 %v1268, 2147483648
    %v1576 = vor.u32 1.1754944e-38, %v1575
    %v1577 = vsel %vm1574, %v1576, %v1572
    %v1578 = vmul.f32 -1.0, %v1577
    %v1579 = vrcp.pop %v1270
    %v1580 = vmul.f32 %v1270, %v1579
    %v1581 = vsub.f32 1.0, %v1580
    %v1582 = vmul.f32 %v1579, %v1581
    %v1583 = vadd.f32 %v1579, %v1582
    %vm1584 = vweird.f32 %v1270
    %vm1585 = vweird.f32 %v1579
    %vm1586 = vmor %vm1584, %vm1585
    %v1587 = vsel %vm1586, %v1579, %v1583
    %v1588 = vand.u32 2147483647, %v1270
    %vm1589 = vcmp.eq.f32.partialorder %v1588, 8.507059e+37
    %v1590 = vand.u32 %v1270, 2147483648
    %v1591 = vor.u32 1.1754944e-38, %v1590
    %v1592 = vsel %vm1589, %v1591, %v1587
    %v1593 = vmul.f32 -1.0, %v1592
    %v1594 = vrcp.pop %v1272
    %v1595 = vmul.f32 %v1272, %v1594
    %v1596 = vsub.f32 1.0, %v1595
    %v1597 = vmul.f32 %v1594, %v1596
    %v1598 = vadd.f32 %v1594, %v1597
    %vm1599 = vweird.f32 %v1272
    %vm1600 = vweird.f32 %v1594
    %vm1601 = vmor %vm1599, %vm1600
    %v1602 = vsel %vm1601, %v1594, %v1598
    %v1603 = vand.u32 2147483647, %v1272
    %vm1604 = vcmp.eq.f32.partialorder %v1603, 8.507059e+37
    %v1605 = vand.u32 %v1272, 2147483648
    %v1606 = vor.u32 1.1754944e-38, %v1605
    %v1607 = vsel %vm1604, %v1606, %v1602
    %v1608 = vmul.f32 -1.0, %v1607
    %v1609 = vrcp.pop %v1274
    %v1610 = vmul.f32 %v1274, %v1609
    %v1611 = vsub.f32 1.0, %v1610
    %v1612 = vmul.f32 %v1609, %v1611
    %v1613 = vadd.f32 %v1609, %v1612
    %vm1614 = vweird.f32 %v1274
    %vm1615 = vweird.f32 %v1609
    %vm1616 = vmor %vm1614, %vm1615
    %v1617 = vsel %vm1616, %v1609, %v1613
    %v1618 = vand.u32 2147483647, %v1274
    %vm1619 = vcmp.eq.f32.partialorder %v1618, 8.507059e+37
    %v1620 = vand.u32 %v1274, 2147483648
    %v1621 = vor.u32 1.1754944e-38, %v1620
    %v1622 = vsel %vm1619, %v1621, %v1617
    %v1623 = vmul.f32 -1.0, %v1622
    %v1624 = vrcp.pop %v1276
    %v1625 = vmul.f32 %v1276, %v1624
    %v1626 = vsub.f32 1.0, %v1625
    %v1627 = vmul.f32 %v1624, %v1626
    %v1628 = vadd.f32 %v1624, %v1627
    %vm1629 = vweird.f32 %v1276
    %vm1630 = vweird.f32 %v1624
    %vm1631 = vmor %vm1629, %vm1630
    %v1632 = vsel %vm1631, %v1624, %v1628
    %v1633 = vand.u32 2147483647, %v1276
    %vm1634 = vcmp.eq.f32.partialorder %v1633, 8.507059e+37
    %v1635 = vand.u32 %v1276, 2147483648
    %v1636 = vor.u32 1.1754944e-38, %v1635
    %v1637 = vsel %vm1634, %v1636, %v1632
    %v1638 = vmul.f32 -1.0, %v1637
    %v1639 = vrcp.pop %v1278
    %v1640 = vmul.f32 %v1278, %v1639
    %v1641 = vsub.f32 1.0, %v1640
    %v1642 = vmul.f32 %v1639, %v1641
    %v1643 = vadd.f32 %v1639, %v1642
    %vm1644 = vweird.f32 %v1278
    %vm1645 = vweird.f32 %v1639
    %vm1646 = vmor %vm1644, %vm1645
    %v1647 = vsel %vm1646, %v1639, %v1643
    %v1648 = vand.u32 2147483647, %v1278
    %vm1649 = vcmp.eq.f32.partialorder %v1648, 8.507059e+37
    %v1650 = vand.u32 %v1278, 2147483648
    %v1651 = vor.u32 1.1754944e-38, %v1650
    %v1652 = vsel %vm1649, %v1651, %v1647
    %v1653 = vmul.f32 -1.0, %v1652
    %v1654 = vrcp.pop %v1280
    %v1655 = vmul.f32 %v1280, %v1654
    %v1656 = vsub.f32 1.0, %v1655
    %v1657 = vmul.f32 %v1654, %v1656
    %v1658 = vadd.f32 %v1654, %v1657
    %vm1659 = vweird.f32 %v1280
    %vm1660 = vweird.f32 %v1654
    %vm1661 = vmor %vm1659, %vm1660
    %v1662 = vsel %vm1661, %v1654, %v1658
    %v1663 = vand.u32 2147483647, %v1280
    %vm1664 = vcmp.eq.f32.partialorder %v1663, 8.507059e+37
    %v1665 = vand.u32 %v1280, 2147483648
    %v1666 = vor.u32 1.1754944e-38, %v1665
    %v1667 = vsel %vm1664, %v1666, %v1662
    %v1668 = vmul.f32 -1.0, %v1667
    %v1669 = vrcp.pop %v1282
    %v1670 = vmul.f32 %v1282, %v1669
    %v1671 = vsub.f32 1.0, %v1670
    %v1672 = vmul.f32 %v1669, %v1671
    %v1673 = vadd.f32 %v1669, %v1672
    %vm1674 = vweird.f32 %v1282
    %vm1675 = vweird.f32 %v1669
    %vm1676 = vmor %vm1674, %vm1675
    %v1677 = vsel %vm1676, %v1669, %v1673
    %v1678 = vand.u32 2147483647, %v1282
    %vm1679 = vcmp.eq.f32.partialorder %v1678, 8.507059e+37
    %v1680 = vand.u32 %v1282, 2147483648
    %v1681 = vor.u32 1.1754944e-38, %v1680
    %v1682 = vsel %vm1679, %v1681, %v1677
    %v1683 = vmul.f32 -1.0, %v1682
    %v1684 = vrcp.pop %v1284
    %v1685 = vmul.f32 %v1284, %v1684
    %v1686 = vsub.f32 1.0, %v1685
    %v1687 = vmul.f32 %v1684, %v1686
    %v1688 = vadd.f32 %v1684, %v1687
    %vm1689 = vweird.f32 %v1284
    %vm1690 = vweird.f32 %v1684
    %vm1691 = vmor %vm1689, %vm1690
    %v1692 = vsel %vm1691, %v1684, %v1688
    %v1693 = vand.u32 2147483647, %v1284
    %vm1694 = vcmp.eq.f32.partialorder %v1693, 8.507059e+37
    %v1695 = vand.u32 %v1284, 2147483648
    %v1696 = vor.u32 1.1754944e-38, %v1695
    %v1697 = vsel %vm1694, %v1696, %v1692
    %v1698 = vmul.f32 -1.0, %v1697
    %v1699 = vrcp.pop %v1286
    %v1700 = vmul.f32 %v1286, %v1699
    %v1701 = vsub.f32 1.0, %v1700
    %v1702 = vmul.f32 %v1699, %v1701
    %v1703 = vadd.f32 %v1699, %v1702
    %vm1704 = vweird.f32 %v1286
    %vm1705 = vweird.f32 %v1699
    %vm1706 = vmor %vm1704, %vm1705
    %v1707 = vsel %vm1706, %v1699, %v1703
    %v1708 = vand.u32 2147483647, %v1286
    %vm1709 = vcmp.eq.f32.partialorder %v1708, 8.507059e+37
    %v1710 = vand.u32 %v1286, 2147483648
    %v1711 = vor.u32 1.1754944e-38, %v1710
    %v1712 = vsel %vm1709, %v1711, %v1707
    %v1713 = vmul.f32 -1.0, %v1712
    %v1714 = vrcp.pop %v1288
    %v1715 = vmul.f32 %v1288, %v1714
    %v1716 = vsub.f32 1.0, %v1715
    %v1717 = vmul.f32 %v1714, %v1716
    %v1718 = vadd.f32 %v1714, %v1717
    %vm1719 = vweird.f32 %v1288
    %vm1720 = vweird.f32 %v1714
    %vm1721 = vmor %vm1719, %vm1720
    %v1722 = vsel %vm1721, %v1714, %v1718
    %v1723 = vand.u32 2147483647, %v1288
    %vm1724 = vcmp.eq.f32.partialorder %v1723, 8.507059e+37
    %v1725 = vand.u32 %v1288, 2147483648
    %v1726 = vor.u32 1.1754944e-38, %v1725
    %v1727 = vsel %vm1724, %v1726, %v1722
    %v1728 = vmul.f32 -1.0, %v1727
    %v1729 = vrcp.pop %v1290
    %v1730 = vmul.f32 %v1290, %v1729
    %v1731 = vsub.f32 1.0, %v1730
    %v1732 = vmul.f32 %v1729, %v1731
    %v1733 = vadd.f32 %v1729, %v1732
    %vm1734 = vweird.f32 %v1290
    %vm1735 = vweird.f32 %v1729
    %vm1736 = vmor %vm1734, %vm1735
    %v1737 = vsel %vm1736, %v1729, %v1733
    %v1738 = vand.u32 2147483647, %v1290
    %vm1739 = vcmp.eq.f32.partialorder %v1738, 8.507059e+37
    %v1740 = vand.u32 %v1290, 2147483648
    %v1741 = vor.u32 1.1754944e-38, %v1740
    %v1742 = vsel %vm1739, %v1741, %v1737
    %v1743 = vmul.f32 -1.0, %v1742
    %v1744 = vrcp.pop %v1292
    %v1745 = vmul.f32 %v1292, %v1744
    %v1746 = vsub.f32 1.0, %v1745
    %v1747 = vmul.f32 %v1744, %v1746
    %v1748 = vadd.f32 %v1744, %v1747
    %vm1749 = vweird.f32 %v1292
    %vm1750 = vweird.f32 %v1744
    %vm1751 = vmor %vm1749, %vm1750
    %v1752 = vsel %vm1751, %v1744, %v1748
    %v1753 = vand.u32 2147483647, %v1292
    %vm1754 = vcmp.eq.f32.partialorder %v1753, 8.507059e+37
    %v1755 = vand.u32 %v1292, 2147483648
    %v1756 = vor.u32 1.1754944e-38, %v1755
    %v1757 = vsel %vm1754, %v1756, %v1752
    %v1758 = vmul.f32 -1.0, %v1757
    %v1759 = vrcp.pop %v1294
    %v1760 = vmul.f32 %v1294, %v1759
    %v1761 = vsub.f32 1.0, %v1760
    %v1762 = vmul.f32 %v1759, %v1761
    %v1763 = vadd.f32 %v1759, %v1762
    %vm1764 = vweird.f32 %v1294
    %vm1765 = vweird.f32 %v1759
    %vm1766 = vmor %vm1764, %vm1765
    %v1767 = vsel %vm1766, %v1759, %v1763
    %v1768 = vand.u32 2147483647, %v1294
    %vm1769 = vcmp.eq.f32.partialorder %v1768, 8.507059e+37
    %v1770 = vand.u32 %v1294, 2147483648
    %v1771 = vor.u32 1.1754944e-38, %v1770
    %v1772 = vsel %vm1769, %v1771, %v1767
    %v1773 = vmul.f32 -1.0, %v1772
    %v1774 = vrcp.pop %v1296
    %v1775 = vmul.f32 %v1296, %v1774
    %v1776 = vsub.f32 1.0, %v1775
    %v1777 = vmul.f32 %v1774, %v1776
    %v1778 = vadd.f32 %v1774, %v1777
    %vm1779 = vweird.f32 %v1296
    %vm1780 = vweird.f32 %v1774
    %vm1781 = vmor %vm1779, %vm1780
    %v1782 = vsel %vm1781, %v1774, %v1778
    %v1783 = vand.u32 2147483647, %v1296
    %vm1784 = vcmp.eq.f32.partialorder %v1783, 8.507059e+37
    %v1785 = vand.u32 %v1296, 2147483648
    %v1786 = vor.u32 1.1754944e-38, %v1785
    %v1787 = vsel %vm1784, %v1786, %v1782
    %v1788 = vmul.f32 -1.0, %v1787
    %v1789 = vrcp.pop %v1298
    %v1790 = vmul.f32 %v1298, %v1789
    %v1791 = vsub.f32 1.0, %v1790
    %v1792 = vmul.f32 %v1789, %v1791
    %v1793 = vadd.f32 %v1789, %v1792
    %vm1794 = vweird.f32 %v1298
    %vm1795 = vweird.f32 %v1789
    %vm1796 = vmor %vm1794, %vm1795
    %v1797 = vsel %vm1796, %v1789, %v1793
    %v1798 = vand.u32 2147483647, %v1298
    %vm1799 = vcmp.eq.f32.partialorder %v1798, 8.507059e+37
    %v1800 = vand.u32 %v1298, 2147483648
    %v1801 = vor.u32 1.1754944e-38, %v1800
    %v1802 = vsel %vm1799, %v1801, %v1797
    %v1803 = vmul.f32 -1.0, %v1802
    %v1804 = vrcp.pop %v1300
    %v1805 = vmul.f32 %v1300, %v1804
    %v1806 = vsub.f32 1.0, %v1805
    %v1807 = vmul.f32 %v1804, %v1806
    %v1808 = vadd.f32 %v1804, %v1807
    %vm1809 = vweird.f32 %v1300
    %vm1810 = vweird.f32 %v1804
    %vm1811 = vmor %vm1809, %vm1810
    %v1812 = vsel %vm1811, %v1804, %v1808
    %v1813 = vand.u32 2147483647, %v1300
    %vm1814 = vcmp.eq.f32.partialorder %v1813, 8.507059e+37
    %v1815 = vand.u32 %v1300, 2147483648
    %v1816 = vor.u32 1.1754944e-38, %v1815
    %v1817 = vsel %vm1814, %v1816, %v1812
    %v1818 = vmul.f32 -1.0, %v1817
    %v1819 = vrcp.pop %v1302
    %v1820 = vmul.f32 %v1302, %v1819
    %v1821 = vsub.f32 1.0, %v1820
    %v1822 = vmul.f32 %v1819, %v1821
    %v1823 = vadd.f32 %v1819, %v1822
    %vm1824 = vweird.f32 %v1302
    %vm1825 = vweird.f32 %v1819
    %vm1826 = vmor %vm1824, %vm1825
    %v1827 = vsel %vm1826, %v1819, %v1823
    %v1828 = vand.u32 2147483647, %v1302
    %vm1829 = vcmp.eq.f32.partialorder %v1828, 8.507059e+37
    %v1830 = vand.u32 %v1302, 2147483648
    %v1831 = vor.u32 1.1754944e-38, %v1830
    %v1832 = vsel %vm1829, %v1831, %v1827
    %v1833 = vmul.f32 -1.0, %v1832
    %v1834 = vrcp.pop %v1304
    %v1835 = vmul.f32 %v1304, %v1834
    %v1836 = vsub.f32 1.0, %v1835
    %v1837 = vmul.f32 %v1834, %v1836
    %v1838 = vadd.f32 %v1834, %v1837
    %vm1839 = vweird.f32 %v1304
    %vm1840 = vweird.f32 %v1834
    %vm1841 = vmor %vm1839, %vm1840
    %v1842 = vsel %vm1841, %v1834, %v1838
    %v1843 = vand.u32 2147483647, %v1304
    %vm1844 = vcmp.eq.f32.partialorder %v1843, 8.507059e+37
    %v1845 = vand.u32 %v1304, 2147483648
    %v1846 = vor.u32 1.1754944e-38, %v1845
    %v1847 = vsel %vm1844, %v1846, %v1842
    %v1848 = vmul.f32 -1.0, %v1847
    %v1849 = vrcp.pop %v1306
    %v1850 = vmul.f32 %v1306, %v1849
    %v1851 = vsub.f32 1.0, %v1850
    %v1852 = vmul.f32 %v1849, %v1851
    %v1853 = vadd.f32 %v1849, %v1852
    %vm1854 = vweird.f32 %v1306
    %vm1855 = vweird.f32 %v1849
    %vm1856 = vmor %vm1854, %vm1855
    %v1857 = vsel %vm1856, %v1849, %v1853
    %v1858 = vand.u32 2147483647, %v1306
    %vm1859 = vcmp.eq.f32.partialorder %v1858, 8.507059e+37
    %v1860 = vand.u32 %v1306, 2147483648
    %v1861 = vor.u32 1.1754944e-38, %v1860
    %v1862 = vsel %vm1859, %v1861, %v1857
    %v1863 = vmul.f32 -1.0, %v1862
    %v1864 = vrcp.pop %v1308
    %v1865 = vmul.f32 %v1308, %v1864
    %v1866 = vsub.f32 1.0, %v1865
    %v1867 = vmul.f32 %v1864, %v1866
    %v1868 = vadd.f32 %v1864, %v1867
    %vm1869 = vweird.f32 %v1308
    %vm1870 = vweird.f32 %v1864
    %vm1871 = vmor %vm1869, %vm1870
    %v1872 = vsel %vm1871, %v1864, %v1868
    %v1873 = vand.u32 2147483647, %v1308
    %vm1874 = vcmp.eq.f32.partialorder %v1873, 8.507059e+37
    %v1875 = vand.u32 %v1308, 2147483648
    %v1876 = vor.u32 1.1754944e-38, %v1875
    %v1877 = vsel %vm1874, %v1876, %v1872
    %v1878 = vmul.f32 -1.0, %v1877
    %v1879 = vrcp.pop %v1310
    %v1880 = vmul.f32 %v1310, %v1879
    %v1881 = vsub.f32 1.0, %v1880
    %v1882 = vmul.f32 %v1879, %v1881
    %v1883 = vadd.f32 %v1879, %v1882
    %vm1884 = vweird.f32 %v1310
    %vm1885 = vweird.f32 %v1879
    %vm1886 = vmor %vm1884, %vm1885
    %v1887 = vsel %vm1886, %v1879, %v1883
    %v1888 = vand.u32 2147483647, %v1310
    %vm1889 = vcmp.eq.f32.partialorder %v1888, 8.507059e+37
    %v1890 = vand.u32 %v1310, 2147483648
    %v1891 = vor.u32 1.1754944e-38, %v1890
    %v1892 = vsel %vm1889, %v1891, %v1887
    %v1893 = vmul.f32 -1.0, %v1892
    %v1894 = vrcp.pop %v1312
    %v1895 = vmul.f32 %v1312, %v1894
    %v1896 = vsub.f32 1.0, %v1895
    %v1897 = vmul.f32 %v1894, %v1896
    %v1898 = vadd.f32 %v1894, %v1897
    %vm1899 = vweird.f32 %v1312
    %vm1900 = vweird.f32 %v1894
    %vm1901 = vmor %vm1899, %vm1900
    %v1902 = vsel %vm1901, %v1894, %v1898
    %v1903 = vand.u32 2147483647, %v1312
    %vm1904 = vcmp.eq.f32.partialorder %v1903, 8.507059e+37
    %v1905 = vand.u32 %v1312, 2147483648
    %v1906 = vor.u32 1.1754944e-38, %v1905
    %v1907 = vsel %vm1904, %v1906, %v1902
    %v1908 = vmul.f32 -1.0, %v1907
    %v1909 = vrcp.pop %v1314
    %v1910 = vmul.f32 %v1314, %v1909
    %v1911 = vsub.f32 1.0, %v1910
    %v1912 = vmul.f32 %v1909, %v1911
    %v1913 = vadd.f32 %v1909, %v1912
    %vm1914 = vweird.f32 %v1314
    %vm1915 = vweird.f32 %v1909
    %vm1916 = vmor %vm1914, %vm1915
    %v1917 = vsel %vm1916, %v1909, %v1913
    %v1918 = vand.u32 2147483647, %v1314
    %vm1919 = vcmp.eq.f32.partialorder %v1918, 8.507059e+37
    %v1920 = vand.u32 %v1314, 2147483648
    %v1921 = vor.u32 1.1754944e-38, %v1920
    %v1922 = vsel %vm1919, %v1921, %v1917
    %v1923 = vmul.f32 -1.0, %v1922
    %v1924 = vrcp.pop %v1316
    %v1925 = vmul.f32 %v1316, %v1924
    %v1926 = vsub.f32 1.0, %v1925
    %v1927 = vmul.f32 %v1924, %v1926
    %v1928 = vadd.f32 %v1924, %v1927
    %vm1929 = vweird.f32 %v1316
    %vm1930 = vweird.f32 %v1924
    %vm1931 = vmor %vm1929, %vm1930
    %v1932 = vsel %vm1931, %v1924, %v1928
    %v1933 = vand.u32 2147483647, %v1316
    %vm1934 = vcmp.eq.f32.partialorder %v1933, 8.507059e+37
    %v1935 = vand.u32 %v1316, 2147483648
    %v1936 = vor.u32 1.1754944e-38, %v1935
    %v1937 = vsel %vm1934, %v1936, %v1932
    %v1938 = vmul.f32 -1.0, %v1937
    %v1939 = vrcp.pop %v1318
    %v1940 = vmul.f32 %v1318, %v1939
    %v1941 = vsub.f32 1.0, %v1940
    %v1942 = vmul.f32 %v1939, %v1941
    %v1943 = vadd.f32 %v1939, %v1942
    %vm1944 = vweird.f32 %v1318
    %vm1945 = vweird.f32 %v1939
    %vm1946 = vmor %vm1944, %vm1945
    %v1947 = vsel %vm1946, %v1939, %v1943
    %v1948 = vand.u32 2147483647, %v1318
    %vm1949 = vcmp.eq.f32.partialorder %v1948, 8.507059e+37
    %v1950 = vand.u32 %v1318, 2147483648
    %v1951 = vor.u32 1.1754944e-38, %v1950
    %v1952 = vsel %vm1949, %v1951, %v1947
    %v1953 = vmul.f32 -1.0, %v1952
    %v1954 = vrcp.pop %v1320
    %v1955 = vmul.f32 %v1320, %v1954
    %v1956 = vsub.f32 1.0, %v1955
    %v1957 = vmul.f32 %v1954, %v1956
    %v1958 = vadd.f32 %v1954, %v1957
    %vm1959 = vweird.f32 %v1320
    %vm1960 = vweird.f32 %v1954
    %vm1961 = vmor %vm1959, %vm1960
    %v1962 = vsel %vm1961, %v1954, %v1958
    %v1963 = vand.u32 2147483647, %v1320
    %vm1964 = vcmp.eq.f32.partialorder %v1963, 8.507059e+37
    %v1965 = vand.u32 %v1320, 2147483648
    %v1966 = vor.u32 1.1754944e-38, %v1965
    %v1967 = vsel %vm1964, %v1966, %v1962
    %v1968 = vmul.f32 -1.0, %v1967
    %v1969 = vrcp.pop %v1322
    %v1970 = vmul.f32 %v1322, %v1969
    %v1971 = vsub.f32 1.0, %v1970
    %v1972 = vmul.f32 %v1969, %v1971
    %v1973 = vadd.f32 %v1969, %v1972
    %vm1974 = vweird.f32 %v1322
    %vm1975 = vweird.f32 %v1969
    %vm1976 = vmor %vm1974, %vm1975
    %v1977 = vsel %vm1976, %v1969, %v1973
    %v1978 = vand.u32 2147483647, %v1322
    %vm1979 = vcmp.eq.f32.partialorder %v1978, 8.507059e+37
    %v1980 = vand.u32 %v1322, 2147483648
    %v1981 = vor.u32 1.1754944e-38, %v1980
    %v1982 = vsel %vm1979, %v1981, %v1977
    %v1983 = vmul.f32 -1.0, %v1982
    %v1984 = vrcp.pop %v1324
    %v1985 = vmul.f32 %v1324, %v1984
    %v1986 = vsub.f32 1.0, %v1985
    %v1987 = vmul.f32 %v1984, %v1986
    %v1988 = vadd.f32 %v1984, %v1987
    %vm1989 = vweird.f32 %v1324
    %vm1990 = vweird.f32 %v1984
    %vm1991 = vmor %vm1989, %vm1990
    %v1992 = vsel %vm1991, %v1984, %v1988
    %v1993 = vand.u32 2147483647, %v1324
    %vm1994 = vcmp.eq.f32.partialorder %v1993, 8.507059e+37
    %v1995 = vand.u32 %v1324, 2147483648
    %v1996 = vor.u32 1.1754944e-38, %v1995
    %v1997 = vsel %vm1994, %v1996, %v1992
    %v1998 = vmul.f32 -1.0, %v1997
    %v1999 = vrcp.pop %v1326
    %v2000 = vmul.f32 %v1326, %v1999
    %v2001 = vsub.f32 1.0, %v2000
    %v2002 = vmul.f32 %v1999, %v2001
    %v2003 = vadd.f32 %v1999, %v2002
    %vm2004 = vweird.f32 %v1326
    %vm2005 = vweird.f32 %v1999
    %vm2006 = vmor %vm2004, %vm2005
    %v2007 = vsel %vm2006, %v1999, %v2003
    %v2008 = vand.u32 2147483647, %v1326
    %vm2009 = vcmp.eq.f32.partialorder %v2008, 8.507059e+37
    %v2010 = vand.u32 %v1326, 2147483648
    %v2011 = vor.u32 1.1754944e-38, %v2010
    %v2012 = vsel %vm2009, %v2011, %v2007
    %v2013 = vmul.f32 -1.0, %v2012
    %v2014 = vrcp.pop %v1328
    %v2015 = vmul.f32 %v1328, %v2014
    %v2016 = vsub.f32 1.0, %v2015
    %v2017 = vmul.f32 %v2014, %v2016
    %v2018 = vadd.f32 %v2014, %v2017
    %vm2019 = vweird.f32 %v1328
    %vm2020 = vweird.f32 %v2014
    %vm2021 = vmor %vm2019, %vm2020
    %v2022 = vsel %vm2021, %v2014, %v2018
    %v2023 = vand.u32 2147483647, %v1328
    %vm2024 = vcmp.eq.f32.partialorder %v2023, 8.507059e+37
    %v2025 = vand.u32 %v1328, 2147483648
    %v2026 = vor.u32 1.1754944e-38, %v2025
    %v2027 = vsel %vm2024, %v2026, %v2022
    %v2028 = vmul.f32 -1.0, %v2027
    %v2029 = vrcp.pop %v1330
    %v2030 = vmul.f32 %v1330, %v2029
    %v2031 = vsub.f32 1.0, %v2030
    %v2032 = vmul.f32 %v2029, %v2031
    %v2033 = vadd.f32 %v2029, %v2032
    %vm2034 = vweird.f32 %v1330
    %vm2035 = vweird.f32 %v2029
    %vm2036 = vmor %vm2034, %vm2035
    %v2037 = vsel %vm2036, %v2029, %v2033
    %v2038 = vand.u32 2147483647, %v1330
    %vm2039 = vcmp.eq.f32.partialorder %v2038, 8.507059e+37
    %v2040 = vand.u32 %v1330, 2147483648
    %v2041 = vor.u32 1.1754944e-38, %v2040
    %v2042 = vsel %vm2039, %v2041, %v2037
    %v2043 = vmul.f32 -1.0, %v2042
    %v2044 = vrcp.pop %v1332
    %v2045 = vmul.f32 %v1332, %v2044
    %v2046 = vsub.f32 1.0, %v2045
    %v2047 = vmul.f32 %v2044, %v2046
    %v2048 = vadd.f32 %v2044, %v2047
    %vm2049 = vweird.f32 %v1332
    %vm2050 = vweird.f32 %v2044
    %vm2051 = vmor %vm2049, %vm2050
    %v2052 = vsel %vm2051, %v2044, %v2048
    %v2053 = vand.u32 2147483647, %v1332
    %vm2054 = vcmp.eq.f32.partialorder %v2053, 8.507059e+37
    %v2055 = vand.u32 %v1332, 2147483648
    %v2056 = vor.u32 1.1754944e-38, %v2055
    %v2057 = vsel %vm2054, %v2056, %v2052
    %v2058 = vmul.f32 -1.0, %v2057
    %v2059 = vrcp.pop %v1334
    %v2060 = vmul.f32 %v1334, %v2059
    %v2061 = vsub.f32 1.0, %v2060
    %v2062 = vmul.f32 %v2059, %v2061
    %v2063 = vadd.f32 %v2059, %v2062
    %vm2064 = vweird.f32 %v1334
    %vm2065 = vweird.f32 %v2059
    %vm2066 = vmor %vm2064, %vm2065
    %v2067 = vsel %vm2066, %v2059, %v2063
    %v2068 = vand.u32 2147483647, %v1334
    %vm2069 = vcmp.eq.f32.partialorder %v2068, 8.507059e+37
    %v2070 = vand.u32 %v1334, 2147483648
    %v2071 = vor.u32 1.1754944e-38, %v2070
    %v2072 = vsel %vm2069, %v2071, %v2067
    %v2073 = vmul.f32 -1.0, %v2072
    %v2074 = vrcp.pop %v1336
    %v2075 = vmul.f32 %v1336, %v2074
    %v2076 = vsub.f32 1.0, %v2075
    %v2077 = vmul.f32 %v2074, %v2076
    %v2078 = vadd.f32 %v2074, %v2077
    %vm2079 = vweird.f32 %v1336
    %vm2080 = vweird.f32 %v2074
    %vm2081 = vmor %vm2079, %vm2080
    %v2082 = vsel %vm2081, %v2074, %v2078
    %v2083 = vand.u32 2147483647, %v1336
    %vm2084 = vcmp.eq.f32.partialorder %v2083, 8.507059e+37
    %v2085 = vand.u32 %v1336, 2147483648
    %v2086 = vor.u32 1.1754944e-38, %v2085
    %v2087 = vsel %vm2084, %v2086, %v2082
    %v2088 = vmul.f32 -1.0, %v2087
    %v2089 = vrcp.pop %v1338
    %v2090 = vmul.f32 %v1338, %v2089
    %v2091 = vsub.f32 1.0, %v2090
    %v2092 = vmul.f32 %v2089, %v2091
    %v2093 = vadd.f32 %v2089, %v2092
    %vm2094 = vweird.f32 %v1338
    %vm2095 = vweird.f32 %v2089
    %vm2096 = vmor %vm2094, %vm2095
    %v2097 = vsel %vm2096, %v2089, %v2093
    %v2098 = vand.u32 2147483647, %v1338
    %vm2099 = vcmp.eq.f32.partialorder %v2098, 8.507059e+37
    %v2100 = vand.u32 %v1338, 2147483648
    %v2101 = vor.u32 1.1754944e-38, %v2100
    %v2102 = vsel %vm2099, %v2101, %v2097
    %v2103 = vmul.f32 -1.0, %v2102
    %v2104 = vrcp.pop %v1340
    %v2105 = vmul.f32 %v1340, %v2104
    %v2106 = vsub.f32 1.0, %v2105
    %v2107 = vmul.f32 %v2104, %v2106
    %v2108 = vadd.f32 %v2104, %v2107
    %vm2109 = vweird.f32 %v1340
    %vm2110 = vweird.f32 %v2104
    %vm2111 = vmor %vm2109, %vm2110
    %v2112 = vsel %vm2111, %v2104, %v2108
    %v2113 = vand.u32 2147483647, %v1340
    %vm2114 = vcmp.eq.f32.partialorder %v2113, 8.507059e+37
    %v2115 = vand.u32 %v1340, 2147483648
    %v2116 = vor.u32 1.1754944e-38, %v2115
    %v2117 = vsel %vm2114, %v2116, %v2112
    %v2118 = vmul.f32 -1.0, %v2117
    %v2119 = vrcp.pop %v1342
    %v2120 = vmul.f32 %v1342, %v2119
    %v2121 = vsub.f32 1.0, %v2120
    %v2122 = vmul.f32 %v2119, %v2121
    %v2123 = vadd.f32 %v2119, %v2122
    %vm2124 = vweird.f32 %v1342
    %vm2125 = vweird.f32 %v2119
    %vm2126 = vmor %vm2124, %vm2125
    %v2127 = vsel %vm2126, %v2119, %v2123
    %v2128 = vand.u32 2147483647, %v1342
    %vm2129 = vcmp.eq.f32.partialorder %v2128, 8.507059e+37
    %v2130 = vand.u32 %v1342, 2147483648
    %v2131 = vor.u32 1.1754944e-38, %v2130
    %v2132 = vsel %vm2129, %v2131, %v2127
    %v2133 = vmul.f32 -1.0, %v2132
    %v2134 = vrcp.pop %v1344
    %v2135 = vmul.f32 %v1344, %v2134
    %v2136 = vsub.f32 1.0, %v2135
    %v2137 = vmul.f32 %v2134, %v2136
    %v2138 = vadd.f32 %v2134, %v2137
    %vm2139 = vweird.f32 %v1344
    %vm2140 = vweird.f32 %v2134
    %vm2141 = vmor %vm2139, %vm2140
    %v2142 = vsel %vm2141, %v2134, %v2138
    %v2143 = vand.u32 2147483647, %v1344
    %vm2144 = vcmp.eq.f32.partialorder %v2143, 8.507059e+37
    %v2145 = vand.u32 %v1344, 2147483648
    %v2146 = vor.u32 1.1754944e-38, %v2145
    %v2147 = vsel %vm2144, %v2146, %v2142
    %v2148 = vmul.f32 -1.0, %v2147
    %v2149 = vrcp.pop %v1346
    %v2150 = vmul.f32 %v1346, %v2149
    %v2151 = vsub.f32 1.0, %v2150
    %v2152 = vmul.f32 %v2149, %v2151
    %v2153 = vadd.f32 %v2149, %v2152
    %vm2154 = vweird.f32 %v1346
    %vm2155 = vweird.f32 %v2149
    %vm2156 = vmor %vm2154, %vm2155
    %v2157 = vsel %vm2156, %v2149, %v2153
    %v2158 = vand.u32 2147483647, %v1346
    %vm2159 = vcmp.eq.f32.partialorder %v2158, 8.507059e+37
    %v2160 = vand.u32 %v1346, 2147483648
    %v2161 = vor.u32 1.1754944e-38, %v2160
    %v2162 = vsel %vm2159, %v2161, %v2157
    %v2163 = vmul.f32 -1.0, %v2162
    %v2164 = vrcp.pop %v1348
    %v2165 = vmul.f32 %v1348, %v2164
    %v2166 = vsub.f32 1.0, %v2165
    %v2167 = vmul.f32 %v2164, %v2166
    %v2168 = vadd.f32 %v2164, %v2167
    %vm2169 = vweird.f32 %v1348
    %vm2170 = vweird.f32 %v2164
    %vm2171 = vmor %vm2169, %vm2170
    %v2172 = vsel %vm2171, %v2164, %v2168
    %v2173 = vand.u32 2147483647, %v1348
    %vm2174 = vcmp.eq.f32.partialorder %v2173, 8.507059e+37
    %v2175 = vand.u32 %v1348, 2147483648
    %v2176 = vor.u32 1.1754944e-38, %v2175
    %v2177 = vsel %vm2174, %v2176, %v2172
    %v2178 = vmul.f32 -1.0, %v2177
    %v2179 = vrcp.pop %v1350
    %v2180 = vmul.f32 %v1350, %v2179
    %v2181 = vsub.f32 1.0, %v2180
    %v2182 = vmul.f32 %v2179, %v2181
    %v2183 = vadd.f32 %v2179, %v2182
    %vm2184 = vweird.f32 %v1350
    %vm2185 = vweird.f32 %v2179
    %vm2186 = vmor %vm2184, %vm2185
    %v2187 = vsel %vm2186, %v2179, %v2183
    %v2188 = vand.u32 2147483647, %v1350
    %vm2189 = vcmp.eq.f32.partialorder %v2188, 8.507059e+37
    %v2190 = vand.u32 %v1350, 2147483648
    %v2191 = vor.u32 1.1754944e-38, %v2190
    %v2192 = vsel %vm2189, %v2191, %v2187
    %v2193 = vmul.f32 -1.0, %v2192
    %v2194 = vrcp.pop %v1352
    %v2195 = vmul.f32 %v1352, %v2194
    %v2196 = vsub.f32 1.0, %v2195
    %v2197 = vmul.f32 %v2194, %v2196
    %v2198 = vadd.f32 %v2194, %v2197
    %vm2199 = vweird.f32 %v1352
    %vm2200 = vweird.f32 %v2194
    %vm2201 = vmor %vm2199, %vm2200
    %v2202 = vsel %vm2201, %v2194, %v2198
    %v2203 = vand.u32 2147483647, %v1352
    %vm2204 = vcmp.eq.f32.partialorder %v2203, 8.507059e+37
    %v2205 = vand.u32 %v1352, 2147483648
    %v2206 = vor.u32 1.1754944e-38, %v2205
    %v2207 = vsel %vm2204, %v2206, %v2202
    %v2208 = vmul.f32 -1.0, %v2207
    %v2209 = vrcp.pop %v1354
    %v2210 = vmul.f32 %v1354, %v2209
    %v2211 = vsub.f32 1.0, %v2210
    %v2212 = vmul.f32 %v2209, %v2211
    %v2213 = vadd.f32 %v2209, %v2212
    %vm2214 = vweird.f32 %v1354
    %vm2215 = vweird.f32 %v2209
    %vm2216 = vmor %vm2214, %vm2215
    %v2217 = vsel %vm2216, %v2209, %v2213
    %v2218 = vand.u32 2147483647, %v1354
    %vm2219 = vcmp.eq.f32.partialorder %v2218, 8.507059e+37
    %v2220 = vand.u32 %v1354, 2147483648
    %v2221 = vor.u32 1.1754944e-38, %v2220
    %v2222 = vsel %vm2219, %v2221, %v2217
    %v2223 = vmul.f32 -1.0, %v2222
    %v2224 = vrcp.pop %v1356
    %v2225 = vmul.f32 %v1356, %v2224
    %v2226 = vsub.f32 1.0, %v2225
    %v2227 = vmul.f32 %v2224, %v2226
    %v2228 = vadd.f32 %v2224, %v2227
    %vm2229 = vweird.f32 %v1356
    %vm2230 = vweird.f32 %v2224
    %vm2231 = vmor %vm2229, %vm2230
    %v2232 = vsel %vm2231, %v2224, %v2228
    %v2233 = vand.u32 2147483647, %v1356
    %vm2234 = vcmp.eq.f32.partialorder %v2233, 8.507059e+37
    %v2235 = vand.u32 %v1356, 2147483648
    %v2236 = vor.u32 1.1754944e-38, %v2235
    %v2237 = vsel %vm2234, %v2236, %v2232
    %v2238 = vmul.f32 -1.0, %v2237
    %v2239 = vrcp.pop %v1358
    %v2240 = vmul.f32 %v1358, %v2239
    %v2241 = vsub.f32 1.0, %v2240
    %v2242 = vmul.f32 %v2239, %v2241
    %v2243 = vadd.f32 %v2239, %v2242
    %vm2244 = vweird.f32 %v1358
    %vm2245 = vweird.f32 %v2239
    %vm2246 = vmor %vm2244, %vm2245
    %v2247 = vsel %vm2246, %v2239, %v2243
    %v2248 = vand.u32 2147483647, %v1358
    %vm2249 = vcmp.eq.f32.partialorder %v2248, 8.507059e+37
    %v2250 = vand.u32 %v1358, 2147483648
    %v2251 = vor.u32 1.1754944e-38, %v2250
    %v2252 = vsel %vm2249, %v2251, %v2247
    %v2253 = vmul.f32 -1.0, %v2252
    %v2254 = vrcp.pop %v1360
    %v2255 = vmul.f32 %v1360, %v2254
    %v2256 = vsub.f32 1.0, %v2255
    %v2257 = vmul.f32 %v2254, %v2256
    %v2258 = vadd.f32 %v2254, %v2257
    %vm2259 = vweird.f32 %v1360
    %vm2260 = vweird.f32 %v2254
    %vm2261 = vmor %vm2259, %vm2260
    %v2262 = vsel %vm2261, %v2254, %v2258
    %v2263 = vand.u32 2147483647, %v1360
    %vm2264 = vcmp.eq.f32.partialorder %v2263, 8.507059e+37
    %v2265 = vand.u32 %v1360, 2147483648
    %v2266 = vor.u32 1.1754944e-38, %v2265
    %v2267 = vsel %vm2264, %v2266, %v2262
    %v2268 = vmul.f32 -1.0, %v2267
    %v2269 = vrcp.pop %v1362
    %v2270 = vmul.f32 %v1362, %v2269
    %v2271 = vsub.f32 1.0, %v2270
    %v2272 = vmul.f32 %v2269, %v2271
    %v2273 = vadd.f32 %v2269, %v2272
    %vm2274 = vweird.f32 %v1362
    %vm2275 = vweird.f32 %v2269
    %vm2276 = vmor %vm2274, %vm2275
    %v2277 = vsel %vm2276, %v2269, %v2273
    %v2278 = vand.u32 2147483647, %v1362
    %vm2279 = vcmp.eq.f32.partialorder %v2278, 8.507059e+37
    %v2280 = vand.u32 %v1362, 2147483648
    %v2281 = vor.u32 1.1754944e-38, %v2280
    %v2282 = vsel %vm2279, %v2281, %v2277
    %v2283 = vmul.f32 -1.0, %v2282
    %v2284 = vrcp.pop %v1364
    %v2285 = vmul.f32 %v1364, %v2284
    %v2286 = vsub.f32 1.0, %v2285
    %v2287 = vmul.f32 %v2284, %v2286
    %v2288 = vadd.f32 %v2284, %v2287
    %vm2289 = vweird.f32 %v1364
    %vm2290 = vweird.f32 %v2284
    %vm2291 = vmor %vm2289, %vm2290
    %v2292 = vsel %vm2291, %v2284, %v2288
    %v2293 = vand.u32 2147483647, %v1364
    %vm2294 = vcmp.eq.f32.partialorder %v2293, 8.507059e+37
    %v2295 = vand.u32 %v1364, 2147483648
    %v2296 = vor.u32 1.1754944e-38, %v2295
    %v2297 = vsel %vm2294, %v2296, %v2292
    %v2298 = vmul.f32 -1.0, %v2297
    %v2299 = vrcp.pop %v1366
    %v2300 = vmul.f32 %v1366, %v2299
    %v2301 = vsub.f32 1.0, %v2300
    %v2302 = vmul.f32 %v2299, %v2301
    %v2303 = vadd.f32 %v2299, %v2302
    %vm2304 = vweird.f32 %v1366
    %vm2305 = vweird.f32 %v2299
    %vm2306 = vmor %vm2304, %vm2305
    %v2307 = vsel %vm2306, %v2299, %v2303
    %v2308 = vand.u32 2147483647, %v1366
    %vm2309 = vcmp.eq.f32.partialorder %v2308, 8.507059e+37
    %v2310 = vand.u32 %v1366, 2147483648
    %v2311 = vor.u32 1.1754944e-38, %v2310
    %v2312 = vsel %vm2309, %v2311, %v2307
    %v2313 = vmul.f32 -1.0, %v2312
    %v2314 = vrcp.pop %v1368
    %v2315 = vmul.f32 %v1368, %v2314
    %v2316 = vsub.f32 1.0, %v2315
    %v2317 = vmul.f32 %v2314, %v2316
    %v2318 = vadd.f32 %v2314, %v2317
    %vm2319 = vweird.f32 %v1368
    %vm2320 = vweird.f32 %v2314
    %vm2321 = vmor %vm2319, %vm2320
    %v2322 = vsel %vm2321, %v2314, %v2318
    %v2323 = vand.u32 2147483647, %v1368
    %vm2324 = vcmp.eq.f32.partialorder %v2323, 8.507059e+37
    %v2325 = vand.u32 %v1368, 2147483648
    %v2326 = vor.u32 1.1754944e-38, %v2325
    %v2327 = vsel %vm2324, %v2326, %v2322
    %v2328 = vmul.f32 -1.0, %v2327
    %v2329 = vmul.f32 %v1383, %v24
    %v2330 = vmul.f32 %v1383, %v25
    %v2331 = vmul.f32 %v1398, %v26
    %v2332 = vmul.f32 %v1398, %v27
    %v2333 = vmul.f32 %v1413, %v28
    %v2334 = vmul.f32 %v1413, %v29
    %v2335 = vmul.f32 %v1428, %v30
    %v2336 = vmul.f32 %v1428, %v31
    %v2337 = vmul.f32 %v1443, %v32
    %v2338 = vmul.f32 %v1443, %v33
    %v2339 = vmul.f32 %v1458, %v34
    %v2340 = vmul.f32 %v1458, %v35
    %v2341 = vmul.f32 %v1473, %v36
    %v2342 = vmul.f32 %v1473, %v37
    %v2343 = vmul.f32 %v1488, %v38
    %v2344 = vmul.f32 %v1488, %v39
    %v2345 = vmul.f32 %v1503, %v40
    %v2346 = vmul.f32 %v1503, %v41
    %v2347 = vmul.f32 %v1518, %v42
    %v2348 = vmul.f32 %v1518, %v43
    %v2349 = vmul.f32 %v1533, %v44
    %v2350 = vmul.f32 %v1533, %v45
    %v2351 = vmul.f32 %v1548, %v46
    %v2352 = vmul.f32 %v1548, %v47
    %v2353 = vmul.f32 %v1563, %v48
    %v2354 = vmul.f32 %v1563, %v49
    %v2355 = vmul.f32 %v1578, %v50
    %v2356 = vmul.f32 %v1578, %v51
    %v2357 = vmul.f32 %v1593, %v52
    %v2358 = vmul.f32 %v1593, %v53
    %v2359 = vmul.f32 %v1608, %v54
    %v2360 = vmul.f32 %v1608, %v55
    %v2361 = vmul.f32 %v1623, %v56
    %v2362 = vmul.f32 %v1623, %v57
    %v2363 = vmul.f32 %v1638, %v58
    %v2364 = vmul.f32 %v1638, %v59
    %v2365 = vmul.f32 %v1653, %v60
    %v2366 = vmul.f32 %v1653, %v61
    %v2367 = vmul.f32 %v1668, %v62
    %v2368 = vmul.f32 %v1668, %v63
    %v2369 = vmul.f32 %v1683, %v64
    %v2370 = vmul.f32 %v1683, %v65
    %v2371 = vmul.f32 %v1698, %v66
    %v2372 = vmul.f32 %v1698, %v67
    %v2373 = vmul.f32 %v1713, %v68
    %v2374 = vmul.f32 %v1713, %v69
    %v2375 = vmul.f32 %v1728, %v70
    %v2376 = vmul.f32 %v1728, %v71
    %v2377 = vmul.f32 %v1743, %v72
    %v2378 = vmul.f32 %v1743, %v73
    %v2379 = vmul.f32 %v1758, %v74
    %v2380 = vmul.f32 %v1758, %v75
    %v2381 = vmul.f32 %v1773, %v76
    %v2382 = vmul.f32 %v1773, %v77
    %v2383 = vmul.f32 %v1788, %v78
    %v2384 = vmul.f32 %v1788, %v79
    %v2385 = vmul.f32 %v1803, %v80
    %v2386 = vmul.f32 %v1803, %v81
    %v2387 = vmul.f32 %v1818, %v82
    %v2388 = vmul.f32 %v1818, %v83
    %v2389 = vmul.f32 %v1833, %v84
    %v2390 = vmul.f32 %v1833, %v85
    %v2391 = vmul.f32 %v1848, %v86
    %v2392 = vmul.f32 %v1848, %v87
    %v2393 = vmul.f32 %v1863, %v88
    %v2394 = vmul.f32 %v1863, %v89
    %v2395 = vmul.f32 %v1878, %v90
    %v2396 = vmul.f32 %v1878, %v91
    %v2397 = vmul.f32 %v1893, %v92
    %v2398 = vmul.f32 %v1893, %v93
    %v2399 = vmul.f32 %v1908, %v94
    %v2400 = vmul.f32 %v1908, %v95
    %v2401 = vmul.f32 %v1923, %v96
    %v2402 = vmul.f32 %v1923, %v97
    %v2403 = vmul.f32 %v1938, %v98
    %v2404 = vmul.f32 %v1938, %v99
    %v2405 = vmul.f32 %v1953, %v100
    %v2406 = vmul.f32 %v1953, %v101
    %v2407 = vmul.f32 %v1968, %v102
    %v2408 = vmul.f32 %v1968, %v103
    %v2409 = vmul.f32 %v1983, %v104
    %v2410 = vmul.f32 %v1983, %v105
    %v2411 = vmul.f32 %v1998, %v106
    %v2412 = vmul.f32 %v1998, %v107
    %v2413 = vmul.f32 %v2013, %v108
    %v2414 = vmul.f32 %v2013, %v109
    %v2415 = vmul.f32 %v2028, %v110
    %v2416 = vmul.f32 %v2028, %v111
    %v2417 = vmul.f32 %v2043, %v112
    %v2418 = vmul.f32 %v2043, %v113
    %v2419 = vmul.f32 %v2058, %v114
    %v2420 = vmul.f32 %v2058, %v115
    %v2421 = vmul.f32 %v2073, %v116
    %v2422 = vmul.f32 %v2073, %v117
    %v2423 = vmul.f32 %v2088, %v118
    %v2424 = vmul.f32 %v2088, %v119
    %v2425 = vmul.f32 %v2103, %v120
    %v2426 = vmul.f32 %v2103, %v121
    %v2427 = vmul.f32 %v2118, %v122
    %v2428 = vmul.f32 %v2118, %v123
    %v2429 = vmul.f32 %v2133, %v124
    %v2430 = vmul.f32 %v2133, %v125
    %v2431 = vmul.f32 %v2148, %v126
    %v2432 = vmul.f32 %v2148, %v127
    %v2433 = vmul.f32 %v2163, %v128
    %v2434 = vmul.f32 %v2163, %v129
    %v2435 = vmul.f32 %v2178, %v130
    %v2436 = vmul.f32 %v2178, %v131
    %v2437 = vmul.f32 %v2193, %v132
    %v2438 = vmul.f32 %v2193, %v133
    %v2439 = vmul.f32 %v2208, %v134
    %v2440 = vmul.f32 %v2208, %v135
    %v2441 = vmul.f32 %v2223, %v136
    %v2442 = vmul.f32 %v2223, %v137
    %v2443 = vmul.f32 %v2238, %v138
    %v2444 = vmul.f32 %v2238, %v139
    %v2445 = vmul.f32 %v2253, %v140
    %v2446 = vmul.f32 %v2253, %v141
    %v2447 = vmul.f32 %v2268, %v142
    %v2448 = vmul.f32 %v2268, %v143
    %v2449 = vmul.f32 %v2283, %v144
    %v2450 = vmul.f32 %v2283, %v145
    %v2451 = vmul.f32 %v2298, %v146
    %v2452 = vmul.f32 %v2298, %v147
    %v2453 = vmul.f32 %v2313, %v148
    %v2454 = vmul.f32 %v2313, %v149
    %v2455 = vmul.f32 %v2328, %v150
    %v2456 = vmul.f32 %v2328, %v151
    %v2457 = vadd.f32 %v2329, %v2331
    %v2458 = vadd.f32 %v2457, %v2333
    %v2459 = vadd.f32 %v2458, %v2335
    %v2460 = vadd.f32 %v2459, %v2337
    %v2461 = vadd.f32 %v2460, %v2339
    %v2462 = vadd.f32 %v2461, %v2341
    %v2463 = vadd.f32 %v2462, %v2343
    %v2464 = vadd.f32 %v2463, %v2345
    %v2465 = vadd.f32 %v2464, %v2347
    %v2466 = vadd.f32 %v2465, %v2349
    %v2467 = vadd.f32 %v2466, %v2351
    %v2468 = vadd.f32 %v2467, %v2353
    %v2469 = vadd.f32 %v2468, %v2355
    %v2470 = vadd.f32 %v2469, %v2357
    %v2471 = vadd.f32 %v2470, %v2359
    %v2472 = vadd.f32 %v2471, %v2361
    %v2473 = vadd.f32 %v2472, %v2363
    %v2474 = vadd.f32 %v2473, %v2365
    %v2475 = vadd.f32 %v2474, %v2367
    %v2476 = vadd.f32 %v2475, %v2369
    %v2477 = vadd.f32 %v2476, %v2371
    %v2478 = vadd.f32 %v2477, %v2373
    %v2479 = vadd.f32 %v2478, %v2375
    %v2480 = vadd.f32 %v2479, %v2377
    %v2481 = vadd.f32 %v2480, %v2379
    %v2482 = vadd.f32 %v2481, %v2381
    %v2483 = vadd.f32 %v2482, %v2383
    %v2484 = vadd.f32 %v2483, %v2385
    %v2485 = vadd.f32 %v2484, %v2387
    %v2486 = vadd.f32 %v2485, %v2389
    %v2487 = vadd.f32 %v2486, %v2391
    %v2488 = vadd.f32 %v2487, %v2393
    %v2489 = vadd.f32 %v2488, %v2395
    %v2490 = vadd.f32 %v2489, %v2397
    %v2491 = vadd.f32 %v2490, %v2399
    %v2492 = vadd.f32 %v2491, %v2401
    %v2493 = vadd.f32 %v2492, %v2403
    %v2494 = vadd.f32 %v2493, %v2405
    %v2495 = vadd.f32 %v2494, %v2407
    %v2496 = vadd.f32 %v2495, %v2409
    %v2497 = vadd.f32 %v2496, %v2411
    %v2498 = vadd.f32 %v2497, %v2413
    %v2499 = vadd.f32 %v2498, %v2415
    %v2500 = vadd.f32 %v2499, %v2417
    %v2501 = vadd.f32 %v2500, %v2419
    %v2502 = vadd.f32 %v2501, %v2421
    %v2503 = vadd.f32 %v2502, %v2423
    %v2504 = vadd.f32 %v2503, %v2425
    %v2505 = vadd.f32 %v2504, %v2427
    %v2506 = vadd.f32 %v2505, %v2429
    %v2507 = vadd.f32 %v2506, %v2431
    %v2508 = vadd.f32 %v2507, %v2433
    %v2509 = vadd.f32 %v2508, %v2435
    %v2510 = vadd.f32 %v2509, %v2437
    %v2511 = vadd.f32 %v2510, %v2439
    %v2512 = vadd.f32 %v2511, %v2441
    %v2513 = vadd.f32 %v2512, %v2443
    %v2514 = vadd.f32 %v2513, %v2445
    %v2515 = vadd.f32 %v2514, %v2447
    %v2516 = vadd.f32 %v2515, %v2449
    %v2517 = vadd.f32 %v2516, %v2451
    %v2518 = vadd.f32 %v2517, %v2453
    %v2519 = vadd.f32 %v2518, %v2455
    %v2520 = vrot.slane %v2519, 4
    %v2521 = vadd.f32 %v2519, %v2520
    %v2522 = vrot.slane %v2521, 2
    %v2523 = vadd.f32 %v2521, %v2522
    %v2524 = vrot.slane %v2523, 1
    %v2525 = vadd.f32 %v2523, %v2524
    %v2526 = vsel %vm536, %v2330, 0.0
    %v2527 = vsel %vm536, %v2332, 0.0
    %v2528 = vadd.f32 %v2526, %v2527
    %v2529 = vsel %vm536, %v2334, 0.0
    %v2530 = vadd.f32 %v2528, %v2529
    %v2531 = vsel %vm536, %v2336, 0.0
    %v2532 = vadd.f32 %v2530, %v2531
    %v2533 = vsel %vm536, %v2338, 0.0
    %v2534 = vadd.f32 %v2532, %v2533
    %v2535 = vsel %vm536, %v2340, 0.0
    %v2536 = vadd.f32 %v2534, %v2535
    %v2537 = vsel %vm536, %v2342, 0.0
    %v2538 = vadd.f32 %v2536, %v2537
    %v2539 = vsel %vm536, %v2344, 0.0
    %v2540 = vadd.f32 %v2538, %v2539
    %v2541 = vsel %vm536, %v2346, 0.0
    %v2542 = vadd.f32 %v2540, %v2541
    %v2543 = vsel %vm536, %v2348, 0.0
    %v2544 = vadd.f32 %v2542, %v2543
    %v2545 = vsel %vm536, %v2350, 0.0
    %v2546 = vadd.f32 %v2544, %v2545
    %v2547 = vsel %vm536, %v2352, 0.0
    %v2548 = vadd.f32 %v2546, %v2547
    %v2549 = vsel %vm536, %v2354, 0.0
    %v2550 = vadd.f32 %v2548, %v2549
    %v2551 = vsel %vm536, %v2356, 0.0
    %v2552 = vadd.f32 %v2550, %v2551
    %v2553 = vsel %vm536, %v2358, 0.0
    %v2554 = vadd.f32 %v2552, %v2553
    %v2555 = vsel %vm536, %v2360, 0.0
    %v2556 = vadd.f32 %v2554, %v2555
    %v2557 = vsel %vm536, %v2362, 0.0
    %v2558 = vadd.f32 %v2556, %v2557
    %v2559 = vsel %vm536, %v2364, 0.0
    %v2560 = vadd.f32 %v2558, %v2559
    %v2561 = vsel %vm536, %v2366, 0.0
    %v2562 = vadd.f32 %v2560, %v2561
    %v2563 = vsel %vm536, %v2368, 0.0
    %v2564 = vadd.f32 %v2562, %v2563
    %v2565 = vsel %vm536, %v2370, 0.0
    %v2566 = vadd.f32 %v2564, %v2565
    %v2567 = vsel %vm536, %v2372, 0.0
    %v2568 = vadd.f32 %v2566, %v2567
    %v2569 = vsel %vm536, %v2374, 0.0
    %v2570 = vadd.f32 %v2568, %v2569
    %v2571 = vsel %vm536, %v2376, 0.0
    %v2572 = vadd.f32 %v2570, %v2571
    %v2573 = vsel %vm536, %v2378, 0.0
    %v2574 = vadd.f32 %v2572, %v2573
    %v2575 = vsel %vm536, %v2380, 0.0
    %v2576 = vadd.f32 %v2574, %v2575
    %v2577 = vsel %vm536, %v2382, 0.0
    %v2578 = vadd.f32 %v2576, %v2577
    %v2579 = vsel %vm536, %v2384, 0.0
    %v2580 = vadd.f32 %v2578, %v2579
    %v2581 = vsel %vm536, %v2386, 0.0
    %v2582 = vadd.f32 %v2580, %v2581
    %v2583 = vsel %vm536, %v2388, 0.0
    %v2584 = vadd.f32 %v2582, %v2583
    %v2585 = vsel %vm536, %v2390, 0.0
    %v2586 = vadd.f32 %v2584, %v2585
    %v2587 = vsel %vm536, %v2392, 0.0
    %v2588 = vadd.f32 %v2586, %v2587
    %v2589 = vsel %vm536, %v2394, 0.0
    %v2590 = vadd.f32 %v2588, %v2589
    %v2591 = vsel %vm536, %v2396, 0.0
    %v2592 = vadd.f32 %v2590, %v2591
    %v2593 = vsel %vm536, %v2398, 0.0
    %v2594 = vadd.f32 %v2592, %v2593
    %v2595 = vsel %vm536, %v2400, 0.0
    %v2596 = vadd.f32 %v2594, %v2595
    %v2597 = vsel %vm536, %v2402, 0.0
    %v2598 = vadd.f32 %v2596, %v2597
    %v2599 = vsel %vm536, %v2404, 0.0
    %v2600 = vadd.f32 %v2598, %v2599
    %v2601 = vsel %vm536, %v2406, 0.0
    %v2602 = vadd.f32 %v2600, %v2601
    %v2603 = vsel %vm536, %v2408, 0.0
    %v2604 = vadd.f32 %v2602, %v2603
    %v2605 = vsel %vm536, %v2410, 0.0
    %v2606 = vadd.f32 %v2604, %v2605
    %v2607 = vsel %vm536, %v2412, 0.0
    %v2608 = vadd.f32 %v2606, %v2607
    %v2609 = vsel %vm536, %v2414, 0.0
    %v2610 = vadd.f32 %v2608, %v2609
    %v2611 = vsel %vm536, %v2416, 0.0
    %v2612 = vadd.f32 %v2610, %v2611
    %v2613 = vsel %vm536, %v2418, 0.0
    %v2614 = vadd.f32 %v2612, %v2613
    %v2615 = vsel %vm536, %v2420, 0.0
    %v2616 = vadd.f32 %v2614, %v2615
    %v2617 = vsel %vm536, %v2422, 0.0
    %v2618 = vadd.f32 %v2616, %v2617
    %v2619 = vsel %vm536, %v2424, 0.0
    %v2620 = vadd.f32 %v2618, %v2619
    %v2621 = vsel %vm536, %v2426, 0.0
    %v2622 = vadd.f32 %v2620, %v2621
    %v2623 = vsel %vm536, %v2428, 0.0
    %v2624 = vadd.f32 %v2622, %v2623
    %v2625 = vsel %vm536, %v2430, 0.0
    %v2626 = vadd.f32 %v2624, %v2625
    %v2627 = vsel %vm536, %v2432, 0.0
    %v2628 = vadd.f32 %v2626, %v2627
    %v2629 = vsel %vm536, %v2434, 0.0
    %v2630 = vadd.f32 %v2628, %v2629
    %v2631 = vsel %vm536, %v2436, 0.0
    %v2632 = vadd.f32 %v2630, %v2631
    %v2633 = vsel %vm536, %v2438, 0.0
    %v2634 = vadd.f32 %v2632, %v2633
    %v2635 = vsel %vm536, %v2440, 0.0
    %v2636 = vadd.f32 %v2634, %v2635
    %v2637 = vsel %vm536, %v2442, 0.0
    %v2638 = vadd.f32 %v2636, %v2637
    %v2639 = vsel %vm536, %v2444, 0.0
    %v2640 = vadd.f32 %v2638, %v2639
    %v2641 = vsel %vm536, %v2446, 0.0
    %v2642 = vadd.f32 %v2640, %v2641
    %v2643 = vsel %vm536, %v2448, 0.0
    %v2644 = vadd.f32 %v2642, %v2643
    %v2645 = vsel %vm536, %v2450, 0.0
    %v2646 = vadd.f32 %v2644, %v2645
    %v2647 = vsel %vm536, %v2452, 0.0
    %v2648 = vadd.f32 %v2646, %v2647
    %v2649 = vsel %vm536, %v2454, 0.0
    %v2650 = vadd.f32 %v2648, %v2649
    %v2651 = vsel %vm536, %v2456, 0.0
    %v2652 = vadd.f32 %v2650, %v2651
    %v2653 = vrot.slane %v2652, 4
    %v2654 = vadd.f32 %v2652, %v2653
    %v2655 = vrot.slane %v2654, 2
    %v2656 = vadd.f32 %v2654, %v2655
    %v2657 = vrot.slane %v2656, 1
    %v2658 = vadd.f32 %v2656, %v2657
    %v2659 = vmax.f32 %v2525, 0.0
    %v2660 = vmax.f32 %v2658, 0.0
    %v2661 = vsel %vm536, %v2660, -inf
    %v2662 = vmax.f32 %v2659, %v2661
    %2663 = vmax.xlane.f32.xlu0 %v2662
    %v2664 = vpop.xlane.xlu0 %2663
    %v2665 = vrcp.pop %v2664
    %v2666 = vmul.f32 %v2664, %v2665
    %v2667 = vsub.f32 1.0, %v2666
    %v2668 = vmul.f32 %v2665, %v2667
    %v2669 = vadd.f32 %v2665, %v2668
    %vm2670 = vweird.f32 %v2664
    %vm2671 = vweird.f32 %v2665
    %vm2672 = vmor %vm2670, %vm2671
    %v2673 = vsel %vm2672, %v2665, %v2669
    %v2674 = vand.u32 2147483647, %v2664
    %vm2675 = vcmp.eq.f32.partialorder %v2674, 8.507059e+37
    %v2676 = vand.u32 %v2664, 2147483648
    %v2677 = vor.u32 1.1754944e-38, %v2676
    %v2678 = vsel %vm2675, %v2677, %v2673
    %v2679 = vmul.f32 %v2659, %v2678
    %v2680 = vmul.f32 %v2660, %v2678
    %v2681 = vld [vmem:[%s4] sm:$0xff]
    %v2682 = vld [vmem:[%s4 + $0x8] sm:$0xff]
    %v2683 = vld [vmem:[%s4 + $0x10] sm:$0x3f]
    %v2684 = vld [vmem:[%s4 + $0x18] sm:$0x3f]
    %v2685 = vmul.f32 %v2681, %v2679
    %v2686 = vmul.f32 %v2682, %v2680
    %v2687 = vmul.f32 %v2683, %v2679
    %v2688 = vmul.f32 %v2684, %v2680
    %v2689 = vld [vmem:[%s5] sm:$0xff]
    %v2690 = vld [vmem:[%s5 + $0x8] sm:$0xff]
    %v2691 = vld [vmem:[%s5 + $0x10] sm:$0xff]
    %v2692 = vld [vmem:[%s5 + $0x18] sm:$0xff]
    %v2693 = vld [vmem:[%s5 + $0x20] sm:$0xff]
    %v2694 = vld [vmem:[%s5 + $0x28] sm:$0xff]
    %v2695 = vld [vmem:[%s5 + $0x30] sm:$0xff]
    %v2696 = vld [vmem:[%s5 + $0x38] sm:$0xff]
    %v2697 = vld [vmem:[%s5 + $0x40] sm:$0xff]
    %v2698 = vld [vmem:[%s5 + $0x48] sm:$0xff]
    %v2699 = vld [vmem:[%s5 + $0x50] sm:$0xff]
    %v2700 = vld [vmem:[%s5 + $0x58] sm:$0xff]
    %v2701 = vld [vmem:[%s5 + $0x60] sm:$0xff]
    %v2702 = vld [vmem:[%s5 + $0x68] sm:$0xff]
    %v2703 = vld [vmem:[%s5 + $0x70] sm:$0xff]
    %v2704 = vld [vmem:[%s5 + $0x78] sm:$0xff]
    %v2705 = vld [vmem:[%s5 + $0x80] sm:$0xff]
    %v2706 = vld [vmem:[%s5 + $0x88] sm:$0xff]
    %v2707 = vld [vmem:[%s5 + $0x90] sm:$0xff]
    %v2708 = vld [vmem:[%s5 + $0x98] sm:$0xff]
    %v2709 = vld [vmem:[%s5 + $0xa0] sm:$0xff]
    %v2710 = vld [vmem:[%s5 + $0xa8] sm:$0xff]
    %v2711 = vld [vmem:[%s5 + $0xb0] sm:$0xff]
    %v2712 = vld [vmem:[%s5 + $0xb8] sm:$0xff]
    %v2713 = vld [vmem:[%s5 + $0xc0] sm:$0xf]
    %v2715 = vsel %vm536, %v2686, 0
    %v2718 = vsel %vm536, %v2688, 0
    %vm2720 = vcmask 1043456
    %v2722 = vsel %vm2720, %v2713, 0
    %v2724 = vand.u32 %v2704, 4294901760
    %2725 = vmatpush.msra.mxu0 %v2724
    %v2726 = vand.u32 %v2703, 4294901760
    %2727 = vmatpush.msra.mxu0 %v2726
    %v2728 = vand.u32 %v2702, 4294901760
    %2729 = vmatpush.msra.mxu0 %v2728
    %v2730 = vand.u32 %v2701, 4294901760
    %2731 = vmatpush.msra.mxu0 %v2730
    %v2732 = vand.u32 %v2700, 4294901760
    %2733 = vmatpush.msra.mxu0 %v2732
    %v2734 = vand.u32 %v2699, 4294901760
    %2735 = vmatpush.msra.mxu0 %v2734
    %v2736 = vand.u32 %v2698, 4294901760
    %2737 = vmatpush.msra.mxu0 %v2736
    %v2738 = vand.u32 %v2697, 4294901760
    %2739 = vmatpush.msra.mxu0 %v2738
    %v2740 = vand.u32 %v2696, 4294901760
    %2741 = vmatpush.msra.mxu0 %v2740
    %v2742 = vand.u32 %v2695, 4294901760
    %2743 = vmatpush.msra.mxu0 %v2742
    %v2744 = vand.u32 %v2694, 4294901760
    %2745 = vmatpush.msra.mxu0 %v2744
    %v2746 = vand.u32 %v2693, 4294901760
    %2747 = vmatpush.msra.mxu0 %v2746
    %v2748 = vand.u32 %v2692, 4294901760
    %2749 = vmatpush.msra.mxu0 %v2748
    %v2750 = vand.u32 %v2691, 4294901760
    %2751 = vmatpush.msra.mxu0 %v2750
    %v2752 = vand.u32 %v2690, 4294901760
    %2753 = vmatpush.msra.mxu0 %v2752
    %v2754 = vand.u32 %v2689, 4294901760
    %2755 = vmatpush.msra.mxu0 %v2754
    %v2756 = vand.u32 %v2685, 4294901760
    %v2757 = vsub.f32 %v2685, %v2756
    %v2758 = vand.u32 %v2757, 4294901760
    %v2759 = vsub.f32 %v2757, %v2758
    %v2760 = vand.u32 %v2759, 4294901760
    %2761 = vmatmul.f32.gmra.mxu0 %v2760
    %v2762 = vpop.f32.mrf.mxu0
    %v2763 = vadd.f32 0.0, %v2762
    %v2764 = vand.u32 %v2687, 4294901760
    %v2765 = vsub.f32 %v2687, %v2764
    %v2766 = vand.u32 %v2765, 4294901760
    %v2767 = vsub.f32 %v2765, %v2766
    %v2768 = vand.u32 %v2767, 4294901760
    %2769 = vmatmul.f32.gmra.mxu0 %v2768
    %v2770 = vpop.f32.mrf.mxu0
    %v2771 = vadd.f32 0.0, %v2770
    %2772 = vdwg.mxu0
    %v2773 = vand.u32 %v2704, 4294901760
    %v2774 = vsub.f32 %v2704, %v2773
    %v2775 = vand.u32 %v2774, 4294901760
    %v2776 = vsub.f32 %v2774, %v2775
    %v2777 = vand.u32 %v2776, 4294901760
    %2778 = vmatpush.msra.mxu0 %v2777
    %v2779 = vand.u32 %v2703, 4294901760
    %v2780 = vsub.f32 %v2703, %v2779
    %v2781 = vand.u32 %v2780, 4294901760
    %v2782 = vsub.f32 %v2780, %v2781
    %v2783 = vand.u32 %v2782, 4294901760
    %2784 = vmatpush.msra.mxu0 %v2783
    %v2785 = vand.u32 %v2702, 4294901760
    %v2786 = vsub.f32 %v2702, %v2785
    %v2787 = vand.u32 %v2786, 4294901760
    %v2788 = vsub.f32 %v2786, %v2787
    %v2789 = vand.u32 %v2788, 4294901760
    %2790 = vmatpush.msra.mxu0 %v2789
    %v2791 = vand.u32 %v2701, 4294901760
    %v2792 = vsub.f32 %v2701, %v2791
    %v2793 = vand.u32 %v2792, 4294901760
    %v2794 = vsub.f32 %v2792, %v2793
    %v2795 = vand.u32 %v2794, 4294901760
    %2796 = vmatpush.msra.mxu0 %v2795
    %v2797 = vand.u32 %v2700, 4294901760
    %v2798 = vsub.f32 %v2700, %v2797
    %v2799 = vand.u32 %v2798, 4294901760
    %v2800 = vsub.f32 %v2798, %v2799
    %v2801 = vand.u32 %v2800, 4294901760
    %2802 = vmatpush.msra.mxu0 %v2801
    %v2803 = vand.u32 %v2699, 4294901760
    %v2804 = vsub.f32 %v2699, %v2803
    %v2805 = vand.u32 %v2804, 4294901760
    %v2806 = vsub.f32 %v2804, %v2805
    %v2807 = vand.u32 %v2806, 4294901760
    %2808 = vmatpush.msra.mxu0 %v2807
    %v2809 = vand.u32 %v2698, 4294901760
    %v2810 = vsub.f32 %v2698, %v2809
    %v2811 = vand.u32 %v2810, 4294901760
    %v2812 = vsub.f32 %v2810, %v2811
    %v2813 = vand.u32 %v2812, 4294901760
    %2814 = vmatpush.msra.mxu0 %v2813
    %v2815 = vand.u32 %v2697, 4294901760
    %v2816 = vsub.f32 %v2697, %v2815
    %v2817 = vand.u32 %v2816, 4294901760
    %v2818 = vsub.f32 %v2816, %v2817
    %v2819 = vand.u32 %v2818, 4294901760
    %2820 = vmatpush.msra.mxu0 %v2819
    %v2821 = vand.u32 %v2696, 4294901760
    %v2822 = vsub.f32 %v2696, %v2821
    %v2823 = vand.u32 %v2822, 4294901760
    %v2824 = vsub.f32 %v2822, %v2823
    %v2825 = vand.u32 %v2824, 4294901760
    %2826 = vmatpush.msra.mxu0 %v2825
    %v2827 = vand.u32 %v2695, 4294901760
    %v2828 = vsub.f32 %v2695, %v2827
    %v2829 = vand.u32 %v2828, 4294901760
    %v2830 = vsub.f32 %v2828, %v2829
    %v2831 = vand.u32 %v2830, 4294901760
    %2832 = vmatpush.msra.mxu0 %v2831
    %v2833 = vand.u32 %v2694, 4294901760
    %v2834 = vsub.f32 %v2694, %v2833
    %v2835 = vand.u32 %v2834, 4294901760
    %v2836 = vsub.f32 %v2834, %v2835
    %v2837 = vand.u32 %v2836, 4294901760
    %2838 = vmatpush.msra.mxu0 %v2837
    %v2839 = vand.u32 %v2693, 4294901760
    %v2840 = vsub.f32 %v2693, %v2839
    %v2841 = vand.u32 %v2840, 4294901760
    %v2842 = vsub.f32 %v2840, %v2841
    %v2843 = vand.u32 %v2842, 4294901760
    %2844 = vmatpush.msra.mxu0 %v2843
    %v2845 = vand.u32 %v2692, 4294901760
    %v2846 = vsub.f32 %v2692, %v2845
    %v2847 = vand.u32 %v2846, 4294901760
    %v2848 = vsub.f32 %v2846, %v2847
    %v2849 = vand.u32 %v2848, 4294901760
    %2850 = vmatpush.msra.mxu0 %v2849
    %v2851 = vand.u32 %v2691, 4294901760
    %v2852 = vsub.f32 %v2691, %v2851
    %v2853 = vand.u32 %v2852, 4294901760
    %v2854 = vsub.f32 %v2852, %v2853
    %v2855 = vand.u32 %v2854, 4294901760
    %2856 = vmatpush.msra.mxu0 %v2855
    %v2857 = vand.u32 %v2690, 4294901760
    %v2858 = vsub.f32 %v2690, %v2857
    %v2859 = vand.u32 %v2858, 4294901760
    %v2860 = vsub.f32 %v2858, %v2859
    %v2861 = vand.u32 %v2860, 4294901760
    %2862 = vmatpush.msra.mxu0 %v2861
    %v2863 = vand.u32 %v2689, 4294901760
    %v2864 = vsub.f32 %v2689, %v2863
    %v2865 = vand.u32 %v2864, 4294901760
    %v2866 = vsub.f32 %v2864, %v2865
    %v2867 = vand.u32 %v2866, 4294901760
    %2868 = vmatpush.msra.mxu0 %v2867
    %v2869 = vand.u32 %v2685, 4294901760
    %2870 = vmatmul.f32.gmra.mxu0 %v2869
    %v2871 = vpop.f32.mrf.mxu0
    %v2872 = vadd.f32 %v2763, %v2871
    %v2873 = vand.u32 %v2687, 4294901760
    %2874 = vmatmul.f32.gmra.mxu0 %v2873
    %v2875 = vpop.f32.mrf.mxu0
    %v2876 = vadd.f32 %v2771, %v2875
    %2877 = vdwg.mxu0
    %v2878 = vand.u32 %v2704, 4294901760
    %v2879 = vsub.f32 %v2704, %v2878
    %2880 = vmatpush.msra.mxu0 %v2879
    %v2881 = vand.u32 %v2703, 4294901760
    %v2882 = vsub.f32 %v2703, %v2881
    %2883 = vmatpush.msra.mxu0 %v2882
    %v2884 = vand.u32 %v2702, 4294901760
    %v2885 = vsub.f32 %v2702, %v2884
    %2886 = vmatpush.msra.mxu0 %v2885
    %v2887 = vand.u32 %v2701, 4294901760
    %v2888 = vsub.f32 %v2701, %v2887
    %2889 = vmatpush.msra.mxu0 %v2888
    %v2890 = vand.u32 %v2700, 4294901760
    %v2891 = vsub.f32 %v2700, %v2890
    %2892 = vmatpush.msra.mxu0 %v2891
    %v2893 = vand.u32 %v2699, 4294901760
    %v2894 = vsub.f32 %v2699, %v2893
    %2895 = vmatpush.msra.mxu0 %v2894
    %v2896 = vand.u32 %v2698, 4294901760
    %v2897 = vsub.f32 %v2698, %v2896
    %2898 = vmatpush.msra.mxu0 %v2897
    %v2899 = vand.u32 %v2697, 4294901760
    %v2900 = vsub.f32 %v2697, %v2899
    %2901 = vmatpush.msra.mxu0 %v2900
    %v2902 = vand.u32 %v2696, 4294901760
    %v2903 = vsub.f32 %v2696, %v2902
    %2904 = vmatpush.msra.mxu0 %v2903
    %v2905 = vand.u32 %v2695, 4294901760
    %v2906 = vsub.f32 %v2695, %v2905
    %2907 = vmatpush.msra.mxu0 %v2906
    %v2908 = vand.u32 %v2694, 4294901760
    %v2909 = vsub.f32 %v2694, %v2908
    %2910 = vmatpush.msra.mxu0 %v2909
    %v2911 = vand.u32 %v2693, 4294901760
    %v2912 = vsub.f32 %v2693, %v2911
    %2913 = vmatpush.msra.mxu0 %v2912
    %v2914 = vand.u32 %v2692, 4294901760
    %v2915 = vsub.f32 %v2692, %v2914
    %2916 = vmatpush.msra.mxu0 %v2915
    %v2917 = vand.u32 %v2691, 4294901760
    %v2918 = vsub.f32 %v2691, %v2917
    %2919 = vmatpush.msra.mxu0 %v2918
    %v2920 = vand.u32 %v2690, 4294901760
    %v2921 = vsub.f32 %v2690, %v2920
    %2922 = vmatpush.msra.mxu0 %v2921
    %v2923 = vand.u32 %v2689, 4294901760
    %v2924 = vsub.f32 %v2689, %v2923
    %2925 = vmatpush.msra.mxu0 %v2924
    %v2926 = vand.u32 %v2685, 4294901760
    %v2927 = vsub.f32 %v2685, %v2926
    %2928 = vmatmul.f32.gmra.mxu0 %v2927
    %v2929 = vpop.f32.mrf.mxu0
    %v2930 = vadd.f32 %v2872, %v2929
    %v2931 = vand.u32 %v2687, 4294901760
    %v2932 = vsub.f32 %v2687, %v2931
    %2933 = vmatmul.f32.gmra.mxu0 %v2932
    %v2934 = vpop.f32.mrf.mxu0
    %v2935 = vadd.f32 %v2876, %v2934
    %2936 = vdwg.mxu0
    %v2937 = vand.u32 %v2704, 4294901760
    %2938 = vmatpush.msra.mxu0 %v2937
    %v2939 = vand.u32 %v2703, 4294901760
    %2940 = vmatpush.msra.mxu0 %v2939
    %v2941 = vand.u32 %v2702, 4294901760
    %2942 = vmatpush.msra.mxu0 %v2941
    %v2943 = vand.u32 %v2701, 4294901760
    %2944 = vmatpush.msra.mxu0 %v2943
    %v2945 = vand.u32 %v2700, 4294901760
    %2946 = vmatpush.msra.mxu0 %v2945
    %v2947 = vand.u32 %v2699, 4294901760
    %2948 = vmatpush.msra.mxu0 %v2947
    %v2949 = vand.u32 %v2698, 4294901760
    %2950 = vmatpush.msra.mxu0 %v2949
    %v2951 = vand.u32 %v2697, 4294901760
    %2952 = vmatpush.msra.mxu0 %v2951
    %v2953 = vand.u32 %v2696, 4294901760
    %2954 = vmatpush.msra.mxu0 %v2953
    %v2955 = vand.u32 %v2695, 4294901760
    %2956 = vmatpush.msra.mxu0 %v2955
    %v2957 = vand.u32 %v2694, 4294901760
    %2958 = vmatpush.msra.mxu0 %v2957
    %v2959 = vand.u32 %v2693, 4294901760
    %2960 = vmatpush.msra.mxu0 %v2959
    %v2961 = vand.u32 %v2692, 4294901760
    %2962 = vmatpush.msra.mxu0 %v2961
    %v2963 = vand.u32 %v2691, 4294901760
    %2964 = vmatpush.msra.mxu0 %v2963
    %v2965 = vand.u32 %v2690, 4294901760
    %2966 = vmatpush.msra.mxu0 %v2965
    %v2967 = vand.u32 %v2689, 4294901760
    %2968 = vmatpush.msra.mxu0 %v2967
    %v2969 = vand.u32 %v2685, 4294901760
    %v2970 = vsub.f32 %v2685, %v2969
    %v2971 = vand.u32 %v2970, 4294901760
    %2972 = vmatmul.f32.gmra.mxu0 %v2971
    %v2973 = vpop.f32.mrf.mxu0
    %v2974 = vadd.f32 %v2930, %v2973
    %v2975 = vand.u32 %v2687, 4294901760
    %v2976 = vsub.f32 %v2687, %v2975
    %v2977 = vand.u32 %v2976, 4294901760
    %2978 = vmatmul.f32.gmra.mxu0 %v2977
    %v2979 = vpop.f32.mrf.mxu0
    %v2980 = vadd.f32 %v2935, %v2979
    %2981 = vdwg.mxu0
    %v2982 = vand.u32 %v2704, 4294901760
    %v2983 = vsub.f32 %v2704, %v2982
    %v2984 = vand.u32 %v2983, 4294901760
    %2985 = vmatpush.msra.mxu0 %v2984
    %v2986 = vand.u32 %v2703, 4294901760
    %v2987 = vsub.f32 %v2703, %v2986
    %v2988 = vand.u32 %v2987, 4294901760
    %2989 = vmatpush.msra.mxu0 %v2988
    %v2990 = vand.u32 %v2702, 4294901760
    %v2991 = vsub.f32 %v2702, %v2990
    %v2992 = vand.u32 %v2991, 4294901760
    %2993 = vmatpush.msra.mxu0 %v2992
    %v2994 = vand.u32 %v2701, 4294901760
    %v2995 = vsub.f32 %v2701, %v2994
    %v2996 = vand.u32 %v2995, 4294901760
    %2997 = vmatpush.msra.mxu0 %v2996
    %v2998 = vand.u32 %v2700, 4294901760
    %v2999 = vsub.f32 %v2700, %v2998
    %v3000 = vand.u32 %v2999, 4294901760
    %3001 = vmatpush.msra.mxu0 %v3000
    %v3002 = vand.u32 %v2699, 4294901760
    %v3003 = vsub.f32 %v2699, %v3002
    %v3004 = vand.u32 %v3003, 4294901760
    %3005 = vmatpush.msra.mxu0 %v3004
    %v3006 = vand.u32 %v2698, 4294901760
    %v3007 = vsub.f32 %v2698, %v3006
    %v3008 = vand.u32 %v3007, 4294901760
    %3009 = vmatpush.msra.mxu0 %v3008
    %v3010 = vand.u32 %v2697, 4294901760
    %v3011 = vsub.f32 %v2697, %v3010
    %v3012 = vand.u32 %v3011, 4294901760
    %3013 = vmatpush.msra.mxu0 %v3012
    %v3014 = vand.u32 %v2696, 4294901760
    %v3015 = vsub.f32 %v2696, %v3014
    %v3016 = vand.u32 %v3015, 4294901760
    %3017 = vmatpush.msra.mxu0 %v3016
    %v3018 = vand.u32 %v2695, 4294901760
    %v3019 = vsub.f32 %v2695, %v3018
    %v3020 = vand.u32 %v3019, 4294901760
    %3021 = vmatpush.msra.mxu0 %v3020
    %v3022 = vand.u32 %v2694, 4294901760
    %v3023 = vsub.f32 %v2694, %v3022
    %v3024 = vand.u32 %v3023, 4294901760
    %3025 = vmatpush.msra.mxu0 %v3024
    %v3026 = vand.u32 %v2693, 4294901760
    %v3027 = vsub.f32 %v2693, %v3026
    %v3028 = vand.u32 %v3027, 4294901760
    %3029 = vmatpush.msra.mxu0 %v3028
    %v3030 = vand.u32 %v2692, 4294901760
    %v3031 = vsub.f32 %v2692, %v3030
    %v3032 = vand.u32 %v3031, 4294901760
    %3033 = vmatpush.msra.mxu0 %v3032
    %v3034 = vand.u32 %v2691, 4294901760
    %v3035 = vsub.f32 %v2691, %v3034
    %v3036 = vand.u32 %v3035, 4294901760
    %3037 = vmatpush.msra.mxu0 %v3036
    %v3038 = vand.u32 %v2690, 4294901760
    %v3039 = vsub.f32 %v2690, %v3038
    %v3040 = vand.u32 %v3039, 4294901760
    %3041 = vmatpush.msra.mxu0 %v3040
    %v3042 = vand.u32 %v2689, 4294901760
    %v3043 = vsub.f32 %v2689, %v3042
    %v3044 = vand.u32 %v3043, 4294901760
    %3045 = vmatpush.msra.mxu0 %v3044
    %v3046 = vand.u32 %v2685, 4294901760
    %3047 = vmatmul.f32.gmra.mxu0 %v3046
    %v3048 = vpop.f32.mrf.mxu0
    %v3049 = vadd.f32 %v2974, %v3048
    %v3050 = vand.u32 %v2687, 4294901760
    %3051 = vmatmul.f32.gmra.mxu0 %v3050
    %v3052 = vpop.f32.mrf.mxu0
    %v3053 = vadd.f32 %v2980, %v3052
    %3054 = vdwg.mxu0
    %v3055 = vand.u32 %v2704, 4294901760
    %3056 = vmatpush.msra.mxu0 %v3055
    %v3057 = vand.u32 %v2703, 4294901760
    %3058 = vmatpush.msra.mxu0 %v3057
    %v3059 = vand.u32 %v2702, 4294901760
    %3060 = vmatpush.msra.mxu0 %v3059
    %v3061 = vand.u32 %v2701, 4294901760
    %3062 = vmatpush.msra.mxu0 %v3061
    %v3063 = vand.u32 %v2700, 4294901760
    %3064 = vmatpush.msra.mxu0 %v3063
    %v3065 = vand.u32 %v2699, 4294901760
    %3066 = vmatpush.msra.mxu0 %v3065
    %v3067 = vand.u32 %v2698, 4294901760
    %3068 = vmatpush.msra.mxu0 %v3067
    %v3069 = vand.u32 %v2697, 4294901760
    %3070 = vmatpush.msra.mxu0 %v3069
    %v3071 = vand.u32 %v2696, 4294901760
    %3072 = vmatpush.msra.mxu0 %v3071
    %v3073 = vand.u32 %v2695, 4294901760
    %3074 = vmatpush.msra.mxu0 %v3073
    %v3075 = vand.u32 %v2694, 4294901760
    %3076 = vmatpush.msra.mxu0 %v3075
    %v3077 = vand.u32 %v2693, 4294901760
    %3078 = vmatpush.msra.mxu0 %v3077
    %v3079 = vand.u32 %v2692, 4294901760
    %3080 = vmatpush.msra.mxu0 %v3079
    %v3081 = vand.u32 %v2691, 4294901760
    %3082 = vmatpush.msra.mxu0 %v3081
    %v3083 = vand.u32 %v2690, 4294901760
    %3084 = vmatpush.msra.mxu0 %v3083
    %v3085 = vand.u32 %v2689, 4294901760
    %3086 = vmatpush.msra.mxu0 %v3085
    %v3087 = vand.u32 %v2685, 4294901760
    %3088 = vmatmul.f32.gmra.mxu0 %v3087
    %v3089 = vpop.f32.mrf.mxu0
    %v3090 = vadd.f32 %v3049, %v3089
    %v3091 = vand.u32 %v2687, 4294901760
    %3092 = vmatmul.f32.gmra.mxu0 %v3091
    %v3093 = vpop.f32.mrf.mxu0
    %v3094 = vadd.f32 %v3053, %v3093
    %3095 = vdwg.mxu0
    %3096 = vmatpush.msra.mxu0 0.0
    %3097 = vmatpush.msra.mxu0 0.0
    %3098 = vmatpush.msra.mxu0 0.0
    %3099 = vmatpush.msra.mxu0 0.0
    %3100 = vmatpush.msra.mxu0 0.0
    %3101 = vmatpush.msra.mxu0 0.0
    %3102 = vmatpush.msra.mxu0 0.0
    %v3103 = vand.u32 %v2722, 4294901760
    %3104 = vmatpush.msra.mxu0 %v3103
    %v3105 = vand.u32 %v2712, 4294901760
    %3106 = vmatpush.msra.mxu0 %v3105
    %v3107 = vand.u32 %v2711, 4294901760
    %3108 = vmatpush.msra.mxu0 %v3107
    %v3109 = vand.u32 %v2710, 4294901760
    %3110 = vmatpush.msra.mxu0 %v3109
    %v3111 = vand.u32 %v2709, 4294901760
    %3112 = vmatpush.msra.mxu0 %v3111
    %v3113 = vand.u32 %v2708, 4294901760
    %3114 = vmatpush.msra.mxu0 %v3113
    %v3115 = vand.u32 %v2707, 4294901760
    %3116 = vmatpush.msra.mxu0 %v3115
    %v3117 = vand.u32 %v2706, 4294901760
    %3118 = vmatpush.msra.mxu0 %v3117
    %v3119 = vand.u32 %v2705, 4294901760
    %3120 = vmatpush.msra.mxu0 %v3119
    %v3121 = vand.u32 %v2715, 4294901760
    %v3122 = vsub.f32 %v2715, %v3121
    %v3123 = vand.u32 %v3122, 4294901760
    %v3124 = vsub.f32 %v3122, %v3123
    %v3125 = vand.u32 %v3124, 4294901760
    %3126 = vmatmul.f32.gmra.mxu0 %v3125
    %v3127 = vpop.f32.mrf.mxu0
    %v3128 = vadd.f32 %v3090, %v3127
    %v3129 = vand.u32 %v2718, 4294901760
    %v3130 = vsub.f32 %v2718, %v3129
    %v3131 = vand.u32 %v3130, 4294901760
    %v3132 = vsub.f32 %v3130, %v3131
    %v3133 = vand.u32 %v3132, 4294901760
    %3134 = vmatmul.f32.gmra.mxu0 %v3133
    %v3135 = vpop.f32.mrf.mxu0
    %v3136 = vadd.f32 %v3094, %v3135
    %3137 = vdwg.mxu0
    %3138 = vmatpush.msra.mxu0 0.0
    %3139 = vmatpush.msra.mxu0 0.0
    %3140 = vmatpush.msra.mxu0 0.0
    %3141 = vmatpush.msra.mxu0 0.0
    %3142 = vmatpush.msra.mxu0 0.0
    %3143 = vmatpush.msra.mxu0 0.0
    %3144 = vmatpush.msra.mxu0 0.0
    %v3145 = vand.u32 %v2722, 4294901760
    %v3146 = vsub.f32 %v2722, %v3145
    %v3147 = vand.u32 %v3146, 4294901760
    %v3148 = vsub.f32 %v3146, %v3147
    %v3149 = vand.u32 %v3148, 4294901760
    %3150 = vmatpush.msra.mxu0 %v3149
    %v3151 = vand.u32 %v2712, 4294901760
    %v3152 = vsub.f32 %v2712, %v3151
    %v3153 = vand.u32 %v3152, 4294901760
    %v3154 = vsub.f32 %v3152, %v3153
    %v3155 = vand.u32 %v3154, 4294901760
    %3156 = vmatpush.msra.mxu0 %v3155
    %v3157 = vand.u32 %v2711, 4294901760
    %v3158 = vsub.f32 %v2711, %v3157
    %v3159 = vand.u32 %v3158, 4294901760
    %v3160 = vsub.f32 %v3158, %v3159
    %v3161 = vand.u32 %v3160, 4294901760
    %3162 = vmatpush.msra.mxu0 %v3161
    %v3163 = vand.u32 %v2710, 4294901760
    %v3164 = vsub.f32 %v2710, %v3163
    %v3165 = vand.u32 %v3164, 4294901760
    %v3166 = vsub.f32 %v3164, %v3165
    %v3167 = vand.u32 %v3166, 4294901760
    %3168 = vmatpush.msra.mxu0 %v3167
    %v3169 = vand.u32 %v2709, 4294901760
    %v3170 = vsub.f32 %v2709, %v3169
    %v3171 = vand.u32 %v3170, 4294901760
    %v3172 = vsub.f32 %v3170, %v3171
    %v3173 = vand.u32 %v3172, 4294901760
    %3174 = vmatpush.msra.mxu0 %v3173
    %v3175 = vand.u32 %v2708, 4294901760
    %v3176 = vsub.f32 %v2708, %v3175
    %v3177 = vand.u32 %v3176, 4294901760
    %v3178 = vsub.f32 %v3176, %v3177
    %v3179 = vand.u32 %v3178, 4294901760
    %3180 = vmatpush.msra.mxu0 %v3179
    %v3181 = vand.u32 %v2707, 4294901760
    %v3182 = vsub.f32 %v2707, %v3181
    %v3183 = vand.u32 %v3182, 4294901760
    %v3184 = vsub.f32 %v3182, %v3183
    %v3185 = vand.u32 %v3184, 4294901760
    %3186 = vmatpush.msra.mxu0 %v3185
    %v3187 = vand.u32 %v2706, 4294901760
    %v3188 = vsub.f32 %v2706, %v3187
    %v3189 = vand.u32 %v3188, 4294901760
    %v3190 = vsub.f32 %v3188, %v3189
    %v3191 = vand.u32 %v3190, 4294901760
    %3192 = vmatpush.msra.mxu0 %v3191
    %v3193 = vand.u32 %v2705, 4294901760
    %v3194 = vsub.f32 %v2705, %v3193
    %v3195 = vand.u32 %v3194, 4294901760
    %v3196 = vsub.f32 %v3194, %v3195
    %v3197 = vand.u32 %v3196, 4294901760
    %3198 = vmatpush.msra.mxu0 %v3197
    %v3199 = vand.u32 %v2715, 4294901760
    %3200 = vmatmul.f32.gmra.mxu0 %v3199
    %v3201 = vpop.f32.mrf.mxu0
    %v3202 = vadd.f32 %v3128, %v3201
    %v3203 = vand.u32 %v2718, 4294901760
    %3204 = vmatmul.f32.gmra.mxu0 %v3203
    %v3205 = vpop.f32.mrf.mxu0
    %v3206 = vadd.f32 %v3136, %v3205
    %3207 = vdwg.mxu0
    %3208 = vmatpush.msra.mxu0 0.0
    %3209 = vmatpush.msra.mxu0 0.0
    %3210 = vmatpush.msra.mxu0 0.0
    %3211 = vmatpush.msra.mxu0 0.0
    %3212 = vmatpush.msra.mxu0 0.0
    %3213 = vmatpush.msra.mxu0 0.0
    %3214 = vmatpush.msra.mxu0 0.0
    %v3215 = vand.u32 %v2722, 4294901760
    %v3216 = vsub.f32 %v2722, %v3215
    %3217 = vmatpush.msra.mxu0 %v3216
    %v3218 = vand.u32 %v2712, 4294901760
    %v3219 = vsub.f32 %v2712, %v3218
    %3220 = vmatpush.msra.mxu0 %v3219
    %v3221 = vand.u32 %v2711, 4294901760
    %v3222 = vsub.f32 %v2711, %v3221
    %3223 = vmatpush.msra.mxu0 %v3222
    %v3224 = vand.u32 %v2710, 4294901760
    %v3225 = vsub.f32 %v2710, %v3224
    %3226 = vmatpush.msra.mxu0 %v3225
    %v3227 = vand.u32 %v2709, 4294901760
    %v3228 = vsub.f32 %v2709, %v3227
    %3229 = vmatpush.msra.mxu0 %v3228
    %v3230 = vand.u32 %v2708, 4294901760
    %v3231 = vsub.f32 %v2708, %v3230
    %3232 = vmatpush.msra.mxu0 %v3231
    %v3233 = vand.u32 %v2707, 4294901760
    %v3234 = vsub.f32 %v2707, %v3233
    %3235 = vmatpush.msra.mxu0 %v3234
    %v3236 = vand.u32 %v2706, 4294901760
    %v3237 = vsub.f32 %v2706, %v3236
    %3238 = vmatpush.msra.mxu0 %v3237
    %v3239 = vand.u32 %v2705, 4294901760
    %v3240 = vsub.f32 %v2705, %v3239
    %3241 = vmatpush.msra.mxu0 %v3240
    %v3242 = vand.u32 %v2715, 4294901760
    %v3243 = vsub.f32 %v2715, %v3242
    %3244 = vmatmul.f32.gmra.mxu0 %v3243
    %v3245 = vpop.f32.mrf.mxu0
    %v3246 = vadd.f32 %v3202, %v3245
    %v3247 = vand.u32 %v2718, 4294901760
    %v3248 = vsub.f32 %v2718, %v3247
    %3249 = vmatmul.f32.gmra.mxu0 %v3248
    %v3250 = vpop.f32.mrf.mxu0
    %v3251 = vadd.f32 %v3206, %v3250
    %3252 = vdwg.mxu0
    %3253 = vmatpush.msra.mxu0 0.0
    %3254 = vmatpush.msra.mxu0 0.0
    %3255 = vmatpush.msra.mxu0 0.0
    %3256 = vmatpush.msra.mxu0 0.0
    %3257 = vmatpush.msra.mxu0 0.0
    %3258 = vmatpush.msra.mxu0 0.0
    %3259 = vmatpush.msra.mxu0 0.0
    %v3260 = vand.u32 %v2722, 4294901760
    %3261 = vmatpush.msra.mxu0 %v3260
    %v3262 = vand.u32 %v2712, 4294901760
    %3263 = vmatpush.msra.mxu0 %v3262
    %v3264 = vand.u32 %v2711, 4294901760
    %3265 = vmatpush.msra.mxu0 %v3264
    %v3266 = vand.u32 %v2710, 4294901760
    %3267 = vmatpush.msra.mxu0 %v3266
    %v3268 = vand.u32 %v2709, 4294901760
    %3269 = vmatpush.msra.mxu0 %v3268
    %v3270 = vand.u32 %v2708, 4294901760
    %3271 = vmatpush.msra.mxu0 %v3270
    %v3272 = vand.u32 %v2707, 4294901760
    %3273 = vmatpush.msra.mxu0 %v3272
    %v3274 = vand.u32 %v2706, 4294901760
    %3275 = vmatpush.msra.mxu0 %v3274
    %v3276 = vand.u32 %v2705, 4294901760
    %3277 = vmatpush.msra.mxu0 %v3276
    %v3278 = vand.u32 %v2715, 4294901760
    %v3279 = vsub.f32 %v2715, %v3278
    %v3280 = vand.u32 %v3279, 4294901760
    %3281 = vmatmul.f32.gmra.mxu0 %v3280
    %v3282 = vpop.f32.mrf.mxu0
    %v3283 = vadd.f32 %v3246, %v3282
    %v3284 = vand.u32 %v2718, 4294901760
    %v3285 = vsub.f32 %v2718, %v3284
    %v3286 = vand.u32 %v3285, 4294901760
    %3287 = vmatmul.f32.gmra.mxu0 %v3286
    %v3288 = vpop.f32.mrf.mxu0
    %v3289 = vadd.f32 %v3251, %v3288
    %3290 = vdwg.mxu0
    %3291 = vmatpush.msra.mxu0 0.0
    %3292 = vmatpush.msra.mxu0 0.0
    %3293 = vmatpush.msra.mxu0 0.0
    %3294 = vmatpush.msra.mxu0 0.0
    %3295 = vmatpush.msra.mxu0 0.0
    %3296 = vmatpush.msra.mxu0 0.0
    %3297 = vmatpush.msra.mxu0 0.0
    %v3298 = vand.u32 %v2722, 4294901760
    %v3299 = vsub.f32 %v2722, %v3298
    %v3300 = vand.u32 %v3299, 4294901760
    %3301 = vmatpush.msra.mxu0 %v3300
    %v3302 = vand.u32 %v2712, 4294901760
    %v3303 = vsub.f32 %v2712, %v3302
    %v3304 = vand.u32 %v3303, 4294901760
    %3305 = vmatpush.msra.mxu0 %v3304
    %v3306 = vand.u32 %v2711, 4294901760
    %v3307 = vsub.f32 %v2711, %v3306
    %v3308 = vand.u32 %v3307, 4294901760
    %3309 = vmatpush.msra.mxu0 %v3308
    %v3310 = vand.u32 %v2710, 4294901760
    %v3311 = vsub.f32 %v2710, %v3310
    %v3312 = vand.u32 %v3311, 4294901760
    %3313 = vmatpush.msra.mxu0 %v3312
    %v3314 = vand.u32 %v2709, 4294901760
    %v3315 = vsub.f32 %v2709, %v3314
    %v3316 = vand.u32 %v3315, 4294901760
    %3317 = vmatpush.msra.mxu0 %v3316
    %v3318 = vand.u32 %v2708, 4294901760
    %v3319 = vsub.f32 %v2708, %v3318
    %v3320 = vand.u32 %v3319, 4294901760
    %3321 = vmatpush.msra.mxu0 %v3320
    %v3322 = vand.u32 %v2707, 4294901760
    %v3323 = vsub.f32 %v2707, %v3322
    %v3324 = vand.u32 %v3323, 4294901760
    %3325 = vmatpush.msra.mxu0 %v3324
    %v3326 = vand.u32 %v2706, 4294901760
    %v3327 = vsub.f32 %v2706, %v3326
    %v3328 = vand.u32 %v3327, 4294901760
    %3329 = vmatpush.msra.mxu0 %v3328
    %v3330 = vand.u32 %v2705, 4294901760
    %v3331 = vsub.f32 %v2705, %v3330
    %v3332 = vand.u32 %v3331, 4294901760
    %3333 = vmatpush.msra.mxu0 %v3332
    %v3334 = vand.u32 %v2715, 4294901760
    %3335 = vmatmul.f32.gmra.mxu0 %v3334
    %v3336 = vpop.f32.mrf.mxu0
    %v3337 = vadd.f32 %v3283, %v3336
    %v3338 = vand.u32 %v2718, 4294901760
    %3339 = vmatmul.f32.gmra.mxu0 %v3338
    %v3340 = vpop.f32.mrf.mxu0
    %v3341 = vadd.f32 %v3289, %v3340
    %3342 = vdwg.mxu0
    %3343 = vmatpush.msra.mxu0 0.0
    %3344 = vmatpush.msra.mxu0 0.0
    %3345 = vmatpush.msra.mxu0 0.0
    %3346 = vmatpush.msra.mxu0 0.0
    %3347 = vmatpush.msra.mxu0 0.0
    %3348 = vmatpush.msra.mxu0 0.0
    %3349 = vmatpush.msra.mxu0 0.0
    %v3350 = vand.u32 %v2722, 4294901760
    %3351 = vmatpush.msra.mxu0 %v3350
    %v3352 = vand.u32 %v2712, 4294901760
    %3353 = vmatpush.msra.mxu0 %v3352
    %v3354 = vand.u32 %v2711, 4294901760
    %3355 = vmatpush.msra.mxu0 %v3354
    %v3356 = vand.u32 %v2710, 4294901760
    %3357 = vmatpush.msra.mxu0 %v3356
    %v3358 = vand.u32 %v2709, 4294901760
    %3359 = vmatpush.msra.mxu0 %v3358
    %v3360 = vand.u32 %v2708, 4294901760
    %3361 = vmatpush.msra.mxu0 %v3360
    %v3362 = vand.u32 %v2707, 4294901760
    %3363 = vmatpush.msra.mxu0 %v3362
    %v3364 = vand.u32 %v2706, 4294901760
    %3365 = vmatpush.msra.mxu0 %v3364
    %v3366 = vand.u32 %v2705, 4294901760
    %3367 = vmatpush.msra.mxu0 %v3366
    %v3368 = vand.u32 %v2715, 4294901760
    %3369 = vmatmul.f32.gmra.mxu0 %v3368
    %v3370 = vpop.f32.mrf.mxu0
    %v3371 = vadd.f32 %v3337, %v3370
    %v3372 = vand.u32 %v2718, 4294901760
    %3373 = vmatmul.f32.gmra.mxu0 %v3372
    %v3374 = vpop.f32.mrf.mxu0
    %v3375 = vadd.f32 %v3341, %v3374
    %3376 = vdwg.mxu0
    %v3377 = vld [vmem:[%s3] sm:$0xff]
    %v3378 = vld [vmem:[%s3 + $0x8] sm:$0xff]
    %v3379 = vld [vmem:[%s3 + $0x10] sm:$0x3f]
    %v3380 = vld [vmem:[%s3 + $0x18] sm:$0x3f]
    %vm3381 = vcmask 113664
    %v3383 = vsel %vm3381, %v3371, 0
    %v3386 = vsel %vm3381, %v3375, 0
    %vm3388 = vcmask 1045504
    %v3390 = vsel %vm3388, %v3379, 0
    %v3393 = vsel %vm3388, %v3380, 0
    %3395 = vmatpush.msra.mxu0 0.0
    %3396 = vmatpush.msra.mxu0 0.0
    %3397 = vmatpush.msra.mxu0 0.0
    %3398 = vmatpush.msra.mxu0 0.0
    %3399 = vmatpush.msra.mxu0 0.0
    %3400 = vmatpush.msra.mxu0 0.0
    %3401 = vmatpush.msra.mxu0 0.0
    %3402 = vmatpush.msra.mxu0 0.0
    %3403 = vmatpush.msra.mxu0 0.0
    %3404 = vmatpush.msra.mxu0 0.0
    %3405 = vmatpush.msra.mxu0 0.0
    %3406 = vmatpush.msra.mxu0 0.0
    %3407 = vmatpush.msra.mxu0 0.0
    %3408 = vmatpush.msra.mxu0 0.0
    %v3409 = vand.u32 %v3390, 4294901760
    %3410 = vmatpush.msra.mxu0 %v3409
    %v3411 = vand.u32 %v3377, 4294901760
    %3412 = vmatpush.msra.mxu0 %v3411
    %v3413 = vand.u32 %v3383, 4294901760
    %v3414 = vsub.f32 %v3383, %v3413
    %v3415 = vand.u32 %v3414, 4294901760
    %v3416 = vsub.f32 %v3414, %v3415
    %v3417 = vand.u32 %v3416, 4294901760
    %3418 = vmatmul.f32.gmra.mxu0 %v3417
    %v3419 = vpop.f32.mrf.mxu0
    %v3420 = vadd.f32 0.0, %v3419
    %v3421 = vand.u32 %v3386, 4294901760
    %v3422 = vsub.f32 %v3386, %v3421
    %v3423 = vand.u32 %v3422, 4294901760
    %v3424 = vsub.f32 %v3422, %v3423
    %v3425 = vand.u32 %v3424, 4294901760
    %3426 = vmatmul.f32.gmra.mxu0 %v3425
    %v3427 = vpop.f32.mrf.mxu0
    %v3428 = vadd.f32 0.0, %v3427
    %3429 = vdwg.mxu0
    %3430 = vmatpush.msra.mxu0 0.0
    %3431 = vmatpush.msra.mxu0 0.0
    %3432 = vmatpush.msra.mxu0 0.0
    %3433 = vmatpush.msra.mxu0 0.0
    %3434 = vmatpush.msra.mxu0 0.0
    %3435 = vmatpush.msra.mxu0 0.0
    %3436 = vmatpush.msra.mxu0 0.0
    %3437 = vmatpush.msra.mxu0 0.0
    %3438 = vmatpush.msra.mxu0 0.0
    %3439 = vmatpush.msra.mxu0 0.0
    %3440 = vmatpush.msra.mxu0 0.0
    %3441 = vmatpush.msra.mxu0 0.0
    %3442 = vmatpush.msra.mxu0 0.0
    %3443 = vmatpush.msra.mxu0 0.0
    %v3444 = vand.u32 %v3390, 4294901760
    %v3445 = vsub.f32 %v3390, %v3444
    %v3446 = vand.u32 %v3445, 4294901760
    %v3447 = vsub.f32 %v3445, %v3446
    %v3448 = vand.u32 %v3447, 4294901760
    %3449 = vmatpush.msra.mxu0 %v3448
    %v3450 = vand.u32 %v3377, 4294901760
    %v3451 = vsub.f32 %v3377, %v3450
    %v3452 = vand.u32 %v3451, 4294901760
    %v3453 = vsub.f32 %v3451, %v3452
    %v3454 = vand.u32 %v3453, 4294901760
    %3455 = vmatpush.msra.mxu0 %v3454
    %v3456 = vand.u32 %v3383, 4294901760
    %3457 = vmatmul.f32.gmra.mxu0 %v3456
    %v3458 = vpop.f32.mrf.mxu0
    %v3459 = vadd.f32 %v3420, %v3458
    %v3460 = vand.u32 %v3386, 4294901760
    %3461 = vmatmul.f32.gmra.mxu0 %v3460
    %v3462 = vpop.f32.mrf.mxu0
    %v3463 = vadd.f32 %v3428, %v3462
    %3464 = vdwg.mxu0
    %3465 = vmatpush.msra.mxu0 0.0
    %3466 = vmatpush.msra.mxu0 0.0
    %3467 = vmatpush.msra.mxu0 0.0
    %3468 = vmatpush.msra.mxu0 0.0
    %3469 = vmatpush.msra.mxu0 0.0
    %3470 = vmatpush.msra.mxu0 0.0
    %3471 = vmatpush.msra.mxu0 0.0
    %3472 = vmatpush.msra.mxu0 0.0
    %3473 = vmatpush.msra.mxu0 0.0
    %3474 = vmatpush.msra.mxu0 0.0
    %3475 = vmatpush.msra.mxu0 0.0
    %3476 = vmatpush.msra.mxu0 0.0
    %3477 = vmatpush.msra.mxu0 0.0
    %3478 = vmatpush.msra.mxu0 0.0
    %v3479 = vand.u32 %v3390, 4294901760
    %v3480 = vsub.f32 %v3390, %v3479
    %3481 = vmatpush.msra.mxu0 %v3480
    %v3482 = vand.u32 %v3377, 4294901760
    %v3483 = vsub.f32 %v3377, %v3482
    %3484 = vmatpush.msra.mxu0 %v3483
    %v3485 = vand.u32 %v3383, 4294901760
    %v3486 = vsub.f32 %v3383, %v3485
    %3487 = vmatmul.f32.gmra.mxu0 %v3486
    %v3488 = vpop.f32.mrf.mxu0
    %v3489 = vadd.f32 %v3459, %v3488
    %v3490 = vand.u32 %v3386, 4294901760
    %v3491 = vsub.f32 %v3386, %v3490
    %3492 = vmatmul.f32.gmra.mxu0 %v3491
    %v3493 = vpop.f32.mrf.mxu0
    %v3494 = vadd.f32 %v3463, %v3493
    %3495 = vdwg.mxu0
    %3496 = vmatpush.msra.mxu0 0.0
    %3497 = vmatpush.msra.mxu0 0.0
    %3498 = vmatpush.msra.mxu0 0.0
    %3499 = vmatpush.msra.mxu0 0.0
    %3500 = vmatpush.msra.mxu0 0.0
    %3501 = vmatpush.msra.mxu0 0.0
    %3502 = vmatpush.msra.mxu0 0.0
    %3503 = vmatpush.msra.mxu0 0.0
    %3504 = vmatpush.msra.mxu0 0.0
    %3505 = vmatpush.msra.mxu0 0.0
    %3506 = vmatpush.msra.mxu0 0.0
    %3507 = vmatpush.msra.mxu0 0.0
    %3508 = vmatpush.msra.mxu0 0.0
    %3509 = vmatpush.msra.mxu0 0.0
    %v3510 = vand.u32 %v3390, 4294901760
    %3511 = vmatpush.msra.mxu0 %v3510
    %v3512 = vand.u32 %v3377, 4294901760
    %3513 = vmatpush.msra.mxu0 %v3512
    %v3514 = vand.u32 %v3383, 4294901760
    %v3515 = vsub.f32 %v3383, %v3514
    %v3516 = vand.u32 %v3515, 4294901760
    %3517 = vmatmul.f32.gmra.mxu0 %v3516
    %v3518 = vpop.f32.mrf.mxu0
    %v3519 = vadd.f32 %v3489, %v3518
    %v3520 = vand.u32 %v3386, 4294901760
    %v3521 = vsub.f32 %v3386, %v3520
    %v3522 = vand.u32 %v3521, 4294901760
    %3523 = vmatmul.f32.gmra.mxu0 %v3522
    %v3524 = vpop.f32.mrf.mxu0
    %v3525 = vadd.f32 %v3494, %v3524
    %3526 = vdwg.mxu0
    %3527 = vmatpush.msra.mxu0 0.0
    %3528 = vmatpush.msra.mxu0 0.0
    %3529 = vmatpush.msra.mxu0 0.0
    %3530 = vmatpush.msra.mxu0 0.0
    %3531 = vmatpush.msra.mxu0 0.0
    %3532 = vmatpush.msra.mxu0 0.0
    %3533 = vmatpush.msra.mxu0 0.0
    %3534 = vmatpush.msra.mxu0 0.0
    %3535 = vmatpush.msra.mxu0 0.0
    %3536 = vmatpush.msra.mxu0 0.0
    %3537 = vmatpush.msra.mxu0 0.0
    %3538 = vmatpush.msra.mxu0 0.0
    %3539 = vmatpush.msra.mxu0 0.0
    %3540 = vmatpush.msra.mxu0 0.0
    %v3541 = vand.u32 %v3390, 4294901760
    %v3542 = vsub.f32 %v3390, %v3541
    %v3543 = vand.u32 %v3542, 4294901760
    %3544 = vmatpush.msra.mxu0 %v3543
    %v3545 = vand.u32 %v3377, 4294901760
    %v3546 = vsub.f32 %v3377, %v3545
    %v3547 = vand.u32 %v3546, 4294901760
    %3548 = vmatpush.msra.mxu0 %v3547
    %v3549 = vand.u32 %v3383, 4294901760
    %3550 = vmatmul.f32.gmra.mxu0 %v3549
    %v3551 = vpop.f32.mrf.mxu0
    %v3552 = vadd.f32 %v3519, %v3551
    %v3553 = vand.u32 %v3386, 4294901760
    %3554 = vmatmul.f32.gmra.mxu0 %v3553
    %v3555 = vpop.f32.mrf.mxu0
    %v3556 = vadd.f32 %v3525, %v3555
    %3557 = vdwg.mxu0
    %3558 = vmatpush.msra.mxu0 0.0
    %3559 = vmatpush.msra.mxu0 0.0
    %3560 = vmatpush.msra.mxu0 0.0
    %3561 = vmatpush.msra.mxu0 0.0
    %3562 = vmatpush.msra.mxu0 0.0
    %3563 = vmatpush.msra.mxu0 0.0
    %3564 = vmatpush.msra.mxu0 0.0
    %3565 = vmatpush.msra.mxu0 0.0
    %3566 = vmatpush.msra.mxu0 0.0
    %3567 = vmatpush.msra.mxu0 0.0
    %3568 = vmatpush.msra.mxu0 0.0
    %3569 = vmatpush.msra.mxu0 0.0
    %3570 = vmatpush.msra.mxu0 0.0
    %3571 = vmatpush.msra.mxu0 0.0
    %v3572 = vand.u32 %v3390, 4294901760
    %3573 = vmatpush.msra.mxu0 %v3572
    %v3574 = vand.u32 %v3377, 4294901760
    %3575 = vmatpush.msra.mxu0 %v3574
    %v3576 = vand.u32 %v3383, 4294901760
    %3577 = vmatmul.f32.gmra.mxu0 %v3576
    %v3578 = vpop.f32.mrf.mxu0
    %v3579 = vadd.f32 %v3552, %v3578
    %v3580 = vand.u32 %v3386, 4294901760
    %3581 = vmatmul.f32.gmra.mxu0 %v3580
    %v3582 = vpop.f32.mrf.mxu0
    %v3583 = vadd.f32 %v3556, %v3582
    %3584 = vdwg.mxu0
    %3585 = vmatpush.msra.mxu0 0.0
    %3586 = vmatpush.msra.mxu0 0.0
    %3587 = vmatpush.msra.mxu0 0.0
    %3588 = vmatpush.msra.mxu0 0.0
    %3589 = vmatpush.msra.mxu0 0.0
    %3590 = vmatpush.msra.mxu0 0.0
    %3591 = vmatpush.msra.mxu0 0.0
    %3592 = vmatpush.msra.mxu0 0.0
    %3593 = vmatpush.msra.mxu0 0.0
    %3594 = vmatpush.msra.mxu0 0.0
    %3595 = vmatpush.msra.mxu0 0.0
    %3596 = vmatpush.msra.mxu0 0.0
    %3597 = vmatpush.msra.mxu0 0.0
    %3598 = vmatpush.msra.mxu0 0.0
    %v3599 = vand.u32 %v3393, 4294901760
    %3600 = vmatpush.msra.mxu0 %v3599
    %v3601 = vand.u32 %v3378, 4294901760
    %3602 = vmatpush.msra.mxu0 %v3601
    %v3603 = vand.u32 %v3383, 4294901760
    %v3604 = vsub.f32 %v3383, %v3603
    %v3605 = vand.u32 %v3604, 4294901760
    %v3606 = vsub.f32 %v3604, %v3605
    %v3607 = vand.u32 %v3606, 4294901760
    %3608 = vmatmul.f32.gmra.mxu0 %v3607
    %v3609 = vpop.f32.mrf.mxu0
    %v3610 = vadd.f32 0.0, %v3609
    %v3611 = vand.u32 %v3386, 4294901760
    %v3612 = vsub.f32 %v3386, %v3611
    %v3613 = vand.u32 %v3612, 4294901760
    %v3614 = vsub.f32 %v3612, %v3613
    %v3615 = vand.u32 %v3614, 4294901760
    %3616 = vmatmul.f32.gmra.mxu0 %v3615
    %v3617 = vpop.f32.mrf.mxu0
    %v3618 = vadd.f32 0.0, %v3617
    %3619 = vdwg.mxu0
    %3620 = vmatpush.msra.mxu0 0.0
    %3621 = vmatpush.msra.mxu0 0.0
    %3622 = vmatpush.msra.mxu0 0.0
    %3623 = vmatpush.msra.mxu0 0.0
    %3624 = vmatpush.msra.mxu0 0.0
    %3625 = vmatpush.msra.mxu0 0.0
    %3626 = vmatpush.msra.mxu0 0.0
    %3627 = vmatpush.msra.mxu0 0.0
    %3628 = vmatpush.msra.mxu0 0.0
    %3629 = vmatpush.msra.mxu0 0.0
    %3630 = vmatpush.msra.mxu0 0.0
    %3631 = vmatpush.msra.mxu0 0.0
    %3632 = vmatpush.msra.mxu0 0.0
    %3633 = vmatpush.msra.mxu0 0.0
    %v3634 = vand.u32 %v3393, 4294901760
    %v3635 = vsub.f32 %v3393, %v3634
    %v3636 = vand.u32 %v3635, 4294901760
    %v3637 = vsub.f32 %v3635, %v3636
    %v3638 = vand.u32 %v3637, 4294901760
    %3639 = vmatpush.msra.mxu0 %v3638
    %v3640 = vand.u32 %v3378, 4294901760
    %v3641 = vsub.f32 %v3378, %v3640
    %v3642 = vand.u32 %v3641, 4294901760
    %v3643 = vsub.f32 %v3641, %v3642
    %v3644 = vand.u32 %v3643, 4294901760
    %3645 = vmatpush.msra.mxu0 %v3644
    %v3646 = vand.u32 %v3383, 4294901760
    %3647 = vmatmul.f32.gmra.mxu0 %v3646
    %v3648 = vpop.f32.mrf.mxu0
    %v3649 = vadd.f32 %v3610, %v3648
    %v3650 = vand.u32 %v3386, 4294901760
    %3651 = vmatmul.f32.gmra.mxu0 %v3650
    %v3652 = vpop.f32.mrf.mxu0
    %v3653 = vadd.f32 %v3618, %v3652
    %3654 = vdwg.mxu0
    %3655 = vmatpush.msra.mxu0 0.0
    %3656 = vmatpush.msra.mxu0 0.0
    %3657 = vmatpush.msra.mxu0 0.0
    %3658 = vmatpush.msra.mxu0 0.0
    %3659 = vmatpush.msra.mxu0 0.0
    %3660 = vmatpush.msra.mxu0 0.0
    %3661 = vmatpush.msra.mxu0 0.0
    %3662 = vmatpush.msra.mxu0 0.0
    %3663 = vmatpush.msra.mxu0 0.0
    %3664 = vmatpush.msra.mxu0 0.0
    %3665 = vmatpush.msra.mxu0 0.0
    %3666 = vmatpush.msra.mxu0 0.0
    %3667 = vmatpush.msra.mxu0 0.0
    %3668 = vmatpush.msra.mxu0 0.0
    %v3669 = vand.u32 %v3393, 4294901760
    %v3670 = vsub.f32 %v3393, %v3669
    %3671 = vmatpush.msra.mxu0 %v3670
    %v3672 = vand.u32 %v3378, 4294901760
    %v3673 = vsub.f32 %v3378, %v3672
    %3674 = vmatpush.msra.mxu0 %v3673
    %v3675 = vand.u32 %v3383, 4294901760
    %v3676 = vsub.f32 %v3383, %v3675
    %3677 = vmatmul.f32.gmra.mxu0 %v3676
    %v3678 = vpop.f32.mrf.mxu0
    %v3679 = vadd.f32 %v3649, %v3678
    %v3680 = vand.u32 %v3386, 4294901760
    %v3681 = vsub.f32 %v3386, %v3680
    %3682 = vmatmul.f32.gmra.mxu0 %v3681
    %v3683 = vpop.f32.mrf.mxu0
    %v3684 = vadd.f32 %v3653, %v3683
    %3685 = vdwg.mxu0
    %3686 = vmatpush.msra.mxu0 0.0
    %3687 = vmatpush.msra.mxu0 0.0
    %3688 = vmatpush.msra.mxu0 0.0
    %3689 = vmatpush.msra.mxu0 0.0
    %3690 = vmatpush.msra.mxu0 0.0
    %3691 = vmatpush.msra.mxu0 0.0
    %3692 = vmatpush.msra.mxu0 0.0
    %3693 = vmatpush.msra.mxu0 0.0
    %3694 = vmatpush.msra.mxu0 0.0
    %3695 = vmatpush.msra.mxu0 0.0
    %3696 = vmatpush.msra.mxu0 0.0
    %3697 = vmatpush.msra.mxu0 0.0
    %3698 = vmatpush.msra.mxu0 0.0
    %3699 = vmatpush.msra.mxu0 0.0
    %v3700 = vand.u32 %v3393, 4294901760
    %3701 = vmatpush.msra.mxu0 %v3700
    %v3702 = vand.u32 %v3378, 4294901760
    %3703 = vmatpush.msra.mxu0 %v3702
    %v3704 = vand.u32 %v3383, 4294901760
    %v3705 = vsub.f32 %v3383, %v3704
    %v3706 = vand.u32 %v3705, 4294901760
    %3707 = vmatmul.f32.gmra.mxu0 %v3706
    %v3708 = vpop.f32.mrf.mxu0
    %v3709 = vadd.f32 %v3679, %v3708
    %v3710 = vand.u32 %v3386, 4294901760
    %v3711 = vsub.f32 %v3386, %v3710
    %v3712 = vand.u32 %v3711, 4294901760
    %3713 = vmatmul.f32.gmra.mxu0 %v3712
    %v3714 = vpop.f32.mrf.mxu0
    %v3715 = vadd.f32 %v3684, %v3714
    %3716 = vdwg.mxu0
    %3717 = vmatpush.msra.mxu0 0.0
    %3718 = vmatpush.msra.mxu0 0.0
    %3719 = vmatpush.msra.mxu0 0.0
    %3720 = vmatpush.msra.mxu0 0.0
    %3721 = vmatpush.msra.mxu0 0.0
    %3722 = vmatpush.msra.mxu0 0.0
    %3723 = vmatpush.msra.mxu0 0.0
    %3724 = vmatpush.msra.mxu0 0.0
    %3725 = vmatpush.msra.mxu0 0.0
    %3726 = vmatpush.msra.mxu0 0.0
    %3727 = vmatpush.msra.mxu0 0.0
    %3728 = vmatpush.msra.mxu0 0.0
    %3729 = vmatpush.msra.mxu0 0.0
    %3730 = vmatpush.msra.mxu0 0.0
    %v3731 = vand.u32 %v3393, 4294901760
    %v3732 = vsub.f32 %v3393, %v3731
    %v3733 = vand.u32 %v3732, 4294901760
    %3734 = vmatpush.msra.mxu0 %v3733
    %v3735 = vand.u32 %v3378, 4294901760
    %v3736 = vsub.f32 %v3378, %v3735
    %v3737 = vand.u32 %v3736, 4294901760
    %3738 = vmatpush.msra.mxu0 %v3737
    %v3739 = vand.u32 %v3383, 4294901760
    %3740 = vmatmul.f32.gmra.mxu0 %v3739
    %v3741 = vpop.f32.mrf.mxu0
    %v3742 = vadd.f32 %v3709, %v3741
    %v3743 = vand.u32 %v3386, 4294901760
    %3744 = vmatmul.f32.gmra.mxu0 %v3743
    %v3745 = vpop.f32.mrf.mxu0
    %v3746 = vadd.f32 %v3715, %v3745
    %3747 = vdwg.mxu0
    %3748 = vmatpush.msra.mxu0 0.0
    %3749 = vmatpush.msra.mxu0 0.0
    %3750 = vmatpush.msra.mxu0 0.0
    %3751 = vmatpush.msra.mxu0 0.0
    %3752 = vmatpush.msra.mxu0 0.0
    %3753 = vmatpush.msra.mxu0 0.0
    %3754 = vmatpush.msra.mxu0 0.0
    %3755 = vmatpush.msra.mxu0 0.0
    %3756 = vmatpush.msra.mxu0 0.0
    %3757 = vmatpush.msra.mxu0 0.0
    %3758 = vmatpush.msra.mxu0 0.0
    %3759 = vmatpush.msra.mxu0 0.0
    %3760 = vmatpush.msra.mxu0 0.0
    %3761 = vmatpush.msra.mxu0 0.0
    %v3762 = vand.u32 %v3393, 4294901760
    %3763 = vmatpush.msra.mxu0 %v3762
    %v3764 = vand.u32 %v3378, 4294901760
    %3765 = vmatpush.msra.mxu0 %v3764
    %v3766 = vand.u32 %v3383, 4294901760
    %3767 = vmatmul.f32.gmra.mxu0 %v3766
    %v3768 = vpop.f32.mrf.mxu0
    %v3769 = vadd.f32 %v3742, %v3768
    %v3770 = vand.u32 %v3386, 4294901760
    %3771 = vmatmul.f32.gmra.mxu0 %v3770
    %v3772 = vpop.f32.mrf.mxu0
    %v3773 = vadd.f32 %v3746, %v3772
    %3774 = vdwg.mxu0
    %v3775 = vld [vmem:[%s2] sm:$0xff]
    %v3776 = vld [vmem:[%s2 + $0x8] sm:$0xff]
    %v3777 = vld [vmem:[%s2 + $0x10] sm:$0xff]
    %v3778 = vld [vmem:[%s2 + $0x18] sm:$0xff]
    %v3779 = vld [vmem:[%s2 + $0x20] sm:$0xff]
    %v3780 = vld [vmem:[%s2 + $0x28] sm:$0xff]
    %v3781 = vld [vmem:[%s2 + $0x30] sm:$0xff]
    %v3782 = vld [vmem:[%s2 + $0x38] sm:$0xff]
    %v3783 = vld [vmem:[%s2 + $0x40] sm:$0xff]
    %v3784 = vld [vmem:[%s2 + $0x48] sm:$0xff]
    %v3785 = vld [vmem:[%s2 + $0x50] sm:$0xff]
    %v3786 = vld [vmem:[%s2 + $0x58] sm:$0xff]
    %v3787 = vld [vmem:[%s2 + $0x60] sm:$0xff]
    %v3788 = vld [vmem:[%s2 + $0x68] sm:$0xff]
    %v3789 = vld [vmem:[%s2 + $0x70] sm:$0xff]
    %v3790 = vld [vmem:[%s2 + $0x78] sm:$0xff]
    %v3791 = vld [vmem:[%s2 + $0x80] sm:$0xff]
    %v3792 = vld [vmem:[%s2 + $0x88] sm:$0xff]
    %v3793 = vld [vmem:[%s2 + $0x90] sm:$0xff]
    %v3794 = vld [vmem:[%s2 + $0x98] sm:$0xff]
    %v3795 = vld [vmem:[%s2 + $0xa0] sm:$0xff]
    %v3796 = vld [vmem:[%s2 + $0xa8] sm:$0xff]
    %v3797 = vld [vmem:[%s2 + $0xb0] sm:$0xff]
    %v3798 = vld [vmem:[%s2 + $0xb8] sm:$0xff]
    %v3799 = vld [vmem:[%s2 + $0xc0] sm:$0xff]
    %v3800 = vld [vmem:[%s2 + $0xc8] sm:$0xff]
    %v3801 = vld [vmem:[%s2 + $0xd0] sm:$0xff]
    %v3802 = vld [vmem:[%s2 + $0xd8] sm:$0xff]
    %v3804 = vsel %vm3381, %v3775, 0
    %v3807 = vsel %vm3381, %v3776, 0
    %v3810 = vsel %vm3381, %v3777, 0
    %v3813 = vsel %vm3381, %v3778, 0
    %v3816 = vsel %vm3381, %v3779, 0
    %v3819 = vsel %vm3381, %v3780, 0
    %v3822 = vsel %vm3381, %v3781, 0
    %v3825 = vsel %vm3381, %v3782, 0
    %v3828 = vsel %vm3381, %v3783, 0
    %v3831 = vsel %vm3381, %v3784, 0
    %v3834 = vsel %vm3381, %v3785, 0
    %v3837 = vsel %vm3381, %v3786, 0
    %v3840 = vsel %vm3381, %v3787, 0
    %v3843 = vsel %vm3381, %v3788, 0
    %v3846 = vsel %vm3381, %v3789, 0
    %v3849 = vsel %vm3381, %v3790, 0
    %v3852 = vsel %vm3381, %v3791, 0
    %v3855 = vsel %vm3381, %v3792, 0
    %v3858 = vsel %vm3381, %v3793, 0
    %v3861 = vsel %vm3381, %v3794, 0
    %v3864 = vsel %vm3381, %v3795, 0
    %v3867 = vsel %vm3381, %v3796, 0
    %v3870 = vsel %vm3381, %v3797, 0
    %v3873 = vsel %vm3381, %v3798, 0
    %v3876 = vsel %vm3381, %v3799, 0
    %v3879 = vsel %vm3381, %v3800, 0
    %v3882 = vsel %vm3381, %v3801, 0
    %v3885 = vsel %vm3381, %v3802, 0
    %v3888 = vsel %vm3388, %v3583, 0
    %v3891 = vsel %vm3388, %v3773, 0
    %3893 = vmatpush.msra.mxu0 0.0
    %3894 = vmatpush.msra.mxu0 0.0
    %3895 = vmatpush.msra.mxu0 0.0
    %3896 = vmatpush.msra.mxu0 0.0
    %3897 = vmatpush.msra.mxu0 0.0
    %3898 = vmatpush.msra.mxu0 0.0
    %3899 = vmatpush.msra.mxu0 0.0
    %3900 = vmatpush.msra.mxu0 0.0
    %3901 = vmatpush.msra.mxu0 0.0
    %3902 = vmatpush.msra.mxu0 0.0
    %3903 = vmatpush.msra.mxu0 0.0
    %3904 = vmatpush.msra.mxu0 0.0
    %3905 = vmatpush.msra.mxu0 0.0
    %3906 = vmatpush.msra.mxu0 0.0
    %v3907 = vand.u32 %v3888, 4294901760
    %3908 = vmatpush.msra.mxu0 %v3907
    %v3909 = vand.u32 %v3579, 4294901760
    %3910 = vmatpush.msra.mxu0 %v3909
    %v3911 = vand.u32 %v3804, 4294901760
    %v3912 = vsub.f32 %v3804, %v3911
    %v3913 = vand.u32 %v3912, 4294901760
    %v3914 = vsub.f32 %v3912, %v3913
    %v3915 = vand.u32 %v3914, 4294901760
    %3916 = vmatmul.f32.gmra.mxu0 %v3915
    %v3917 = vpop.f32.mrf.mxu0
    %v3918 = vadd.f32 0.0, %v3917
    %v3919 = vand.u32 %v3807, 4294901760
    %v3920 = vsub.f32 %v3807, %v3919
    %v3921 = vand.u32 %v3920, 4294901760
    %v3922 = vsub.f32 %v3920, %v3921
    %v3923 = vand.u32 %v3922, 4294901760
    %3924 = vmatmul.f32.gmra.mxu0 %v3923
    %v3925 = vpop.f32.mrf.mxu0
    %v3926 = vadd.f32 0.0, %v3925
    %v3927 = vand.u32 %v3810, 4294901760
    %v3928 = vsub.f32 %v3810, %v3927
    %v3929 = vand.u32 %v3928, 4294901760
    %v3930 = vsub.f32 %v3928, %v3929
    %v3931 = vand.u32 %v3930, 4294901760
    %3932 = vmatmul.f32.gmra.mxu0 %v3931
    %v3933 = vpop.f32.mrf.mxu0
    %v3934 = vadd.f32 0.0, %v3933
    %v3935 = vand.u32 %v3813, 4294901760
    %v3936 = vsub.f32 %v3813, %v3935
    %v3937 = vand.u32 %v3936, 4294901760
    %v3938 = vsub.f32 %v3936, %v3937
    %v3939 = vand.u32 %v3938, 4294901760
    %3940 = vmatmul.f32.gmra.mxu0 %v3939
    %v3941 = vpop.f32.mrf.mxu0
    %v3942 = vadd.f32 0.0, %v3941
    %v3943 = vand.u32 %v3816, 4294901760
    %v3944 = vsub.f32 %v3816, %v3943
    %v3945 = vand.u32 %v3944, 4294901760
    %v3946 = vsub.f32 %v3944, %v3945
    %v3947 = vand.u32 %v3946, 4294901760
    %3948 = vmatmul.f32.gmra.mxu0 %v3947
    %v3949 = vpop.f32.mrf.mxu0
    %v3950 = vadd.f32 0.0, %v3949
    %v3951 = vand.u32 %v3819, 4294901760
    %v3952 = vsub.f32 %v3819, %v3951
    %v3953 = vand.u32 %v3952, 4294901760
    %v3954 = vsub.f32 %v3952, %v3953
    %v3955 = vand.u32 %v3954, 4294901760
    %3956 = vmatmul.f32.gmra.mxu0 %v3955
    %v3957 = vpop.f32.mrf.mxu0
    %v3958 = vadd.f32 0.0, %v3957
    %v3959 = vand.u32 %v3822, 4294901760
    %v3960 = vsub.f32 %v3822, %v3959
    %v3961 = vand.u32 %v3960, 4294901760
    %v3962 = vsub.f32 %v3960, %v3961
    %v3963 = vand.u32 %v3962, 4294901760
    %3964 = vmatmul.f32.gmra.mxu0 %v3963
    %v3965 = vpop.f32.mrf.mxu0
    %v3966 = vadd.f32 0.0, %v3965
    %v3967 = vand.u32 %v3825, 4294901760
    %v3968 = vsub.f32 %v3825, %v3967
    %v3969 = vand.u32 %v3968, 4294901760
    %v3970 = vsub.f32 %v3968, %v3969
    %v3971 = vand.u32 %v3970, 4294901760
    %3972 = vmatmul.f32.gmra.mxu0 %v3971
    %v3973 = vpop.f32.mrf.mxu0
    %v3974 = vadd.f32 0.0, %v3973
    %v3975 = vand.u32 %v3828, 4294901760
    %v3976 = vsub.f32 %v3828, %v3975
    %v3977 = vand.u32 %v3976, 4294901760
    %v3978 = vsub.f32 %v3976, %v3977
    %v3979 = vand.u32 %v3978, 4294901760
    %3980 = vmatmul.f32.gmra.mxu0 %v3979
    %v3981 = vpop.f32.mrf.mxu0
    %v3982 = vadd.f32 0.0, %v3981
    %v3983 = vand.u32 %v3831, 4294901760
    %v3984 = vsub.f32 %v3831, %v3983
    %v3985 = vand.u32 %v3984, 4294901760
    %v3986 = vsub.f32 %v3984, %v3985
    %v3987 = vand.u32 %v3986, 4294901760
    %3988 = vmatmul.f32.gmra.mxu0 %v3987
    %v3989 = vpop.f32.mrf.mxu0
    %v3990 = vadd.f32 0.0, %v3989
    %v3991 = vand.u32 %v3834, 4294901760
    %v3992 = vsub.f32 %v3834, %v3991
    %v3993 = vand.u32 %v3992, 4294901760
    %v3994 = vsub.f32 %v3992, %v3993
    %v3995 = vand.u32 %v3994, 4294901760
    %3996 = vmatmul.f32.gmra.mxu0 %v3995
    %v3997 = vpop.f32.mrf.mxu0
    %v3998 = vadd.f32 0.0, %v3997
    %v3999 = vand.u32 %v3837, 4294901760
    %v4000 = vsub.f32 %v3837, %v3999
    %v4001 = vand.u32 %v4000, 4294901760
    %v4002 = vsub.f32 %v4000, %v4001
    %v4003 = vand.u32 %v4002, 4294901760
    %4004 = vmatmul.f32.gmra.mxu0 %v4003
    %v4005 = vpop.f32.mrf.mxu0
    %v4006 = vadd.f32 0.0, %v4005
    %v4007 = vand.u32 %v3840, 4294901760
    %v4008 = vsub.f32 %v3840, %v4007
    %v4009 = vand.u32 %v4008, 4294901760
    %v4010 = vsub.f32 %v4008, %v4009
    %v4011 = vand.u32 %v4010, 4294901760
    %4012 = vmatmul.f32.gmra.mxu0 %v4011
    %v4013 = vpop.f32.mrf.mxu0
    %v4014 = vadd.f32 0.0, %v4013
    %v4015 = vand.u32 %v3843, 4294901760
    %v4016 = vsub.f32 %v3843, %v4015
    %v4017 = vand.u32 %v4016, 4294901760
    %v4018 = vsub.f32 %v4016, %v4017
    %v4019 = vand.u32 %v4018, 4294901760
    %4020 = vmatmul.f32.gmra.mxu0 %v4019
    %v4021 = vpop.f32.mrf.mxu0
    %v4022 = vadd.f32 0.0, %v4021
    %v4023 = vand.u32 %v3846, 4294901760
    %v4024 = vsub.f32 %v3846, %v4023
    %v4025 = vand.u32 %v4024, 4294901760
    %v4026 = vsub.f32 %v4024, %v4025
    %v4027 = vand.u32 %v4026, 4294901760
    %4028 = vmatmul.f32.gmra.mxu0 %v4027
    %v4029 = vpop.f32.mrf.mxu0
    %v4030 = vadd.f32 0.0, %v4029
    %v4031 = vand.u32 %v3849, 4294901760
    %v4032 = vsub.f32 %v3849, %v4031
    %v4033 = vand.u32 %v4032, 4294901760
    %v4034 = vsub.f32 %v4032, %v4033
    %v4035 = vand.u32 %v4034, 4294901760
    %4036 = vmatmul.f32.gmra.mxu0 %v4035
    %v4037 = vpop.f32.mrf.mxu0
    %v4038 = vadd.f32 0.0, %v4037
    %v4039 = vand.u32 %v3852, 4294901760
    %v4040 = vsub.f32 %v3852, %v4039
    %v4041 = vand.u32 %v4040, 4294901760
    %v4042 = vsub.f32 %v4040, %v4041
    %v4043 = vand.u32 %v4042, 4294901760
    %4044 = vmatmul.f32.gmra.mxu0 %v4043
    %v4045 = vpop.f32.mrf.mxu0
    %v4046 = vadd.f32 0.0, %v4045
    %v4047 = vand.u32 %v3855, 4294901760
    %v4048 = vsub.f32 %v3855, %v4047
    %v4049 = vand.u32 %v4048, 4294901760
    %v4050 = vsub.f32 %v4048, %v4049
    %v4051 = vand.u32 %v4050, 4294901760
    %4052 = vmatmul.f32.gmra.mxu0 %v4051
    %v4053 = vpop.f32.mrf.mxu0
    %v4054 = vadd.f32 0.0, %v4053
    %v4055 = vand.u32 %v3858, 4294901760
    %v4056 = vsub.f32 %v3858, %v4055
    %v4057 = vand.u32 %v4056, 4294901760
    %v4058 = vsub.f32 %v4056, %v4057
    %v4059 = vand.u32 %v4058, 4294901760
    %4060 = vmatmul.f32.gmra.mxu0 %v4059
    %v4061 = vpop.f32.mrf.mxu0
    %v4062 = vadd.f32 0.0, %v4061
    %v4063 = vand.u32 %v3861, 4294901760
    %v4064 = vsub.f32 %v3861, %v4063
    %v4065 = vand.u32 %v4064, 4294901760
    %v4066 = vsub.f32 %v4064, %v4065
    %v4067 = vand.u32 %v4066, 4294901760
    %4068 = vmatmul.f32.gmra.mxu0 %v4067
    %v4069 = vpop.f32.mrf.mxu0
    %v4070 = vadd.f32 0.0, %v4069
    %v4071 = vand.u32 %v3864, 4294901760
    %v4072 = vsub.f32 %v3864, %v4071
    %v4073 = vand.u32 %v4072, 4294901760
    %v4074 = vsub.f32 %v4072, %v4073
    %v4075 = vand.u32 %v4074, 4294901760
    %4076 = vmatmul.f32.gmra.mxu0 %v4075
    %v4077 = vpop.f32.mrf.mxu0
    %v4078 = vadd.f32 0.0, %v4077
    %v4079 = vand.u32 %v3867, 4294901760
    %v4080 = vsub.f32 %v3867, %v4079
    %v4081 = vand.u32 %v4080, 4294901760
    %v4082 = vsub.f32 %v4080, %v4081
    %v4083 = vand.u32 %v4082, 4294901760
    %4084 = vmatmul.f32.gmra.mxu0 %v4083
    %v4085 = vpop.f32.mrf.mxu0
    %v4086 = vadd.f32 0.0, %v4085
    %v4087 = vand.u32 %v3870, 4294901760
    %v4088 = vsub.f32 %v3870, %v4087
    %v4089 = vand.u32 %v4088, 4294901760
    %v4090 = vsub.f32 %v4088, %v4089
    %v4091 = vand.u32 %v4090, 4294901760
    %4092 = vmatmul.f32.gmra.mxu0 %v4091
    %v4093 = vpop.f32.mrf.mxu0
    %v4094 = vadd.f32 0.0, %v4093
    %v4095 = vand.u32 %v3873, 4294901760
    %v4096 = vsub.f32 %v3873, %v4095
    %v4097 = vand.u32 %v4096, 4294901760
    %v4098 = vsub.f32 %v4096, %v4097
    %v4099 = vand.u32 %v4098, 4294901760
    %4100 = vmatmul.f32.gmra.mxu0 %v4099
    %v4101 = vpop.f32.mrf.mxu0
    %v4102 = vadd.f32 0.0, %v4101
    %v4103 = vand.u32 %v3876, 4294901760
    %v4104 = vsub.f32 %v3876, %v4103
    %v4105 = vand.u32 %v4104, 4294901760
    %v4106 = vsub.f32 %v4104, %v4105
    %v4107 = vand.u32 %v4106, 4294901760
    %4108 = vmatmul.f32.gmra.mxu0 %v4107
    %v4109 = vpop.f32.mrf.mxu0
    %v4110 = vadd.f32 0.0, %v4109
    %v4111 = vand.u32 %v3879, 4294901760
    %v4112 = vsub.f32 %v3879, %v4111
    %v4113 = vand.u32 %v4112, 4294901760
    %v4114 = vsub.f32 %v4112, %v4113
    %v4115 = vand.u32 %v4114, 4294901760
    %4116 = vmatmul.f32.gmra.mxu0 %v4115
    %v4117 = vpop.f32.mrf.mxu0
    %v4118 = vadd.f32 0.0, %v4117
    %v4119 = vand.u32 %v3882, 4294901760
    %v4120 = vsub.f32 %v3882, %v4119
    %v4121 = vand.u32 %v4120, 4294901760
    %v4122 = vsub.f32 %v4120, %v4121
    %v4123 = vand.u32 %v4122, 4294901760
    %4124 = vmatmul.f32.gmra.mxu0 %v4123
    %v4125 = vpop.f32.mrf.mxu0
    %v4126 = vadd.f32 0.0, %v4125
    %v4127 = vand.u32 %v3885, 4294901760
    %v4128 = vsub.f32 %v3885, %v4127
    %v4129 = vand.u32 %v4128, 4294901760
    %v4130 = vsub.f32 %v4128, %v4129
    %v4131 = vand.u32 %v4130, 4294901760
    %4132 = vmatmul.f32.gmra.mxu0 %v4131
    %v4133 = vpop.f32.mrf.mxu0
    %v4134 = vadd.f32 0.0, %v4133
    %4135 = vdwg.mxu0
    %4136 = vmatpush.msra.mxu0 0.0
    %4137 = vmatpush.msra.mxu0 0.0
    %4138 = vmatpush.msra.mxu0 0.0
    %4139 = vmatpush.msra.mxu0 0.0
    %4140 = vmatpush.msra.mxu0 0.0
    %4141 = vmatpush.msra.mxu0 0.0
    %4142 = vmatpush.msra.mxu0 0.0
    %4143 = vmatpush.msra.mxu0 0.0
    %4144 = vmatpush.msra.mxu0 0.0
    %4145 = vmatpush.msra.mxu0 0.0
    %4146 = vmatpush.msra.mxu0 0.0
    %4147 = vmatpush.msra.mxu0 0.0
    %4148 = vmatpush.msra.mxu0 0.0
    %4149 = vmatpush.msra.mxu0 0.0
    %v4150 = vand.u32 %v3888, 4294901760
    %v4151 = vsub.f32 %v3888, %v4150
    %v4152 = vand.u32 %v4151, 4294901760
    %v4153 = vsub.f32 %v4151, %v4152
    %v4154 = vand.u32 %v4153, 4294901760
    %4155 = vmatpush.msra.mxu0 %v4154
    %v4156 = vand.u32 %v3579, 4294901760
    %v4157 = vsub.f32 %v3579, %v4156
    %v4158 = vand.u32 %v4157, 4294901760
    %v4159 = vsub.f32 %v4157, %v4158
    %v4160 = vand.u32 %v4159, 4294901760
    %4161 = vmatpush.msra.mxu0 %v4160
    %v4162 = vand.u32 %v3804, 4294901760
    %4163 = vmatmul.f32.gmra.mxu0 %v4162
    %v4164 = vpop.f32.mrf.mxu0
    %v4165 = vadd.f32 %v3918, %v4164
    %v4166 = vand.u32 %v3807, 4294901760
    %4167 = vmatmul.f32.gmra.mxu0 %v4166
    %v4168 = vpop.f32.mrf.mxu0
    %v4169 = vadd.f32 %v3926, %v4168
    %v4170 = vand.u32 %v3810, 4294901760
    %4171 = vmatmul.f32.gmra.mxu0 %v4170
    %v4172 = vpop.f32.mrf.mxu0
    %v4173 = vadd.f32 %v3934, %v4172
    %v4174 = vand.u32 %v3813, 4294901760
    %4175 = vmatmul.f32.gmra.mxu0 %v4174
    %v4176 = vpop.f32.mrf.mxu0
    %v4177 = vadd.f32 %v3942, %v4176
    %v4178 = vand.u32 %v3816, 4294901760
    %4179 = vmatmul.f32.gmra.mxu0 %v4178
    %v4180 = vpop.f32.mrf.mxu0
    %v4181 = vadd.f32 %v3950, %v4180
    %v4182 = vand.u32 %v3819, 4294901760
    %4183 = vmatmul.f32.gmra.mxu0 %v4182
    %v4184 = vpop.f32.mrf.mxu0
    %v4185 = vadd.f32 %v3958, %v4184
    %v4186 = vand.u32 %v3822, 4294901760
    %4187 = vmatmul.f32.gmra.mxu0 %v4186
    %v4188 = vpop.f32.mrf.mxu0
    %v4189 = vadd.f32 %v3966, %v4188
    %v4190 = vand.u32 %v3825, 4294901760
    %4191 = vmatmul.f32.gmra.mxu0 %v4190
    %v4192 = vpop.f32.mrf.mxu0
    %v4193 = vadd.f32 %v3974, %v4192
    %v4194 = vand.u32 %v3828, 4294901760
    %4195 = vmatmul.f32.gmra.mxu0 %v4194
    %v4196 = vpop.f32.mrf.mxu0
    %v4197 = vadd.f32 %v3982, %v4196
    %v4198 = vand.u32 %v3831, 4294901760
    %4199 = vmatmul.f32.gmra.mxu0 %v4198
    %v4200 = vpop.f32.mrf.mxu0
    %v4201 = vadd.f32 %v3990, %v4200
    %v4202 = vand.u32 %v3834, 4294901760
    %4203 = vmatmul.f32.gmra.mxu0 %v4202
    %v4204 = vpop.f32.mrf.mxu0
    %v4205 = vadd.f32 %v3998, %v4204
    %v4206 = vand.u32 %v3837, 4294901760
    %4207 = vmatmul.f32.gmra.mxu0 %v4206
    %v4208 = vpop.f32.mrf.mxu0
    %v4209 = vadd.f32 %v4006, %v4208
    %v4210 = vand.u32 %v3840, 4294901760
    %4211 = vmatmul.f32.gmra.mxu0 %v4210
    %v4212 = vpop.f32.mrf.mxu0
    %v4213 = vadd.f32 %v4014, %v4212
    %v4214 = vand.u32 %v3843, 4294901760
    %4215 = vmatmul.f32.gmra.mxu0 %v4214
    %v4216 = vpop.f32.mrf.mxu0
    %v4217 = vadd.f32 %v4022, %v4216
    %v4218 = vand.u32 %v3846, 4294901760
    %4219 = vmatmul.f32.gmra.mxu0 %v4218
    %v4220 = vpop.f32.mrf.mxu0
    %v4221 = vadd.f32 %v4030, %v4220
    %v4222 = vand.u32 %v3849, 4294901760
    %4223 = vmatmul.f32.gmra.mxu0 %v4222
    %v4224 = vpop.f32.mrf.mxu0
    %v4225 = vadd.f32 %v4038, %v4224
    %v4226 = vand.u32 %v3852, 4294901760
    %4227 = vmatmul.f32.gmra.mxu0 %v4226
    %v4228 = vpop.f32.mrf.mxu0
    %v4229 = vadd.f32 %v4046, %v4228
    %v4230 = vand.u32 %v3855, 4294901760
    %4231 = vmatmul.f32.gmra.mxu0 %v4230
    %v4232 = vpop.f32.mrf.mxu0
    %v4233 = vadd.f32 %v4054, %v4232
    %v4234 = vand.u32 %v3858, 4294901760
    %4235 = vmatmul.f32.gmra.mxu0 %v4234
    %v4236 = vpop.f32.mrf.mxu0
    %v4237 = vadd.f32 %v4062, %v4236
    %v4238 = vand.u32 %v3861, 4294901760
    %4239 = vmatmul.f32.gmra.mxu0 %v4238
    %v4240 = vpop.f32.mrf.mxu0
    %v4241 = vadd.f32 %v4070, %v4240
    %v4242 = vand.u32 %v3864, 4294901760
    %4243 = vmatmul.f32.gmra.mxu0 %v4242
    %v4244 = vpop.f32.mrf.mxu0
    %v4245 = vadd.f32 %v4078, %v4244
    %v4246 = vand.u32 %v3867, 4294901760
    %4247 = vmatmul.f32.gmra.mxu0 %v4246
    %v4248 = vpop.f32.mrf.mxu0
    %v4249 = vadd.f32 %v4086, %v4248
    %v4250 = vand.u32 %v3870, 4294901760
    %4251 = vmatmul.f32.gmra.mxu0 %v4250
    %v4252 = vpop.f32.mrf.mxu0
    %v4253 = vadd.f32 %v4094, %v4252
    %v4254 = vand.u32 %v3873, 4294901760
    %4255 = vmatmul.f32.gmra.mxu0 %v4254
    %v4256 = vpop.f32.mrf.mxu0
    %v4257 = vadd.f32 %v4102, %v4256
    %v4258 = vand.u32 %v3876, 4294901760
    %4259 = vmatmul.f32.gmra.mxu0 %v4258
    %v4260 = vpop.f32.mrf.mxu0
    %v4261 = vadd.f32 %v4110, %v4260
    %v4262 = vand.u32 %v3879, 4294901760
    %4263 = vmatmul.f32.gmra.mxu0 %v4262
    %v4264 = vpop.f32.mrf.mxu0
    %v4265 = vadd.f32 %v4118, %v4264
    %v4266 = vand.u32 %v3882, 4294901760
    %4267 = vmatmul.f32.gmra.mxu0 %v4266
    %v4268 = vpop.f32.mrf.mxu0
    %v4269 = vadd.f32 %v4126, %v4268
    %v4270 = vand.u32 %v3885, 4294901760
    %4271 = vmatmul.f32.gmra.mxu0 %v4270
    %v4272 = vpop.f32.mrf.mxu0
    %v4273 = vadd.f32 %v4134, %v4272
    %4274 = vdwg.mxu0
    %4275 = vmatpush.msra.mxu0 0.0
    %4276 = vmatpush.msra.mxu0 0.0
    %4277 = vmatpush.msra.mxu0 0.0
    %4278 = vmatpush.msra.mxu0 0.0
    %4279 = vmatpush.msra.mxu0 0.0
    %4280 = vmatpush.msra.mxu0 0.0
    %4281 = vmatpush.msra.mxu0 0.0
    %4282 = vmatpush.msra.mxu0 0.0
    %4283 = vmatpush.msra.mxu0 0.0
    %4284 = vmatpush.msra.mxu0 0.0
    %4285 = vmatpush.msra.mxu0 0.0
    %4286 = vmatpush.msra.mxu0 0.0
    %4287 = vmatpush.msra.mxu0 0.0
    %4288 = vmatpush.msra.mxu0 0.0
    %v4289 = vand.u32 %v3888, 4294901760
    %v4290 = vsub.f32 %v3888, %v4289
    %4291 = vmatpush.msra.mxu0 %v4290
    %v4292 = vand.u32 %v3579, 4294901760
    %v4293 = vsub.f32 %v3579, %v4292
    %4294 = vmatpush.msra.mxu0 %v4293
    %v4295 = vand.u32 %v3804, 4294901760
    %v4296 = vsub.f32 %v3804, %v4295
    %4297 = vmatmul.f32.gmra.mxu0 %v4296
    %v4298 = vpop.f32.mrf.mxu0
    %v4299 = vadd.f32 %v4165, %v4298
    %v4300 = vand.u32 %v3807, 4294901760
    %v4301 = vsub.f32 %v3807, %v4300
    %4302 = vmatmul.f32.gmra.mxu0 %v4301
    %v4303 = vpop.f32.mrf.mxu0
    %v4304 = vadd.f32 %v4169, %v4303
    %v4305 = vand.u32 %v3810, 4294901760
    %v4306 = vsub.f32 %v3810, %v4305
    %4307 = vmatmul.f32.gmra.mxu0 %v4306
    %v4308 = vpop.f32.mrf.mxu0
    %v4309 = vadd.f32 %v4173, %v4308
    %v4310 = vand.u32 %v3813, 4294901760
    %v4311 = vsub.f32 %v3813, %v4310
    %4312 = vmatmul.f32.gmra.mxu0 %v4311
    %v4313 = vpop.f32.mrf.mxu0
    %v4314 = vadd.f32 %v4177, %v4313
    %v4315 = vand.u32 %v3816, 4294901760
    %v4316 = vsub.f32 %v3816, %v4315
    %4317 = vmatmul.f32.gmra.mxu0 %v4316
    %v4318 = vpop.f32.mrf.mxu0
    %v4319 = vadd.f32 %v4181, %v4318
    %v4320 = vand.u32 %v3819, 4294901760
    %v4321 = vsub.f32 %v3819, %v4320
    %4322 = vmatmul.f32.gmra.mxu0 %v4321
    %v4323 = vpop.f32.mrf.mxu0
    %v4324 = vadd.f32 %v4185, %v4323
    %v4325 = vand.u32 %v3822, 4294901760
    %v4326 = vsub.f32 %v3822, %v4325
    %4327 = vmatmul.f32.gmra.mxu0 %v4326
    %v4328 = vpop.f32.mrf.mxu0
    %v4329 = vadd.f32 %v4189, %v4328
    %v4330 = vand.u32 %v3825, 4294901760
    %v4331 = vsub.f32 %v3825, %v4330
    %4332 = vmatmul.f32.gmra.mxu0 %v4331
    %v4333 = vpop.f32.mrf.mxu0
    %v4334 = vadd.f32 %v4193, %v4333
    %v4335 = vand.u32 %v3828, 4294901760
    %v4336 = vsub.f32 %v3828, %v4335
    %4337 = vmatmul.f32.gmra.mxu0 %v4336
    %v4338 = vpop.f32.mrf.mxu0
    %v4339 = vadd.f32 %v4197, %v4338
    %v4340 = vand.u32 %v3831, 4294901760
    %v4341 = vsub.f32 %v3831, %v4340
    %4342 = vmatmul.f32.gmra.mxu0 %v4341
    %v4343 = vpop.f32.mrf.mxu0
    %v4344 = vadd.f32 %v4201, %v4343
    %v4345 = vand.u32 %v3834, 4294901760
    %v4346 = vsub.f32 %v3834, %v4345
    %4347 = vmatmul.f32.gmra.mxu0 %v4346
    %v4348 = vpop.f32.mrf.mxu0
    %v4349 = vadd.f32 %v4205, %v4348
    %v4350 = vand.u32 %v3837, 4294901760
    %v4351 = vsub.f32 %v3837, %v4350
    %4352 = vmatmul.f32.gmra.mxu0 %v4351
    %v4353 = vpop.f32.mrf.mxu0
    %v4354 = vadd.f32 %v4209, %v4353
    %v4355 = vand.u32 %v3840, 4294901760
    %v4356 = vsub.f32 %v3840, %v4355
    %4357 = vmatmul.f32.gmra.mxu0 %v4356
    %v4358 = vpop.f32.mrf.mxu0
    %v4359 = vadd.f32 %v4213, %v4358
    %v4360 = vand.u32 %v3843, 4294901760
    %v4361 = vsub.f32 %v3843, %v4360
    %4362 = vmatmul.f32.gmra.mxu0 %v4361
    %v4363 = vpop.f32.mrf.mxu0
    %v4364 = vadd.f32 %v4217, %v4363
    %v4365 = vand.u32 %v3846, 4294901760
    %v4366 = vsub.f32 %v3846, %v4365
    %4367 = vmatmul.f32.gmra.mxu0 %v4366
    %v4368 = vpop.f32.mrf.mxu0
    %v4369 = vadd.f32 %v4221, %v4368
    %v4370 = vand.u32 %v3849, 4294901760
    %v4371 = vsub.f32 %v3849, %v4370
    %4372 = vmatmul.f32.gmra.mxu0 %v4371
    %v4373 = vpop.f32.mrf.mxu0
    %v4374 = vadd.f32 %v4225, %v4373
    %v4375 = vand.u32 %v3852, 4294901760
    %v4376 = vsub.f32 %v3852, %v4375
    %4377 = vmatmul.f32.gmra.mxu0 %v4376
    %v4378 = vpop.f32.mrf.mxu0
    %v4379 = vadd.f32 %v4229, %v4378
    %v4380 = vand.u32 %v3855, 4294901760
    %v4381 = vsub.f32 %v3855, %v4380
    %4382 = vmatmul.f32.gmra.mxu0 %v4381
    %v4383 = vpop.f32.mrf.mxu0
    %v4384 = vadd.f32 %v4233, %v4383
    %v4385 = vand.u32 %v3858, 4294901760
    %v4386 = vsub.f32 %v3858, %v4385
    %4387 = vmatmul.f32.gmra.mxu0 %v4386
    %v4388 = vpop.f32.mrf.mxu0
    %v4389 = vadd.f32 %v4237, %v4388
    %v4390 = vand.u32 %v3861, 4294901760
    %v4391 = vsub.f32 %v3861, %v4390
    %4392 = vmatmul.f32.gmra.mxu0 %v4391
    %v4393 = vpop.f32.mrf.mxu0
    %v4394 = vadd.f32 %v4241, %v4393
    %v4395 = vand.u32 %v3864, 4294901760
    %v4396 = vsub.f32 %v3864, %v4395
    %4397 = vmatmul.f32.gmra.mxu0 %v4396
    %v4398 = vpop.f32.mrf.mxu0
    %v4399 = vadd.f32 %v4245, %v4398
    %v4400 = vand.u32 %v3867, 4294901760
    %v4401 = vsub.f32 %v3867, %v4400
    %4402 = vmatmul.f32.gmra.mxu0 %v4401
    %v4403 = vpop.f32.mrf.mxu0
    %v4404 = vadd.f32 %v4249, %v4403
    %v4405 = vand.u32 %v3870, 4294901760
    %v4406 = vsub.f32 %v3870, %v4405
    %4407 = vmatmul.f32.gmra.mxu0 %v4406
    %v4408 = vpop.f32.mrf.mxu0
    %v4409 = vadd.f32 %v4253, %v4408
    %v4410 = vand.u32 %v3873, 4294901760
    %v4411 = vsub.f32 %v3873, %v4410
    %4412 = vmatmul.f32.gmra.mxu0 %v4411
    %v4413 = vpop.f32.mrf.mxu0
    %v4414 = vadd.f32 %v4257, %v4413
    %v4415 = vand.u32 %v3876, 4294901760
    %v4416 = vsub.f32 %v3876, %v4415
    %4417 = vmatmul.f32.gmra.mxu0 %v4416
    %v4418 = vpop.f32.mrf.mxu0
    %v4419 = vadd.f32 %v4261, %v4418
    %v4420 = vand.u32 %v3879, 4294901760
    %v4421 = vsub.f32 %v3879, %v4420
    %4422 = vmatmul.f32.gmra.mxu0 %v4421
    %v4423 = vpop.f32.mrf.mxu0
    %v4424 = vadd.f32 %v4265, %v4423
    %v4425 = vand.u32 %v3882, 4294901760
    %v4426 = vsub.f32 %v3882, %v4425
    %4427 = vmatmul.f32.gmra.mxu0 %v4426
    %v4428 = vpop.f32.mrf.mxu0
    %v4429 = vadd.f32 %v4269, %v4428
    %v4430 = vand.u32 %v3885, 4294901760
    %v4431 = vsub.f32 %v3885, %v4430
    %4432 = vmatmul.f32.gmra.mxu0 %v4431
    %v4433 = vpop.f32.mrf.mxu0
    %v4434 = vadd.f32 %v4273, %v4433
    %4435 = vdwg.mxu0
    %4436 = vmatpush.msra.mxu0 0.0
    %4437 = vmatpush.msra.mxu0 0.0
    %4438 = vmatpush.msra.mxu0 0.0
    %4439 = vmatpush.msra.mxu0 0.0
    %4440 = vmatpush.msra.mxu0 0.0
    %4441 = vmatpush.msra.mxu0 0.0
    %4442 = vmatpush.msra.mxu0 0.0
    %4443 = vmatpush.msra.mxu0 0.0
    %4444 = vmatpush.msra.mxu0 0.0
    %4445 = vmatpush.msra.mxu0 0.0
    %4446 = vmatpush.msra.mxu0 0.0
    %4447 = vmatpush.msra.mxu0 0.0
    %4448 = vmatpush.msra.mxu0 0.0
    %4449 = vmatpush.msra.mxu0 0.0
    %v4450 = vand.u32 %v3888, 4294901760
    %4451 = vmatpush.msra.mxu0 %v4450
    %v4452 = vand.u32 %v3579, 4294901760
    %4453 = vmatpush.msra.mxu0 %v4452
    %v4454 = vand.u32 %v3804, 4294901760
    %v4455 = vsub.f32 %v3804, %v4454
    %v4456 = vand.u32 %v4455, 4294901760
    %4457 = vmatmul.f32.gmra.mxu0 %v4456
    %v4458 = vpop.f32.mrf.mxu0
    %v4459 = vadd.f32 %v4299, %v4458
    %v4460 = vand.u32 %v3807, 4294901760
    %v4461 = vsub.f32 %v3807, %v4460
    %v4462 = vand.u32 %v4461, 4294901760
    %4463 = vmatmul.f32.gmra.mxu0 %v4462
    %v4464 = vpop.f32.mrf.mxu0
    %v4465 = vadd.f32 %v4304, %v4464
    %v4466 = vand.u32 %v3810, 4294901760
    %v4467 = vsub.f32 %v3810, %v4466
    %v4468 = vand.u32 %v4467, 4294901760
    %4469 = vmatmul.f32.gmra.mxu0 %v4468
    %v4470 = vpop.f32.mrf.mxu0
    %v4471 = vadd.f32 %v4309, %v4470
    %v4472 = vand.u32 %v3813, 4294901760
    %v4473 = vsub.f32 %v3813, %v4472
    %v4474 = vand.u32 %v4473, 4294901760
    %4475 = vmatmul.f32.gmra.mxu0 %v4474
    %v4476 = vpop.f32.mrf.mxu0
    %v4477 = vadd.f32 %v4314, %v4476
    %v4478 = vand.u32 %v3816, 4294901760
    %v4479 = vsub.f32 %v3816, %v4478
    %v4480 = vand.u32 %v4479, 4294901760
    %4481 = vmatmul.f32.gmra.mxu0 %v4480
    %v4482 = vpop.f32.mrf.mxu0
    %v4483 = vadd.f32 %v4319, %v4482
    %v4484 = vand.u32 %v3819, 4294901760
    %v4485 = vsub.f32 %v3819, %v4484
    %v4486 = vand.u32 %v4485, 4294901760
    %4487 = vmatmul.f32.gmra.mxu0 %v4486
    %v4488 = vpop.f32.mrf.mxu0
    %v4489 = vadd.f32 %v4324, %v4488
    %v4490 = vand.u32 %v3822, 4294901760
    %v4491 = vsub.f32 %v3822, %v4490
    %v4492 = vand.u32 %v4491, 4294901760
    %4493 = vmatmul.f32.gmra.mxu0 %v4492
    %v4494 = vpop.f32.mrf.mxu0
    %v4495 = vadd.f32 %v4329, %v4494
    %v4496 = vand.u32 %v3825, 4294901760
    %v4497 = vsub.f32 %v3825, %v4496
    %v4498 = vand.u32 %v4497, 4294901760
    %4499 = vmatmul.f32.gmra.mxu0 %v4498
    %v4500 = vpop.f32.mrf.mxu0
    %v4501 = vadd.f32 %v4334, %v4500
    %v4502 = vand.u32 %v3828, 4294901760
    %v4503 = vsub.f32 %v3828, %v4502
    %v4504 = vand.u32 %v4503, 4294901760
    %4505 = vmatmul.f32.gmra.mxu0 %v4504
    %v4506 = vpop.f32.mrf.mxu0
    %v4507 = vadd.f32 %v4339, %v4506
    %v4508 = vand.u32 %v3831, 4294901760
    %v4509 = vsub.f32 %v3831, %v4508
    %v4510 = vand.u32 %v4509, 4294901760
    %4511 = vmatmul.f32.gmra.mxu0 %v4510
    %v4512 = vpop.f32.mrf.mxu0
    %v4513 = vadd.f32 %v4344, %v4512
    %v4514 = vand.u32 %v3834, 4294901760
    %v4515 = vsub.f32 %v3834, %v4514
    %v4516 = vand.u32 %v4515, 4294901760
    %4517 = vmatmul.f32.gmra.mxu0 %v4516
    %v4518 = vpop.f32.mrf.mxu0
    %v4519 = vadd.f32 %v4349, %v4518
    %v4520 = vand.u32 %v3837, 4294901760
    %v4521 = vsub.f32 %v3837, %v4520
    %v4522 = vand.u32 %v4521, 4294901760
    %4523 = vmatmul.f32.gmra.mxu0 %v4522
    %v4524 = vpop.f32.mrf.mxu0
    %v4525 = vadd.f32 %v4354, %v4524
    %v4526 = vand.u32 %v3840, 4294901760
    %v4527 = vsub.f32 %v3840, %v4526
    %v4528 = vand.u32 %v4527, 4294901760
    %4529 = vmatmul.f32.gmra.mxu0 %v4528
    %v4530 = vpop.f32.mrf.mxu0
    %v4531 = vadd.f32 %v4359, %v4530
    %v4532 = vand.u32 %v3843, 4294901760
    %v4533 = vsub.f32 %v3843, %v4532
    %v4534 = vand.u32 %v4533, 4294901760
    %4535 = vmatmul.f32.gmra.mxu0 %v4534
    %v4536 = vpop.f32.mrf.mxu0
    %v4537 = vadd.f32 %v4364, %v4536
    %v4538 = vand.u32 %v3846, 4294901760
    %v4539 = vsub.f32 %v3846, %v4538
    %v4540 = vand.u32 %v4539, 4294901760
    %4541 = vmatmul.f32.gmra.mxu0 %v4540
    %v4542 = vpop.f32.mrf.mxu0
    %v4543 = vadd.f32 %v4369, %v4542
    %v4544 = vand.u32 %v3849, 4294901760
    %v4545 = vsub.f32 %v3849, %v4544
    %v4546 = vand.u32 %v4545, 4294901760
    %4547 = vmatmul.f32.gmra.mxu0 %v4546
    %v4548 = vpop.f32.mrf.mxu0
    %v4549 = vadd.f32 %v4374, %v4548
    %v4550 = vand.u32 %v3852, 4294901760
    %v4551 = vsub.f32 %v3852, %v4550
    %v4552 = vand.u32 %v4551, 4294901760
    %4553 = vmatmul.f32.gmra.mxu0 %v4552
    %v4554 = vpop.f32.mrf.mxu0
    %v4555 = vadd.f32 %v4379, %v4554
    %v4556 = vand.u32 %v3855, 4294901760
    %v4557 = vsub.f32 %v3855, %v4556
    %v4558 = vand.u32 %v4557, 4294901760
    %4559 = vmatmul.f32.gmra.mxu0 %v4558
    %v4560 = vpop.f32.mrf.mxu0
    %v4561 = vadd.f32 %v4384, %v4560
    %v4562 = vand.u32 %v3858, 4294901760
    %v4563 = vsub.f32 %v3858, %v4562
    %v4564 = vand.u32 %v4563, 4294901760
    %4565 = vmatmul.f32.gmra.mxu0 %v4564
    %v4566 = vpop.f32.mrf.mxu0
    %v4567 = vadd.f32 %v4389, %v4566
    %v4568 = vand.u32 %v3861, 4294901760
    %v4569 = vsub.f32 %v3861, %v4568
    %v4570 = vand.u32 %v4569, 4294901760
    %4571 = vmatmul.f32.gmra.mxu0 %v4570
    %v4572 = vpop.f32.mrf.mxu0
    %v4573 = vadd.f32 %v4394, %v4572
    %v4574 = vand.u32 %v3864, 4294901760
    %v4575 = vsub.f32 %v3864, %v4574
    %v4576 = vand.u32 %v4575, 4294901760
    %4577 = vmatmul.f32.gmra.mxu0 %v4576
    %v4578 = vpop.f32.mrf.mxu0
    %v4579 = vadd.f32 %v4399, %v4578
    %v4580 = vand.u32 %v3867, 4294901760
    %v4581 = vsub.f32 %v3867, %v4580
    %v4582 = vand.u32 %v4581, 4294901760
    %4583 = vmatmul.f32.gmra.mxu0 %v4582
    %v4584 = vpop.f32.mrf.mxu0
    %v4585 = vadd.f32 %v4404, %v4584
    %v4586 = vand.u32 %v3870, 4294901760
    %v4587 = vsub.f32 %v3870, %v4586
    %v4588 = vand.u32 %v4587, 4294901760
    %4589 = vmatmul.f32.gmra.mxu0 %v4588
    %v4590 = vpop.f32.mrf.mxu0
    %v4591 = vadd.f32 %v4409, %v4590
    %v4592 = vand.u32 %v3873, 4294901760
    %v4593 = vsub.f32 %v3873, %v4592
    %v4594 = vand.u32 %v4593, 4294901760
    %4595 = vmatmul.f32.gmra.mxu0 %v4594
    %v4596 = vpop.f32.mrf.mxu0
    %v4597 = vadd.f32 %v4414, %v4596
    %v4598 = vand.u32 %v3876, 4294901760
    %v4599 = vsub.f32 %v3876, %v4598
    %v4600 = vand.u32 %v4599, 4294901760
    %4601 = vmatmul.f32.gmra.mxu0 %v4600
    %v4602 = vpop.f32.mrf.mxu0
    %v4603 = vadd.f32 %v4419, %v4602
    %v4604 = vand.u32 %v3879, 4294901760
    %v4605 = vsub.f32 %v3879, %v4604
    %v4606 = vand.u32 %v4605, 4294901760
    %4607 = vmatmul.f32.gmra.mxu0 %v4606
    %v4608 = vpop.f32.mrf.mxu0
    %v4609 = vadd.f32 %v4424, %v4608
    %v4610 = vand.u32 %v3882, 4294901760
    %v4611 = vsub.f32 %v3882, %v4610
    %v4612 = vand.u32 %v4611, 4294901760
    %4613 = vmatmul.f32.gmra.mxu0 %v4612
    %v4614 = vpop.f32.mrf.mxu0
    %v4615 = vadd.f32 %v4429, %v4614
    %v4616 = vand.u32 %v3885, 4294901760
    %v4617 = vsub.f32 %v3885, %v4616
    %v4618 = vand.u32 %v4617, 4294901760
    %4619 = vmatmul.f32.gmra.mxu0 %v4618
    %v4620 = vpop.f32.mrf.mxu0
    %v4621 = vadd.f32 %v4434, %v4620
    %4622 = vdwg.mxu0
    %4623 = vmatpush.msra.mxu0 0.0
    %4624 = vmatpush.msra.mxu0 0.0
    %4625 = vmatpush.msra.mxu0 0.0
    %4626 = vmatpush.msra.mxu0 0.0
    %4627 = vmatpush.msra.mxu0 0.0
    %4628 = vmatpush.msra.mxu0 0.0
    %4629 = vmatpush.msra.mxu0 0.0
    %4630 = vmatpush.msra.mxu0 0.0
    %4631 = vmatpush.msra.mxu0 0.0
    %4632 = vmatpush.msra.mxu0 0.0
    %4633 = vmatpush.msra.mxu0 0.0
    %4634 = vmatpush.msra.mxu0 0.0
    %4635 = vmatpush.msra.mxu0 0.0
    %4636 = vmatpush.msra.mxu0 0.0
    %v4637 = vand.u32 %v3888, 4294901760
    %v4638 = vsub.f32 %v3888, %v4637
    %v4639 = vand.u32 %v4638, 4294901760
    %4640 = vmatpush.msra.mxu0 %v4639
    %v4641 = vand.u32 %v3579, 4294901760
    %v4642 = vsub.f32 %v3579, %v4641
    %v4643 = vand.u32 %v4642, 4294901760
    %4644 = vmatpush.msra.mxu0 %v4643
    %v4645 = vand.u32 %v3804, 4294901760
    %4646 = vmatmul.f32.gmra.mxu0 %v4645
    %v4647 = vpop.f32.mrf.mxu0
    %v4648 = vadd.f32 %v4459, %v4647
    %v4649 = vand.u32 %v3807, 4294901760
    %4650 = vmatmul.f32.gmra.mxu0 %v4649
    %v4651 = vpop.f32.mrf.mxu0
    %v4652 = vadd.f32 %v4465, %v4651
    %v4653 = vand.u32 %v3810, 4294901760
    %4654 = vmatmul.f32.gmra.mxu0 %v4653
    %v4655 = vpop.f32.mrf.mxu0
    %v4656 = vadd.f32 %v4471, %v4655
    %v4657 = vand.u32 %v3813, 4294901760
    %4658 = vmatmul.f32.gmra.mxu0 %v4657
    %v4659 = vpop.f32.mrf.mxu0
    %v4660 = vadd.f32 %v4477, %v4659
    %v4661 = vand.u32 %v3816, 4294901760
    %4662 = vmatmul.f32.gmra.mxu0 %v4661
    %v4663 = vpop.f32.mrf.mxu0
    %v4664 = vadd.f32 %v4483, %v4663
    %v4665 = vand.u32 %v3819, 4294901760
    %4666 = vmatmul.f32.gmra.mxu0 %v4665
    %v4667 = vpop.f32.mrf.mxu0
    %v4668 = vadd.f32 %v4489, %v4667
    %v4669 = vand.u32 %v3822, 4294901760
    %4670 = vmatmul.f32.gmra.mxu0 %v4669
    %v4671 = vpop.f32.mrf.mxu0
    %v4672 = vadd.f32 %v4495, %v4671
    %v4673 = vand.u32 %v3825, 4294901760
    %4674 = vmatmul.f32.gmra.mxu0 %v4673
    %v4675 = vpop.f32.mrf.mxu0
    %v4676 = vadd.f32 %v4501, %v4675
    %v4677 = vand.u32 %v3828, 4294901760
    %4678 = vmatmul.f32.gmra.mxu0 %v4677
    %v4679 = vpop.f32.mrf.mxu0
    %v4680 = vadd.f32 %v4507, %v4679
    %v4681 = vand.u32 %v3831, 4294901760
    %4682 = vmatmul.f32.gmra.mxu0 %v4681
    %v4683 = vpop.f32.mrf.mxu0
    %v4684 = vadd.f32 %v4513, %v4683
    %v4685 = vand.u32 %v3834, 4294901760
    %4686 = vmatmul.f32.gmra.mxu0 %v4685
    %v4687 = vpop.f32.mrf.mxu0
    %v4688 = vadd.f32 %v4519, %v4687
    %v4689 = vand.u32 %v3837, 4294901760
    %4690 = vmatmul.f32.gmra.mxu0 %v4689
    %v4691 = vpop.f32.mrf.mxu0
    %v4692 = vadd.f32 %v4525, %v4691
    %v4693 = vand.u32 %v3840, 4294901760
    %4694 = vmatmul.f32.gmra.mxu0 %v4693
    %v4695 = vpop.f32.mrf.mxu0
    %v4696 = vadd.f32 %v4531, %v4695
    %v4697 = vand.u32 %v3843, 4294901760
    %4698 = vmatmul.f32.gmra.mxu0 %v4697
    %v4699 = vpop.f32.mrf.mxu0
    %v4700 = vadd.f32 %v4537, %v4699
    %v4701 = vand.u32 %v3846, 4294901760
    %4702 = vmatmul.f32.gmra.mxu0 %v4701
    %v4703 = vpop.f32.mrf.mxu0
    %v4704 = vadd.f32 %v4543, %v4703
    %v4705 = vand.u32 %v3849, 4294901760
    %4706 = vmatmul.f32.gmra.mxu0 %v4705
    %v4707 = vpop.f32.mrf.mxu0
    %v4708 = vadd.f32 %v4549, %v4707
    %v4709 = vand.u32 %v3852, 4294901760
    %4710 = vmatmul.f32.gmra.mxu0 %v4709
    %v4711 = vpop.f32.mrf.mxu0
    %v4712 = vadd.f32 %v4555, %v4711
    %v4713 = vand.u32 %v3855, 4294901760
    %4714 = vmatmul.f32.gmra.mxu0 %v4713
    %v4715 = vpop.f32.mrf.mxu0
    %v4716 = vadd.f32 %v4561, %v4715
    %v4717 = vand.u32 %v3858, 4294901760
    %4718 = vmatmul.f32.gmra.mxu0 %v4717
    %v4719 = vpop.f32.mrf.mxu0
    %v4720 = vadd.f32 %v4567, %v4719
    %v4721 = vand.u32 %v3861, 4294901760
    %4722 = vmatmul.f32.gmra.mxu0 %v4721
    %v4723 = vpop.f32.mrf.mxu0
    %v4724 = vadd.f32 %v4573, %v4723
    %v4725 = vand.u32 %v3864, 4294901760
    %4726 = vmatmul.f32.gmra.mxu0 %v4725
    %v4727 = vpop.f32.mrf.mxu0
    %v4728 = vadd.f32 %v4579, %v4727
    %v4729 = vand.u32 %v3867, 4294901760
    %4730 = vmatmul.f32.gmra.mxu0 %v4729
    %v4731 = vpop.f32.mrf.mxu0
    %v4732 = vadd.f32 %v4585, %v4731
    %v4733 = vand.u32 %v3870, 4294901760
    %4734 = vmatmul.f32.gmra.mxu0 %v4733
    %v4735 = vpop.f32.mrf.mxu0
    %v4736 = vadd.f32 %v4591, %v4735
    %v4737 = vand.u32 %v3873, 4294901760
    %4738 = vmatmul.f32.gmra.mxu0 %v4737
    %v4739 = vpop.f32.mrf.mxu0
    %v4740 = vadd.f32 %v4597, %v4739
    %v4741 = vand.u32 %v3876, 4294901760
    %4742 = vmatmul.f32.gmra.mxu0 %v4741
    %v4743 = vpop.f32.mrf.mxu0
    %v4744 = vadd.f32 %v4603, %v4743
    %v4745 = vand.u32 %v3879, 4294901760
    %4746 = vmatmul.f32.gmra.mxu0 %v4745
    %v4747 = vpop.f32.mrf.mxu0
    %v4748 = vadd.f32 %v4609, %v4747
    %v4749 = vand.u32 %v3882, 4294901760
    %4750 = vmatmul.f32.gmra.mxu0 %v4749
    %v4751 = vpop.f32.mrf.mxu0
    %v4752 = vadd.f32 %v4615, %v4751
    %v4753 = vand.u32 %v3885, 4294901760
    %4754 = vmatmul.f32.gmra.mxu0 %v4753
    %v4755 = vpop.f32.mrf.mxu0
    %v4756 = vadd.f32 %v4621, %v4755
    %4757 = vdwg.mxu0
    %4758 = vmatpush.msra.mxu0 0.0
    %4759 = vmatpush.msra.mxu0 0.0
    %4760 = vmatpush.msra.mxu0 0.0
    %4761 = vmatpush.msra.mxu0 0.0
    %4762 = vmatpush.msra.mxu0 0.0
    %4763 = vmatpush.msra.mxu0 0.0
    %4764 = vmatpush.msra.mxu0 0.0
    %4765 = vmatpush.msra.mxu0 0.0
    %4766 = vmatpush.msra.mxu0 0.0
    %4767 = vmatpush.msra.mxu0 0.0
    %4768 = vmatpush.msra.mxu0 0.0
    %4769 = vmatpush.msra.mxu0 0.0
    %4770 = vmatpush.msra.mxu0 0.0
    %4771 = vmatpush.msra.mxu0 0.0
    %v4772 = vand.u32 %v3888, 4294901760
    %4773 = vmatpush.msra.mxu0 %v4772
    %v4774 = vand.u32 %v3579, 4294901760
    %4775 = vmatpush.msra.mxu0 %v4774
    %v4776 = vand.u32 %v3804, 4294901760
    %4777 = vmatmul.f32.gmra.mxu0 %v4776
    %v4778 = vpop.f32.mrf.mxu0
    %v4779 = vadd.f32 %v4648, %v4778
    %v4780 = vand.u32 %v3807, 4294901760
    %4781 = vmatmul.f32.gmra.mxu0 %v4780
    %v4782 = vpop.f32.mrf.mxu0
    %v4783 = vadd.f32 %v4652, %v4782
    %v4784 = vand.u32 %v3810, 4294901760
    %4785 = vmatmul.f32.gmra.mxu0 %v4784
    %v4786 = vpop.f32.mrf.mxu0
    %v4787 = vadd.f32 %v4656, %v4786
    %v4788 = vand.u32 %v3813, 4294901760
    %4789 = vmatmul.f32.gmra.mxu0 %v4788
    %v4790 = vpop.f32.mrf.mxu0
    %v4791 = vadd.f32 %v4660, %v4790
    %v4792 = vand.u32 %v3816, 4294901760
    %4793 = vmatmul.f32.gmra.mxu0 %v4792
    %v4794 = vpop.f32.mrf.mxu0
    %v4795 = vadd.f32 %v4664, %v4794
    %v4796 = vand.u32 %v3819, 4294901760
    %4797 = vmatmul.f32.gmra.mxu0 %v4796
    %v4798 = vpop.f32.mrf.mxu0
    %v4799 = vadd.f32 %v4668, %v4798
    %v4800 = vand.u32 %v3822, 4294901760
    %4801 = vmatmul.f32.gmra.mxu0 %v4800
    %v4802 = vpop.f32.mrf.mxu0
    %v4803 = vadd.f32 %v4672, %v4802
    %v4804 = vand.u32 %v3825, 4294901760
    %4805 = vmatmul.f32.gmra.mxu0 %v4804
    %v4806 = vpop.f32.mrf.mxu0
    %v4807 = vadd.f32 %v4676, %v4806
    %v4808 = vand.u32 %v3828, 4294901760
    %4809 = vmatmul.f32.gmra.mxu0 %v4808
    %v4810 = vpop.f32.mrf.mxu0
    %v4811 = vadd.f32 %v4680, %v4810
    %v4812 = vand.u32 %v3831, 4294901760
    %4813 = vmatmul.f32.gmra.mxu0 %v4812
    %v4814 = vpop.f32.mrf.mxu0
    %v4815 = vadd.f32 %v4684, %v4814
    %v4816 = vand.u32 %v3834, 4294901760
    %4817 = vmatmul.f32.gmra.mxu0 %v4816
    %v4818 = vpop.f32.mrf.mxu0
    %v4819 = vadd.f32 %v4688, %v4818
    %v4820 = vand.u32 %v3837, 4294901760
    %4821 = vmatmul.f32.gmra.mxu0 %v4820
    %v4822 = vpop.f32.mrf.mxu0
    %v4823 = vadd.f32 %v4692, %v4822
    %v4824 = vand.u32 %v3840, 4294901760
    %4825 = vmatmul.f32.gmra.mxu0 %v4824
    %v4826 = vpop.f32.mrf.mxu0
    %v4827 = vadd.f32 %v4696, %v4826
    %v4828 = vand.u32 %v3843, 4294901760
    %4829 = vmatmul.f32.gmra.mxu0 %v4828
    %v4830 = vpop.f32.mrf.mxu0
    %v4831 = vadd.f32 %v4700, %v4830
    %v4832 = vand.u32 %v3846, 4294901760
    %4833 = vmatmul.f32.gmra.mxu0 %v4832
    %v4834 = vpop.f32.mrf.mxu0
    %v4835 = vadd.f32 %v4704, %v4834
    %v4836 = vand.u32 %v3849, 4294901760
    %4837 = vmatmul.f32.gmra.mxu0 %v4836
    %v4838 = vpop.f32.mrf.mxu0
    %v4839 = vadd.f32 %v4708, %v4838
    %v4840 = vand.u32 %v3852, 4294901760
    %4841 = vmatmul.f32.gmra.mxu0 %v4840
    %v4842 = vpop.f32.mrf.mxu0
    %v4843 = vadd.f32 %v4712, %v4842
    %v4844 = vand.u32 %v3855, 4294901760
    %4845 = vmatmul.f32.gmra.mxu0 %v4844
    %v4846 = vpop.f32.mrf.mxu0
    %v4847 = vadd.f32 %v4716, %v4846
    %v4848 = vand.u32 %v3858, 4294901760
    %4849 = vmatmul.f32.gmra.mxu0 %v4848
    %v4850 = vpop.f32.mrf.mxu0
    %v4851 = vadd.f32 %v4720, %v4850
    %v4852 = vand.u32 %v3861, 4294901760
    %4853 = vmatmul.f32.gmra.mxu0 %v4852
    %v4854 = vpop.f32.mrf.mxu0
    %v4855 = vadd.f32 %v4724, %v4854
    %v4856 = vand.u32 %v3864, 4294901760
    %4857 = vmatmul.f32.gmra.mxu0 %v4856
    %v4858 = vpop.f32.mrf.mxu0
    %v4859 = vadd.f32 %v4728, %v4858
    %v4860 = vand.u32 %v3867, 4294901760
    %4861 = vmatmul.f32.gmra.mxu0 %v4860
    %v4862 = vpop.f32.mrf.mxu0
    %v4863 = vadd.f32 %v4732, %v4862
    %v4864 = vand.u32 %v3870, 4294901760
    %4865 = vmatmul.f32.gmra.mxu0 %v4864
    %v4866 = vpop.f32.mrf.mxu0
    %v4867 = vadd.f32 %v4736, %v4866
    %v4868 = vand.u32 %v3873, 4294901760
    %4869 = vmatmul.f32.gmra.mxu0 %v4868
    %v4870 = vpop.f32.mrf.mxu0
    %v4871 = vadd.f32 %v4740, %v4870
    %v4872 = vand.u32 %v3876, 4294901760
    %4873 = vmatmul.f32.gmra.mxu0 %v4872
    %v4874 = vpop.f32.mrf.mxu0
    %v4875 = vadd.f32 %v4744, %v4874
    %v4876 = vand.u32 %v3879, 4294901760
    %4877 = vmatmul.f32.gmra.mxu0 %v4876
    %v4878 = vpop.f32.mrf.mxu0
    %v4879 = vadd.f32 %v4748, %v4878
    %v4880 = vand.u32 %v3882, 4294901760
    %4881 = vmatmul.f32.gmra.mxu0 %v4880
    %v4882 = vpop.f32.mrf.mxu0
    %v4883 = vadd.f32 %v4752, %v4882
    %v4884 = vand.u32 %v3885, 4294901760
    %4885 = vmatmul.f32.gmra.mxu0 %v4884
    %v4886 = vpop.f32.mrf.mxu0
    %v4887 = vadd.f32 %v4756, %v4886
    %4888 = vdwg.mxu0
    %4889 = vmatpush.msra.mxu0 0.0
    %4890 = vmatpush.msra.mxu0 0.0
    %4891 = vmatpush.msra.mxu0 0.0
    %4892 = vmatpush.msra.mxu0 0.0
    %4893 = vmatpush.msra.mxu0 0.0
    %4894 = vmatpush.msra.mxu0 0.0
    %4895 = vmatpush.msra.mxu0 0.0
    %4896 = vmatpush.msra.mxu0 0.0
    %4897 = vmatpush.msra.mxu0 0.0
    %4898 = vmatpush.msra.mxu0 0.0
    %4899 = vmatpush.msra.mxu0 0.0
    %4900 = vmatpush.msra.mxu0 0.0
    %4901 = vmatpush.msra.mxu0 0.0
    %4902 = vmatpush.msra.mxu0 0.0
    %v4903 = vand.u32 %v3891, 4294901760
    %4904 = vmatpush.msra.mxu0 %v4903
    %v4905 = vand.u32 %v3769, 4294901760
    %4906 = vmatpush.msra.mxu0 %v4905
    %v4907 = vand.u32 %v3804, 4294901760
    %v4908 = vsub.f32 %v3804, %v4907
    %v4909 = vand.u32 %v4908, 4294901760
    %v4910 = vsub.f32 %v4908, %v4909
    %v4911 = vand.u32 %v4910, 4294901760
    %4912 = vmatmul.f32.gmra.mxu0 %v4911
    %v4913 = vpop.f32.mrf.mxu0
    %v4914 = vadd.f32 0.0, %v4913
    %v4915 = vand.u32 %v3807, 4294901760
    %v4916 = vsub.f32 %v3807, %v4915
    %v4917 = vand.u32 %v4916, 4294901760
    %v4918 = vsub.f32 %v4916, %v4917
    %v4919 = vand.u32 %v4918, 4294901760
    %4920 = vmatmul.f32.gmra.mxu0 %v4919
    %v4921 = vpop.f32.mrf.mxu0
    %v4922 = vadd.f32 0.0, %v4921
    %v4923 = vand.u32 %v3810, 4294901760
    %v4924 = vsub.f32 %v3810, %v4923
    %v4925 = vand.u32 %v4924, 4294901760
    %v4926 = vsub.f32 %v4924, %v4925
    %v4927 = vand.u32 %v4926, 4294901760
    %4928 = vmatmul.f32.gmra.mxu0 %v4927
    %v4929 = vpop.f32.mrf.mxu0
    %v4930 = vadd.f32 0.0, %v4929
    %v4931 = vand.u32 %v3813, 4294901760
    %v4932 = vsub.f32 %v3813, %v4931
    %v4933 = vand.u32 %v4932, 4294901760
    %v4934 = vsub.f32 %v4932, %v4933
    %v4935 = vand.u32 %v4934, 4294901760
    %4936 = vmatmul.f32.gmra.mxu0 %v4935
    %v4937 = vpop.f32.mrf.mxu0
    %v4938 = vadd.f32 0.0, %v4937
    %v4939 = vand.u32 %v3816, 4294901760
    %v4940 = vsub.f32 %v3816, %v4939
    %v4941 = vand.u32 %v4940, 4294901760
    %v4942 = vsub.f32 %v4940, %v4941
    %v4943 = vand.u32 %v4942, 4294901760
    %4944 = vmatmul.f32.gmra.mxu0 %v4943
    %v4945 = vpop.f32.mrf.mxu0
    %v4946 = vadd.f32 0.0, %v4945
    %v4947 = vand.u32 %v3819, 4294901760
    %v4948 = vsub.f32 %v3819, %v4947
    %v4949 = vand.u32 %v4948, 4294901760
    %v4950 = vsub.f32 %v4948, %v4949
    %v4951 = vand.u32 %v4950, 4294901760
    %4952 = vmatmul.f32.gmra.mxu0 %v4951
    %v4953 = vpop.f32.mrf.mxu0
    %v4954 = vadd.f32 0.0, %v4953
    %v4955 = vand.u32 %v3822, 4294901760
    %v4956 = vsub.f32 %v3822, %v4955
    %v4957 = vand.u32 %v4956, 4294901760
    %v4958 = vsub.f32 %v4956, %v4957
    %v4959 = vand.u32 %v4958, 4294901760
    %4960 = vmatmul.f32.gmra.mxu0 %v4959
    %v4961 = vpop.f32.mrf.mxu0
    %v4962 = vadd.f32 0.0, %v4961
    %v4963 = vand.u32 %v3825, 4294901760
    %v4964 = vsub.f32 %v3825, %v4963
    %v4965 = vand.u32 %v4964, 4294901760
    %v4966 = vsub.f32 %v4964, %v4965
    %v4967 = vand.u32 %v4966, 4294901760
    %4968 = vmatmul.f32.gmra.mxu0 %v4967
    %v4969 = vpop.f32.mrf.mxu0
    %v4970 = vadd.f32 0.0, %v4969
    %v4971 = vand.u32 %v3828, 4294901760
    %v4972 = vsub.f32 %v3828, %v4971
    %v4973 = vand.u32 %v4972, 4294901760
    %v4974 = vsub.f32 %v4972, %v4973
    %v4975 = vand.u32 %v4974, 4294901760
    %4976 = vmatmul.f32.gmra.mxu0 %v4975
    %v4977 = vpop.f32.mrf.mxu0
    %v4978 = vadd.f32 0.0, %v4977
    %v4979 = vand.u32 %v3831, 4294901760
    %v4980 = vsub.f32 %v3831, %v4979
    %v4981 = vand.u32 %v4980, 4294901760
    %v4982 = vsub.f32 %v4980, %v4981
    %v4983 = vand.u32 %v4982, 4294901760
    %4984 = vmatmul.f32.gmra.mxu0 %v4983
    %v4985 = vpop.f32.mrf.mxu0
    %v4986 = vadd.f32 0.0, %v4985
    %v4987 = vand.u32 %v3834, 4294901760
    %v4988 = vsub.f32 %v3834, %v4987
    %v4989 = vand.u32 %v4988, 4294901760
    %v4990 = vsub.f32 %v4988, %v4989
    %v4991 = vand.u32 %v4990, 4294901760
    %4992 = vmatmul.f32.gmra.mxu0 %v4991
    %v4993 = vpop.f32.mrf.mxu0
    %v4994 = vadd.f32 0.0, %v4993
    %v4995 = vand.u32 %v3837, 4294901760
    %v4996 = vsub.f32 %v3837, %v4995
    %v4997 = vand.u32 %v4996, 4294901760
    %v4998 = vsub.f32 %v4996, %v4997
    %v4999 = vand.u32 %v4998, 4294901760
    %5000 = vmatmul.f32.gmra.mxu0 %v4999
    %v5001 = vpop.f32.mrf.mxu0
    %v5002 = vadd.f32 0.0, %v5001
    %v5003 = vand.u32 %v3840, 4294901760
    %v5004 = vsub.f32 %v3840, %v5003
    %v5005 = vand.u32 %v5004, 4294901760
    %v5006 = vsub.f32 %v5004, %v5005
    %v5007 = vand.u32 %v5006, 4294901760
    %5008 = vmatmul.f32.gmra.mxu0 %v5007
    %v5009 = vpop.f32.mrf.mxu0
    %v5010 = vadd.f32 0.0, %v5009
    %v5011 = vand.u32 %v3843, 4294901760
    %v5012 = vsub.f32 %v3843, %v5011
    %v5013 = vand.u32 %v5012, 4294901760
    %v5014 = vsub.f32 %v5012, %v5013
    %v5015 = vand.u32 %v5014, 4294901760
    %5016 = vmatmul.f32.gmra.mxu0 %v5015
    %v5017 = vpop.f32.mrf.mxu0
    %v5018 = vadd.f32 0.0, %v5017
    %v5019 = vand.u32 %v3846, 4294901760
    %v5020 = vsub.f32 %v3846, %v5019
    %v5021 = vand.u32 %v5020, 4294901760
    %v5022 = vsub.f32 %v5020, %v5021
    %v5023 = vand.u32 %v5022, 4294901760
    %5024 = vmatmul.f32.gmra.mxu0 %v5023
    %v5025 = vpop.f32.mrf.mxu0
    %v5026 = vadd.f32 0.0, %v5025
    %v5027 = vand.u32 %v3849, 4294901760
    %v5028 = vsub.f32 %v3849, %v5027
    %v5029 = vand.u32 %v5028, 4294901760
    %v5030 = vsub.f32 %v5028, %v5029
    %v5031 = vand.u32 %v5030, 4294901760
    %5032 = vmatmul.f32.gmra.mxu0 %v5031
    %v5033 = vpop.f32.mrf.mxu0
    %v5034 = vadd.f32 0.0, %v5033
    %v5035 = vand.u32 %v3852, 4294901760
    %v5036 = vsub.f32 %v3852, %v5035
    %v5037 = vand.u32 %v5036, 4294901760
    %v5038 = vsub.f32 %v5036, %v5037
    %v5039 = vand.u32 %v5038, 4294901760
    %5040 = vmatmul.f32.gmra.mxu0 %v5039
    %v5041 = vpop.f32.mrf.mxu0
    %v5042 = vadd.f32 0.0, %v5041
    %v5043 = vand.u32 %v3855, 4294901760
    %v5044 = vsub.f32 %v3855, %v5043
    %v5045 = vand.u32 %v5044, 4294901760
    %v5046 = vsub.f32 %v5044, %v5045
    %v5047 = vand.u32 %v5046, 4294901760
    %5048 = vmatmul.f32.gmra.mxu0 %v5047
    %v5049 = vpop.f32.mrf.mxu0
    %v5050 = vadd.f32 0.0, %v5049
    %v5051 = vand.u32 %v3858, 4294901760
    %v5052 = vsub.f32 %v3858, %v5051
    %v5053 = vand.u32 %v5052, 4294901760
    %v5054 = vsub.f32 %v5052, %v5053
    %v5055 = vand.u32 %v5054, 4294901760
    %5056 = vmatmul.f32.gmra.mxu0 %v5055
    %v5057 = vpop.f32.mrf.mxu0
    %v5058 = vadd.f32 0.0, %v5057
    %v5059 = vand.u32 %v3861, 4294901760
    %v5060 = vsub.f32 %v3861, %v5059
    %v5061 = vand.u32 %v5060, 4294901760
    %v5062 = vsub.f32 %v5060, %v5061
    %v5063 = vand.u32 %v5062, 4294901760
    %5064 = vmatmul.f32.gmra.mxu0 %v5063
    %v5065 = vpop.f32.mrf.mxu0
    %v5066 = vadd.f32 0.0, %v5065
    %v5067 = vand.u32 %v3864, 4294901760
    %v5068 = vsub.f32 %v3864, %v5067
    %v5069 = vand.u32 %v5068, 4294901760
    %v5070 = vsub.f32 %v5068, %v5069
    %v5071 = vand.u32 %v5070, 4294901760
    %5072 = vmatmul.f32.gmra.mxu0 %v5071
    %v5073 = vpop.f32.mrf.mxu0
    %v5074 = vadd.f32 0.0, %v5073
    %v5075 = vand.u32 %v3867, 4294901760
    %v5076 = vsub.f32 %v3867, %v5075
    %v5077 = vand.u32 %v5076, 4294901760
    %v5078 = vsub.f32 %v5076, %v5077
    %v5079 = vand.u32 %v5078, 4294901760
    %5080 = vmatmul.f32.gmra.mxu0 %v5079
    %v5081 = vpop.f32.mrf.mxu0
    %v5082 = vadd.f32 0.0, %v5081
    %v5083 = vand.u32 %v3870, 4294901760
    %v5084 = vsub.f32 %v3870, %v5083
    %v5085 = vand.u32 %v5084, 4294901760
    %v5086 = vsub.f32 %v5084, %v5085
    %v5087 = vand.u32 %v5086, 4294901760
    %5088 = vmatmul.f32.gmra.mxu0 %v5087
    %v5089 = vpop.f32.mrf.mxu0
    %v5090 = vadd.f32 0.0, %v5089
    %v5091 = vand.u32 %v3873, 4294901760
    %v5092 = vsub.f32 %v3873, %v5091
    %v5093 = vand.u32 %v5092, 4294901760
    %v5094 = vsub.f32 %v5092, %v5093
    %v5095 = vand.u32 %v5094, 4294901760
    %5096 = vmatmul.f32.gmra.mxu0 %v5095
    %v5097 = vpop.f32.mrf.mxu0
    %v5098 = vadd.f32 0.0, %v5097
    %v5099 = vand.u32 %v3876, 4294901760
    %v5100 = vsub.f32 %v3876, %v5099
    %v5101 = vand.u32 %v5100, 4294901760
    %v5102 = vsub.f32 %v5100, %v5101
    %v5103 = vand.u32 %v5102, 4294901760
    %5104 = vmatmul.f32.gmra.mxu0 %v5103
    %v5105 = vpop.f32.mrf.mxu0
    %v5106 = vadd.f32 0.0, %v5105
    %v5107 = vand.u32 %v3879, 4294901760
    %v5108 = vsub.f32 %v3879, %v5107
    %v5109 = vand.u32 %v5108, 4294901760
    %v5110 = vsub.f32 %v5108, %v5109
    %v5111 = vand.u32 %v5110, 4294901760
    %5112 = vmatmul.f32.gmra.mxu0 %v5111
    %v5113 = vpop.f32.mrf.mxu0
    %v5114 = vadd.f32 0.0, %v5113
    %v5115 = vand.u32 %v3882, 4294901760
    %v5116 = vsub.f32 %v3882, %v5115
    %v5117 = vand.u32 %v5116, 4294901760
    %v5118 = vsub.f32 %v5116, %v5117
    %v5119 = vand.u32 %v5118, 4294901760
    %5120 = vmatmul.f32.gmra.mxu0 %v5119
    %v5121 = vpop.f32.mrf.mxu0
    %v5122 = vadd.f32 0.0, %v5121
    %v5123 = vand.u32 %v3885, 4294901760
    %v5124 = vsub.f32 %v3885, %v5123
    %v5125 = vand.u32 %v5124, 4294901760
    %v5126 = vsub.f32 %v5124, %v5125
    %v5127 = vand.u32 %v5126, 4294901760
    %5128 = vmatmul.f32.gmra.mxu0 %v5127
    %v5129 = vpop.f32.mrf.mxu0
    %v5130 = vadd.f32 0.0, %v5129
    %5131 = vdwg.mxu0
    %5132 = vmatpush.msra.mxu0 0.0
    %5133 = vmatpush.msra.mxu0 0.0
    %5134 = vmatpush.msra.mxu0 0.0
    %5135 = vmatpush.msra.mxu0 0.0
    %5136 = vmatpush.msra.mxu0 0.0
    %5137 = vmatpush.msra.mxu0 0.0
    %5138 = vmatpush.msra.mxu0 0.0
    %5139 = vmatpush.msra.mxu0 0.0
    %5140 = vmatpush.msra.mxu0 0.0
    %5141 = vmatpush.msra.mxu0 0.0
    %5142 = vmatpush.msra.mxu0 0.0
    %5143 = vmatpush.msra.mxu0 0.0
    %5144 = vmatpush.msra.mxu0 0.0
    %5145 = vmatpush.msra.mxu0 0.0
    %v5146 = vand.u32 %v3891, 4294901760
    %v5147 = vsub.f32 %v3891, %v5146
    %v5148 = vand.u32 %v5147, 4294901760
    %v5149 = vsub.f32 %v5147, %v5148
    %v5150 = vand.u32 %v5149, 4294901760
    %5151 = vmatpush.msra.mxu0 %v5150
    %v5152 = vand.u32 %v3769, 4294901760
    %v5153 = vsub.f32 %v3769, %v5152
    %v5154 = vand.u32 %v5153, 4294901760
    %v5155 = vsub.f32 %v5153, %v5154
    %v5156 = vand.u32 %v5155, 4294901760
    %5157 = vmatpush.msra.mxu0 %v5156
    %v5158 = vand.u32 %v3804, 4294901760
    %5159 = vmatmul.f32.gmra.mxu0 %v5158
    %v5160 = vpop.f32.mrf.mxu0
    %v5161 = vadd.f32 %v4914, %v5160
    %v5162 = vand.u32 %v3807, 4294901760
    %5163 = vmatmul.f32.gmra.mxu0 %v5162
    %v5164 = vpop.f32.mrf.mxu0
    %v5165 = vadd.f32 %v4922, %v5164
    %v5166 = vand.u32 %v3810, 4294901760
    %5167 = vmatmul.f32.gmra.mxu0 %v5166
    %v5168 = vpop.f32.mrf.mxu0
    %v5169 = vadd.f32 %v4930, %v5168
    %v5170 = vand.u32 %v3813, 4294901760
    %5171 = vmatmul.f32.gmra.mxu0 %v5170
    %v5172 = vpop.f32.mrf.mxu0
    %v5173 = vadd.f32 %v4938, %v5172
    %v5174 = vand.u32 %v3816, 4294901760
    %5175 = vmatmul.f32.gmra.mxu0 %v5174
    %v5176 = vpop.f32.mrf.mxu0
    %v5177 = vadd.f32 %v4946, %v5176
    %v5178 = vand.u32 %v3819, 4294901760
    %5179 = vmatmul.f32.gmra.mxu0 %v5178
    %v5180 = vpop.f32.mrf.mxu0
    %v5181 = vadd.f32 %v4954, %v5180
    %v5182 = vand.u32 %v3822, 4294901760
    %5183 = vmatmul.f32.gmra.mxu0 %v5182
    %v5184 = vpop.f32.mrf.mxu0
    %v5185 = vadd.f32 %v4962, %v5184
    %v5186 = vand.u32 %v3825, 4294901760
    %5187 = vmatmul.f32.gmra.mxu0 %v5186
    %v5188 = vpop.f32.mrf.mxu0
    %v5189 = vadd.f32 %v4970, %v5188
    %v5190 = vand.u32 %v3828, 4294901760
    %5191 = vmatmul.f32.gmra.mxu0 %v5190
    %v5192 = vpop.f32.mrf.mxu0
    %v5193 = vadd.f32 %v4978, %v5192
    %v5194 = vand.u32 %v3831, 4294901760
    %5195 = vmatmul.f32.gmra.mxu0 %v5194
    %v5196 = vpop.f32.mrf.mxu0
    %v5197 = vadd.f32 %v4986, %v5196
    %v5198 = vand.u32 %v3834, 4294901760
    %5199 = vmatmul.f32.gmra.mxu0 %v5198
    %v5200 = vpop.f32.mrf.mxu0
    %v5201 = vadd.f32 %v4994, %v5200
    %v5202 = vand.u32 %v3837, 4294901760
    %5203 = vmatmul.f32.gmra.mxu0 %v5202
    %v5204 = vpop.f32.mrf.mxu0
    %v5205 = vadd.f32 %v5002, %v5204
    %v5206 = vand.u32 %v3840, 4294901760
    %5207 = vmatmul.f32.gmra.mxu0 %v5206
    %v5208 = vpop.f32.mrf.mxu0
    %v5209 = vadd.f32 %v5010, %v5208
    %v5210 = vand.u32 %v3843, 4294901760
    %5211 = vmatmul.f32.gmra.mxu0 %v5210
    %v5212 = vpop.f32.mrf.mxu0
    %v5213 = vadd.f32 %v5018, %v5212
    %v5214 = vand.u32 %v3846, 4294901760
    %5215 = vmatmul.f32.gmra.mxu0 %v5214
    %v5216 = vpop.f32.mrf.mxu0
    %v5217 = vadd.f32 %v5026, %v5216
    %v5218 = vand.u32 %v3849, 4294901760
    %5219 = vmatmul.f32.gmra.mxu0 %v5218
    %v5220 = vpop.f32.mrf.mxu0
    %v5221 = vadd.f32 %v5034, %v5220
    %v5222 = vand.u32 %v3852, 4294901760
    %5223 = vmatmul.f32.gmra.mxu0 %v5222
    %v5224 = vpop.f32.mrf.mxu0
    %v5225 = vadd.f32 %v5042, %v5224
    %v5226 = vand.u32 %v3855, 4294901760
    %5227 = vmatmul.f32.gmra.mxu0 %v5226
    %v5228 = vpop.f32.mrf.mxu0
    %v5229 = vadd.f32 %v5050, %v5228
    %v5230 = vand.u32 %v3858, 4294901760
    %5231 = vmatmul.f32.gmra.mxu0 %v5230
    %v5232 = vpop.f32.mrf.mxu0
    %v5233 = vadd.f32 %v5058, %v5232
    %v5234 = vand.u32 %v3861, 4294901760
    %5235 = vmatmul.f32.gmra.mxu0 %v5234
    %v5236 = vpop.f32.mrf.mxu0
    %v5237 = vadd.f32 %v5066, %v5236
    %v5238 = vand.u32 %v3864, 4294901760
    %5239 = vmatmul.f32.gmra.mxu0 %v5238
    %v5240 = vpop.f32.mrf.mxu0
    %v5241 = vadd.f32 %v5074, %v5240
    %v5242 = vand.u32 %v3867, 4294901760
    %5243 = vmatmul.f32.gmra.mxu0 %v5242
    %v5244 = vpop.f32.mrf.mxu0
    %v5245 = vadd.f32 %v5082, %v5244
    %v5246 = vand.u32 %v3870, 4294901760
    %5247 = vmatmul.f32.gmra.mxu0 %v5246
    %v5248 = vpop.f32.mrf.mxu0
    %v5249 = vadd.f32 %v5090, %v5248
    %v5250 = vand.u32 %v3873, 4294901760
    %5251 = vmatmul.f32.gmra.mxu0 %v5250
    %v5252 = vpop.f32.mrf.mxu0
    %v5253 = vadd.f32 %v5098, %v5252
    %v5254 = vand.u32 %v3876, 4294901760
    %5255 = vmatmul.f32.gmra.mxu0 %v5254
    %v5256 = vpop.f32.mrf.mxu0
    %v5257 = vadd.f32 %v5106, %v5256
    %v5258 = vand.u32 %v3879, 4294901760
    %5259 = vmatmul.f32.gmra.mxu0 %v5258
    %v5260 = vpop.f32.mrf.mxu0
    %v5261 = vadd.f32 %v5114, %v5260
    %v5262 = vand.u32 %v3882, 4294901760
    %5263 = vmatmul.f32.gmra.mxu0 %v5262
    %v5264 = vpop.f32.mrf.mxu0
    %v5265 = vadd.f32 %v5122, %v5264
    %v5266 = vand.u32 %v3885, 4294901760
    %5267 = vmatmul.f32.gmra.mxu0 %v5266
    %v5268 = vpop.f32.mrf.mxu0
    %v5269 = vadd.f32 %v5130, %v5268
    %5270 = vdwg.mxu0
    %5271 = vmatpush.msra.mxu0 0.0
    %5272 = vmatpush.msra.mxu0 0.0
    %5273 = vmatpush.msra.mxu0 0.0
    %5274 = vmatpush.msra.mxu0 0.0
    %5275 = vmatpush.msra.mxu0 0.0
    %5276 = vmatpush.msra.mxu0 0.0
    %5277 = vmatpush.msra.mxu0 0.0
    %5278 = vmatpush.msra.mxu0 0.0
    %5279 = vmatpush.msra.mxu0 0.0
    %5280 = vmatpush.msra.mxu0 0.0
    %5281 = vmatpush.msra.mxu0 0.0
    %5282 = vmatpush.msra.mxu0 0.0
    %5283 = vmatpush.msra.mxu0 0.0
    %5284 = vmatpush.msra.mxu0 0.0
    %v5285 = vand.u32 %v3891, 4294901760
    %v5286 = vsub.f32 %v3891, %v5285
    %5287 = vmatpush.msra.mxu0 %v5286
    %v5288 = vand.u32 %v3769, 4294901760
    %v5289 = vsub.f32 %v3769, %v5288
    %5290 = vmatpush.msra.mxu0 %v5289
    %v5291 = vand.u32 %v3804, 4294901760
    %v5292 = vsub.f32 %v3804, %v5291
    %5293 = vmatmul.f32.gmra.mxu0 %v5292
    %v5294 = vpop.f32.mrf.mxu0
    %v5295 = vadd.f32 %v5161, %v5294
    %v5296 = vand.u32 %v3807, 4294901760
    %v5297 = vsub.f32 %v3807, %v5296
    %5298 = vmatmul.f32.gmra.mxu0 %v5297
    %v5299 = vpop.f32.mrf.mxu0
    %v5300 = vadd.f32 %v5165, %v5299
    %v5301 = vand.u32 %v3810, 4294901760
    %v5302 = vsub.f32 %v3810, %v5301
    %5303 = vmatmul.f32.gmra.mxu0 %v5302
    %v5304 = vpop.f32.mrf.mxu0
    %v5305 = vadd.f32 %v5169, %v5304
    %v5306 = vand.u32 %v3813, 4294901760
    %v5307 = vsub.f32 %v3813, %v5306
    %5308 = vmatmul.f32.gmra.mxu0 %v5307
    %v5309 = vpop.f32.mrf.mxu0
    %v5310 = vadd.f32 %v5173, %v5309
    %v5311 = vand.u32 %v3816, 4294901760
    %v5312 = vsub.f32 %v3816, %v5311
    %5313 = vmatmul.f32.gmra.mxu0 %v5312
    %v5314 = vpop.f32.mrf.mxu0
    %v5315 = vadd.f32 %v5177, %v5314
    %v5316 = vand.u32 %v3819, 4294901760
    %v5317 = vsub.f32 %v3819, %v5316
    %5318 = vmatmul.f32.gmra.mxu0 %v5317
    %v5319 = vpop.f32.mrf.mxu0
    %v5320 = vadd.f32 %v5181, %v5319
    %v5321 = vand.u32 %v3822, 4294901760
    %v5322 = vsub.f32 %v3822, %v5321
    %5323 = vmatmul.f32.gmra.mxu0 %v5322
    %v5324 = vpop.f32.mrf.mxu0
    %v5325 = vadd.f32 %v5185, %v5324
    %v5326 = vand.u32 %v3825, 4294901760
    %v5327 = vsub.f32 %v3825, %v5326
    %5328 = vmatmul.f32.gmra.mxu0 %v5327
    %v5329 = vpop.f32.mrf.mxu0
    %v5330 = vadd.f32 %v5189, %v5329
    %v5331 = vand.u32 %v3828, 4294901760
    %v5332 = vsub.f32 %v3828, %v5331
    %5333 = vmatmul.f32.gmra.mxu0 %v5332
    %v5334 = vpop.f32.mrf.mxu0
    %v5335 = vadd.f32 %v5193, %v5334
    %v5336 = vand.u32 %v3831, 4294901760
    %v5337 = vsub.f32 %v3831, %v5336
    %5338 = vmatmul.f32.gmra.mxu0 %v5337
    %v5339 = vpop.f32.mrf.mxu0
    %v5340 = vadd.f32 %v5197, %v5339
    %v5341 = vand.u32 %v3834, 4294901760
    %v5342 = vsub.f32 %v3834, %v5341
    %5343 = vmatmul.f32.gmra.mxu0 %v5342
    %v5344 = vpop.f32.mrf.mxu0
    %v5345 = vadd.f32 %v5201, %v5344
    %v5346 = vand.u32 %v3837, 4294901760
    %v5347 = vsub.f32 %v3837, %v5346
    %5348 = vmatmul.f32.gmra.mxu0 %v5347
    %v5349 = vpop.f32.mrf.mxu0
    %v5350 = vadd.f32 %v5205, %v5349
    %v5351 = vand.u32 %v3840, 4294901760
    %v5352 = vsub.f32 %v3840, %v5351
    %5353 = vmatmul.f32.gmra.mxu0 %v5352
    %v5354 = vpop.f32.mrf.mxu0
    %v5355 = vadd.f32 %v5209, %v5354
    %v5356 = vand.u32 %v3843, 4294901760
    %v5357 = vsub.f32 %v3843, %v5356
    %5358 = vmatmul.f32.gmra.mxu0 %v5357
    %v5359 = vpop.f32.mrf.mxu0
    %v5360 = vadd.f32 %v5213, %v5359
    %v5361 = vand.u32 %v3846, 4294901760
    %v5362 = vsub.f32 %v3846, %v5361
    %5363 = vmatmul.f32.gmra.mxu0 %v5362
    %v5364 = vpop.f32.mrf.mxu0
    %v5365 = vadd.f32 %v5217, %v5364
    %v5366 = vand.u32 %v3849, 4294901760
    %v5367 = vsub.f32 %v3849, %v5366
    %5368 = vmatmul.f32.gmra.mxu0 %v5367
    %v5369 = vpop.f32.mrf.mxu0
    %v5370 = vadd.f32 %v5221, %v5369
    %v5371 = vand.u32 %v3852, 4294901760
    %v5372 = vsub.f32 %v3852, %v5371
    %5373 = vmatmul.f32.gmra.mxu0 %v5372
    %v5374 = vpop.f32.mrf.mxu0
    %v5375 = vadd.f32 %v5225, %v5374
    %v5376 = vand.u32 %v3855, 4294901760
    %v5377 = vsub.f32 %v3855, %v5376
    %5378 = vmatmul.f32.gmra.mxu0 %v5377
    %v5379 = vpop.f32.mrf.mxu0
    %v5380 = vadd.f32 %v5229, %v5379
    %v5381 = vand.u32 %v3858, 4294901760
    %v5382 = vsub.f32 %v3858, %v5381
    %5383 = vmatmul.f32.gmra.mxu0 %v5382
    %v5384 = vpop.f32.mrf.mxu0
    %v5385 = vadd.f32 %v5233, %v5384
    %v5386 = vand.u32 %v3861, 4294901760
    %v5387 = vsub.f32 %v3861, %v5386
    %5388 = vmatmul.f32.gmra.mxu0 %v5387
    %v5389 = vpop.f32.mrf.mxu0
    %v5390 = vadd.f32 %v5237, %v5389
    %v5391 = vand.u32 %v3864, 4294901760
    %v5392 = vsub.f32 %v3864, %v5391
    %5393 = vmatmul.f32.gmra.mxu0 %v5392
    %v5394 = vpop.f32.mrf.mxu0
    %v5395 = vadd.f32 %v5241, %v5394
    %v5396 = vand.u32 %v3867, 4294901760
    %v5397 = vsub.f32 %v3867, %v5396
    %5398 = vmatmul.f32.gmra.mxu0 %v5397
    %v5399 = vpop.f32.mrf.mxu0
    %v5400 = vadd.f32 %v5245, %v5399
    %v5401 = vand.u32 %v3870, 4294901760
    %v5402 = vsub.f32 %v3870, %v5401
    %5403 = vmatmul.f32.gmra.mxu0 %v5402
    %v5404 = vpop.f32.mrf.mxu0
    %v5405 = vadd.f32 %v5249, %v5404
    %v5406 = vand.u32 %v3873, 4294901760
    %v5407 = vsub.f32 %v3873, %v5406
    %5408 = vmatmul.f32.gmra.mxu0 %v5407
    %v5409 = vpop.f32.mrf.mxu0
    %v5410 = vadd.f32 %v5253, %v5409
    %v5411 = vand.u32 %v3876, 4294901760
    %v5412 = vsub.f32 %v3876, %v5411
    %5413 = vmatmul.f32.gmra.mxu0 %v5412
    %v5414 = vpop.f32.mrf.mxu0
    %v5415 = vadd.f32 %v5257, %v5414
    %v5416 = vand.u32 %v3879, 4294901760
    %v5417 = vsub.f32 %v3879, %v5416
    %5418 = vmatmul.f32.gmra.mxu0 %v5417
    %v5419 = vpop.f32.mrf.mxu0
    %v5420 = vadd.f32 %v5261, %v5419
    %v5421 = vand.u32 %v3882, 4294901760
    %v5422 = vsub.f32 %v3882, %v5421
    %5423 = vmatmul.f32.gmra.mxu0 %v5422
    %v5424 = vpop.f32.mrf.mxu0
    %v5425 = vadd.f32 %v5265, %v5424
    %v5426 = vand.u32 %v3885, 4294901760
    %v5427 = vsub.f32 %v3885, %v5426
    %5428 = vmatmul.f32.gmra.mxu0 %v5427
    %v5429 = vpop.f32.mrf.mxu0
    %v5430 = vadd.f32 %v5269, %v5429
    %5431 = vdwg.mxu0
    %5432 = vmatpush.msra.mxu0 0.0
    %5433 = vmatpush.msra.mxu0 0.0
    %5434 = vmatpush.msra.mxu0 0.0
    %5435 = vmatpush.msra.mxu0 0.0
    %5436 = vmatpush.msra.mxu0 0.0
    %5437 = vmatpush.msra.mxu0 0.0
    %5438 = vmatpush.msra.mxu0 0.0
    %5439 = vmatpush.msra.mxu0 0.0
    %5440 = vmatpush.msra.mxu0 0.0
    %5441 = vmatpush.msra.mxu0 0.0
    %5442 = vmatpush.msra.mxu0 0.0
    %5443 = vmatpush.msra.mxu0 0.0
    %5444 = vmatpush.msra.mxu0 0.0
    %5445 = vmatpush.msra.mxu0 0.0
    %v5446 = vand.u32 %v3891, 4294901760
    %5447 = vmatpush.msra.mxu0 %v5446
    %v5448 = vand.u32 %v3769, 4294901760
    %5449 = vmatpush.msra.mxu0 %v5448
    %v5450 = vand.u32 %v3804, 4294901760
    %v5451 = vsub.f32 %v3804, %v5450
    %v5452 = vand.u32 %v5451, 4294901760
    %5453 = vmatmul.f32.gmra.mxu0 %v5452
    %v5454 = vpop.f32.mrf.mxu0
    %v5455 = vadd.f32 %v5295, %v5454
    %v5456 = vand.u32 %v3807, 4294901760
    %v5457 = vsub.f32 %v3807, %v5456
    %v5458 = vand.u32 %v5457, 4294901760
    %5459 = vmatmul.f32.gmra.mxu0 %v5458
    %v5460 = vpop.f32.mrf.mxu0
    %v5461 = vadd.f32 %v5300, %v5460
    %v5462 = vand.u32 %v3810, 4294901760
    %v5463 = vsub.f32 %v3810, %v5462
    %v5464 = vand.u32 %v5463, 4294901760
    %5465 = vmatmul.f32.gmra.mxu0 %v5464
    %v5466 = vpop.f32.mrf.mxu0
    %v5467 = vadd.f32 %v5305, %v5466
    %v5468 = vand.u32 %v3813, 4294901760
    %v5469 = vsub.f32 %v3813, %v5468
    %v5470 = vand.u32 %v5469, 4294901760
    %5471 = vmatmul.f32.gmra.mxu0 %v5470
    %v5472 = vpop.f32.mrf.mxu0
    %v5473 = vadd.f32 %v5310, %v5472
    %v5474 = vand.u32 %v3816, 4294901760
    %v5475 = vsub.f32 %v3816, %v5474
    %v5476 = vand.u32 %v5475, 4294901760
    %5477 = vmatmul.f32.gmra.mxu0 %v5476
    %v5478 = vpop.f32.mrf.mxu0
    %v5479 = vadd.f32 %v5315, %v5478
    %v5480 = vand.u32 %v3819, 4294901760
    %v5481 = vsub.f32 %v3819, %v5480
    %v5482 = vand.u32 %v5481, 4294901760
    %5483 = vmatmul.f32.gmra.mxu0 %v5482
    %v5484 = vpop.f32.mrf.mxu0
    %v5485 = vadd.f32 %v5320, %v5484
    %v5486 = vand.u32 %v3822, 4294901760
    %v5487 = vsub.f32 %v3822, %v5486
    %v5488 = vand.u32 %v5487, 4294901760
    %5489 = vmatmul.f32.gmra.mxu0 %v5488
    %v5490 = vpop.f32.mrf.mxu0
    %v5491 = vadd.f32 %v5325, %v5490
    %v5492 = vand.u32 %v3825, 4294901760
    %v5493 = vsub.f32 %v3825, %v5492
    %v5494 = vand.u32 %v5493, 4294901760
    %5495 = vmatmul.f32.gmra.mxu0 %v5494
    %v5496 = vpop.f32.mrf.mxu0
    %v5497 = vadd.f32 %v5330, %v5496
    %v5498 = vand.u32 %v3828, 4294901760
    %v5499 = vsub.f32 %v3828, %v5498
    %v5500 = vand.u32 %v5499, 4294901760
    %5501 = vmatmul.f32.gmra.mxu0 %v5500
    %v5502 = vpop.f32.mrf.mxu0
    %v5503 = vadd.f32 %v5335, %v5502
    %v5504 = vand.u32 %v3831, 4294901760
    %v5505 = vsub.f32 %v3831, %v5504
    %v5506 = vand.u32 %v5505, 4294901760
    %5507 = vmatmul.f32.gmra.mxu0 %v5506
    %v5508 = vpop.f32.mrf.mxu0
    %v5509 = vadd.f32 %v5340, %v5508
    %v5510 = vand.u32 %v3834, 4294901760
    %v5511 = vsub.f32 %v3834, %v5510
    %v5512 = vand.u32 %v5511, 4294901760
    %5513 = vmatmul.f32.gmra.mxu0 %v5512
    %v5514 = vpop.f32.mrf.mxu0
    %v5515 = vadd.f32 %v5345, %v5514
    %v5516 = vand.u32 %v3837, 4294901760
    %v5517 = vsub.f32 %v3837, %v5516
    %v5518 = vand.u32 %v5517, 4294901760
    %5519 = vmatmul.f32.gmra.mxu0 %v5518
    %v5520 = vpop.f32.mrf.mxu0
    %v5521 = vadd.f32 %v5350, %v5520
    %v5522 = vand.u32 %v3840, 4294901760
    %v5523 = vsub.f32 %v3840, %v5522
    %v5524 = vand.u32 %v5523, 4294901760
    %5525 = vmatmul.f32.gmra.mxu0 %v5524
    %v5526 = vpop.f32.mrf.mxu0
    %v5527 = vadd.f32 %v5355, %v5526
    %v5528 = vand.u32 %v3843, 4294901760
    %v5529 = vsub.f32 %v3843, %v5528
    %v5530 = vand.u32 %v5529, 4294901760
    %5531 = vmatmul.f32.gmra.mxu0 %v5530
    %v5532 = vpop.f32.mrf.mxu0
    %v5533 = vadd.f32 %v5360, %v5532
    %v5534 = vand.u32 %v3846, 4294901760
    %v5535 = vsub.f32 %v3846, %v5534
    %v5536 = vand.u32 %v5535, 4294901760
    %5537 = vmatmul.f32.gmra.mxu0 %v5536
    %v5538 = vpop.f32.mrf.mxu0
    %v5539 = vadd.f32 %v5365, %v5538
    %v5540 = vand.u32 %v3849, 4294901760
    %v5541 = vsub.f32 %v3849, %v5540
    %v5542 = vand.u32 %v5541, 4294901760
    %5543 = vmatmul.f32.gmra.mxu0 %v5542
    %v5544 = vpop.f32.mrf.mxu0
    %v5545 = vadd.f32 %v5370, %v5544
    %v5546 = vand.u32 %v3852, 4294901760
    %v5547 = vsub.f32 %v3852, %v5546
    %v5548 = vand.u32 %v5547, 4294901760
    %5549 = vmatmul.f32.gmra.mxu0 %v5548
    %v5550 = vpop.f32.mrf.mxu0
    %v5551 = vadd.f32 %v5375, %v5550
    %v5552 = vand.u32 %v3855, 4294901760
    %v5553 = vsub.f32 %v3855, %v5552
    %v5554 = vand.u32 %v5553, 4294901760
    %5555 = vmatmul.f32.gmra.mxu0 %v5554
    %v5556 = vpop.f32.mrf.mxu0
    %v5557 = vadd.f32 %v5380, %v5556
    %v5558 = vand.u32 %v3858, 4294901760
    %v5559 = vsub.f32 %v3858, %v5558
    %v5560 = vand.u32 %v5559, 4294901760
    %5561 = vmatmul.f32.gmra.mxu0 %v5560
    %v5562 = vpop.f32.mrf.mxu0
    %v5563 = vadd.f32 %v5385, %v5562
    %v5564 = vand.u32 %v3861, 4294901760
    %v5565 = vsub.f32 %v3861, %v5564
    %v5566 = vand.u32 %v5565, 4294901760
    %5567 = vmatmul.f32.gmra.mxu0 %v5566
    %v5568 = vpop.f32.mrf.mxu0
    %v5569 = vadd.f32 %v5390, %v5568
    %v5570 = vand.u32 %v3864, 4294901760
    %v5571 = vsub.f32 %v3864, %v5570
    %v5572 = vand.u32 %v5571, 4294901760
    %5573 = vmatmul.f32.gmra.mxu0 %v5572
    %v5574 = vpop.f32.mrf.mxu0
    %v5575 = vadd.f32 %v5395, %v5574
    %v5576 = vand.u32 %v3867, 4294901760
    %v5577 = vsub.f32 %v3867, %v5576
    %v5578 = vand.u32 %v5577, 4294901760
    %5579 = vmatmul.f32.gmra.mxu0 %v5578
    %v5580 = vpop.f32.mrf.mxu0
    %v5581 = vadd.f32 %v5400, %v5580
    %v5582 = vand.u32 %v3870, 4294901760
    %v5583 = vsub.f32 %v3870, %v5582
    %v5584 = vand.u32 %v5583, 4294901760
    %5585 = vmatmul.f32.gmra.mxu0 %v5584
    %v5586 = vpop.f32.mrf.mxu0
    %v5587 = vadd.f32 %v5405, %v5586
    %v5588 = vand.u32 %v3873, 4294901760
    %v5589 = vsub.f32 %v3873, %v5588
    %v5590 = vand.u32 %v5589, 4294901760
    %5591 = vmatmul.f32.gmra.mxu0 %v5590
    %v5592 = vpop.f32.mrf.mxu0
    %v5593 = vadd.f32 %v5410, %v5592
    %v5594 = vand.u32 %v3876, 4294901760
    %v5595 = vsub.f32 %v3876, %v5594
    %v5596 = vand.u32 %v5595, 4294901760
    %5597 = vmatmul.f32.gmra.mxu0 %v5596
    %v5598 = vpop.f32.mrf.mxu0
    %v5599 = vadd.f32 %v5415, %v5598
    %v5600 = vand.u32 %v3879, 4294901760
    %v5601 = vsub.f32 %v3879, %v5600
    %v5602 = vand.u32 %v5601, 4294901760
    %5603 = vmatmul.f32.gmra.mxu0 %v5602
    %v5604 = vpop.f32.mrf.mxu0
    %v5605 = vadd.f32 %v5420, %v5604
    %v5606 = vand.u32 %v3882, 4294901760
    %v5607 = vsub.f32 %v3882, %v5606
    %v5608 = vand.u32 %v5607, 4294901760
    %5609 = vmatmul.f32.gmra.mxu0 %v5608
    %v5610 = vpop.f32.mrf.mxu0
    %v5611 = vadd.f32 %v5425, %v5610
    %v5612 = vand.u32 %v3885, 4294901760
    %v5613 = vsub.f32 %v3885, %v5612
    %v5614 = vand.u32 %v5613, 4294901760
    %5615 = vmatmul.f32.gmra.mxu0 %v5614
    %v5616 = vpop.f32.mrf.mxu0
    %v5617 = vadd.f32 %v5430, %v5616
    %5618 = vdwg.mxu0
    %5619 = vmatpush.msra.mxu0 0.0
    %5620 = vmatpush.msra.mxu0 0.0
    %5621 = vmatpush.msra.mxu0 0.0
    %5622 = vmatpush.msra.mxu0 0.0
    %5623 = vmatpush.msra.mxu0 0.0
    %5624 = vmatpush.msra.mxu0 0.0
    %5625 = vmatpush.msra.mxu0 0.0
    %5626 = vmatpush.msra.mxu0 0.0
    %5627 = vmatpush.msra.mxu0 0.0
    %5628 = vmatpush.msra.mxu0 0.0
    %5629 = vmatpush.msra.mxu0 0.0
    %5630 = vmatpush.msra.mxu0 0.0
    %5631 = vmatpush.msra.mxu0 0.0
    %5632 = vmatpush.msra.mxu0 0.0
    %v5633 = vand.u32 %v3891, 4294901760
    %v5634 = vsub.f32 %v3891, %v5633
    %v5635 = vand.u32 %v5634, 4294901760
    %5636 = vmatpush.msra.mxu0 %v5635
    %v5637 = vand.u32 %v3769, 4294901760
    %v5638 = vsub.f32 %v3769, %v5637
    %v5639 = vand.u32 %v5638, 4294901760
    %5640 = vmatpush.msra.mxu0 %v5639
    %v5641 = vand.u32 %v3804, 4294901760
    %5642 = vmatmul.f32.gmra.mxu0 %v5641
    %v5643 = vpop.f32.mrf.mxu0
    %v5644 = vadd.f32 %v5455, %v5643
    %v5645 = vand.u32 %v3807, 4294901760
    %5646 = vmatmul.f32.gmra.mxu0 %v5645
    %v5647 = vpop.f32.mrf.mxu0
    %v5648 = vadd.f32 %v5461, %v5647
    %v5649 = vand.u32 %v3810, 4294901760
    %5650 = vmatmul.f32.gmra.mxu0 %v5649
    %v5651 = vpop.f32.mrf.mxu0
    %v5652 = vadd.f32 %v5467, %v5651
    %v5653 = vand.u32 %v3813, 4294901760
    %5654 = vmatmul.f32.gmra.mxu0 %v5653
    %v5655 = vpop.f32.mrf.mxu0
    %v5656 = vadd.f32 %v5473, %v5655
    %v5657 = vand.u32 %v3816, 4294901760
    %5658 = vmatmul.f32.gmra.mxu0 %v5657
    %v5659 = vpop.f32.mrf.mxu0
    %v5660 = vadd.f32 %v5479, %v5659
    %v5661 = vand.u32 %v3819, 4294901760
    %5662 = vmatmul.f32.gmra.mxu0 %v5661
    %v5663 = vpop.f32.mrf.mxu0
    %v5664 = vadd.f32 %v5485, %v5663
    %v5665 = vand.u32 %v3822, 4294901760
    %5666 = vmatmul.f32.gmra.mxu0 %v5665
    %v5667 = vpop.f32.mrf.mxu0
    %v5668 = vadd.f32 %v5491, %v5667
    %v5669 = vand.u32 %v3825, 4294901760
    %5670 = vmatmul.f32.gmra.mxu0 %v5669
    %v5671 = vpop.f32.mrf.mxu0
    %v5672 = vadd.f32 %v5497, %v5671
    %v5673 = vand.u32 %v3828, 4294901760
    %5674 = vmatmul.f32.gmra.mxu0 %v5673
    %v5675 = vpop.f32.mrf.mxu0
    %v5676 = vadd.f32 %v5503, %v5675
    %v5677 = vand.u32 %v3831, 4294901760
    %5678 = vmatmul.f32.gmra.mxu0 %v5677
    %v5679 = vpop.f32.mrf.mxu0
    %v5680 = vadd.f32 %v5509, %v5679
    %v5681 = vand.u32 %v3834, 4294901760
    %5682 = vmatmul.f32.gmra.mxu0 %v5681
    %v5683 = vpop.f32.mrf.mxu0
    %v5684 = vadd.f32 %v5515, %v5683
    %v5685 = vand.u32 %v3837, 4294901760
    %5686 = vmatmul.f32.gmra.mxu0 %v5685
    %v5687 = vpop.f32.mrf.mxu0
    %v5688 = vadd.f32 %v5521, %v5687
    %v5689 = vand.u32 %v3840, 4294901760
    %5690 = vmatmul.f32.gmra.mxu0 %v5689
    %v5691 = vpop.f32.mrf.mxu0
    %v5692 = vadd.f32 %v5527, %v5691
    %v5693 = vand.u32 %v3843, 4294901760
    %5694 = vmatmul.f32.gmra.mxu0 %v5693
    %v5695 = vpop.f32.mrf.mxu0
    %v5696 = vadd.f32 %v5533, %v5695
    %v5697 = vand.u32 %v3846, 4294901760
    %5698 = vmatmul.f32.gmra.mxu0 %v5697
    %v5699 = vpop.f32.mrf.mxu0
    %v5700 = vadd.f32 %v5539, %v5699
    %v5701 = vand.u32 %v3849, 4294901760
    %5702 = vmatmul.f32.gmra.mxu0 %v5701
    %v5703 = vpop.f32.mrf.mxu0
    %v5704 = vadd.f32 %v5545, %v5703
    %v5705 = vand.u32 %v3852, 4294901760
    %5706 = vmatmul.f32.gmra.mxu0 %v5705
    %v5707 = vpop.f32.mrf.mxu0
    %v5708 = vadd.f32 %v5551, %v5707
    %v5709 = vand.u32 %v3855, 4294901760
    %5710 = vmatmul.f32.gmra.mxu0 %v5709
    %v5711 = vpop.f32.mrf.mxu0
    %v5712 = vadd.f32 %v5557, %v5711
    %v5713 = vand.u32 %v3858, 4294901760
    %5714 = vmatmul.f32.gmra.mxu0 %v5713
    %v5715 = vpop.f32.mrf.mxu0
    %v5716 = vadd.f32 %v5563, %v5715
    %v5717 = vand.u32 %v3861, 4294901760
    %5718 = vmatmul.f32.gmra.mxu0 %v5717
    %v5719 = vpop.f32.mrf.mxu0
    %v5720 = vadd.f32 %v5569, %v5719
    %v5721 = vand.u32 %v3864, 4294901760
    %5722 = vmatmul.f32.gmra.mxu0 %v5721
    %v5723 = vpop.f32.mrf.mxu0
    %v5724 = vadd.f32 %v5575, %v5723
    %v5725 = vand.u32 %v3867, 4294901760
    %5726 = vmatmul.f32.gmra.mxu0 %v5725
    %v5727 = vpop.f32.mrf.mxu0
    %v5728 = vadd.f32 %v5581, %v5727
    %v5729 = vand.u32 %v3870, 4294901760
    %5730 = vmatmul.f32.gmra.mxu0 %v5729
    %v5731 = vpop.f32.mrf.mxu0
    %v5732 = vadd.f32 %v5587, %v5731
    %v5733 = vand.u32 %v3873, 4294901760
    %5734 = vmatmul.f32.gmra.mxu0 %v5733
    %v5735 = vpop.f32.mrf.mxu0
    %v5736 = vadd.f32 %v5593, %v5735
    %v5737 = vand.u32 %v3876, 4294901760
    %5738 = vmatmul.f32.gmra.mxu0 %v5737
    %v5739 = vpop.f32.mrf.mxu0
    %v5740 = vadd.f32 %v5599, %v5739
    %v5741 = vand.u32 %v3879, 4294901760
    %5742 = vmatmul.f32.gmra.mxu0 %v5741
    %v5743 = vpop.f32.mrf.mxu0
    %v5744 = vadd.f32 %v5605, %v5743
    %v5745 = vand.u32 %v3882, 4294901760
    %5746 = vmatmul.f32.gmra.mxu0 %v5745
    %v5747 = vpop.f32.mrf.mxu0
    %v5748 = vadd.f32 %v5611, %v5747
    %v5749 = vand.u32 %v3885, 4294901760
    %5750 = vmatmul.f32.gmra.mxu0 %v5749
    %v5751 = vpop.f32.mrf.mxu0
    %v5752 = vadd.f32 %v5617, %v5751
    %5753 = vdwg.mxu0
    %5754 = vmatpush.msra.mxu0 0.0
    %5755 = vmatpush.msra.mxu0 0.0
    %5756 = vmatpush.msra.mxu0 0.0
    %5757 = vmatpush.msra.mxu0 0.0
    %5758 = vmatpush.msra.mxu0 0.0
    %5759 = vmatpush.msra.mxu0 0.0
    %5760 = vmatpush.msra.mxu0 0.0
    %5761 = vmatpush.msra.mxu0 0.0
    %5762 = vmatpush.msra.mxu0 0.0
    %5763 = vmatpush.msra.mxu0 0.0
    %5764 = vmatpush.msra.mxu0 0.0
    %5765 = vmatpush.msra.mxu0 0.0
    %5766 = vmatpush.msra.mxu0 0.0
    %5767 = vmatpush.msra.mxu0 0.0
    %v5768 = vand.u32 %v3891, 4294901760
    %5769 = vmatpush.msra.mxu0 %v5768
    %v5770 = vand.u32 %v3769, 4294901760
    %5771 = vmatpush.msra.mxu0 %v5770
    %v5772 = vand.u32 %v3804, 4294901760
    %5773 = vmatmul.f32.gmra.mxu0 %v5772
    %v5774 = vpop.f32.mrf.mxu0
    %v5775 = vadd.f32 %v5644, %v5774
    %v5776 = vand.u32 %v3807, 4294901760
    %5777 = vmatmul.f32.gmra.mxu0 %v5776
    %v5778 = vpop.f32.mrf.mxu0
    %v5779 = vadd.f32 %v5648, %v5778
    %v5780 = vand.u32 %v3810, 4294901760
    %5781 = vmatmul.f32.gmra.mxu0 %v5780
    %v5782 = vpop.f32.mrf.mxu0
    %v5783 = vadd.f32 %v5652, %v5782
    %v5784 = vand.u32 %v3813, 4294901760
    %5785 = vmatmul.f32.gmra.mxu0 %v5784
    %v5786 = vpop.f32.mrf.mxu0
    %v5787 = vadd.f32 %v5656, %v5786
    %v5788 = vand.u32 %v3816, 4294901760
    %5789 = vmatmul.f32.gmra.mxu0 %v5788
    %v5790 = vpop.f32.mrf.mxu0
    %v5791 = vadd.f32 %v5660, %v5790
    %v5792 = vand.u32 %v3819, 4294901760
    %5793 = vmatmul.f32.gmra.mxu0 %v5792
    %v5794 = vpop.f32.mrf.mxu0
    %v5795 = vadd.f32 %v5664, %v5794
    %v5796 = vand.u32 %v3822, 4294901760
    %5797 = vmatmul.f32.gmra.mxu0 %v5796
    %v5798 = vpop.f32.mrf.mxu0
    %v5799 = vadd.f32 %v5668, %v5798
    %v5800 = vand.u32 %v3825, 4294901760
    %5801 = vmatmul.f32.gmra.mxu0 %v5800
    %v5802 = vpop.f32.mrf.mxu0
    %v5803 = vadd.f32 %v5672, %v5802
    %v5804 = vand.u32 %v3828, 4294901760
    %5805 = vmatmul.f32.gmra.mxu0 %v5804
    %v5806 = vpop.f32.mrf.mxu0
    %v5807 = vadd.f32 %v5676, %v5806
    %v5808 = vand.u32 %v3831, 4294901760
    %5809 = vmatmul.f32.gmra.mxu0 %v5808
    %v5810 = vpop.f32.mrf.mxu0
    %v5811 = vadd.f32 %v5680, %v5810
    %v5812 = vand.u32 %v3834, 4294901760
    %5813 = vmatmul.f32.gmra.mxu0 %v5812
    %v5814 = vpop.f32.mrf.mxu0
    %v5815 = vadd.f32 %v5684, %v5814
    %v5816 = vand.u32 %v3837, 4294901760
    %5817 = vmatmul.f32.gmra.mxu0 %v5816
    %v5818 = vpop.f32.mrf.mxu0
    %v5819 = vadd.f32 %v5688, %v5818
    %v5820 = vand.u32 %v3840, 4294901760
    %5821 = vmatmul.f32.gmra.mxu0 %v5820
    %v5822 = vpop.f32.mrf.mxu0
    %v5823 = vadd.f32 %v5692, %v5822
    %v5824 = vand.u32 %v3843, 4294901760
    %5825 = vmatmul.f32.gmra.mxu0 %v5824
    %v5826 = vpop.f32.mrf.mxu0
    %v5827 = vadd.f32 %v5696, %v5826
    %v5828 = vand.u32 %v3846, 4294901760
    %5829 = vmatmul.f32.gmra.mxu0 %v5828
    %v5830 = vpop.f32.mrf.mxu0
    %v5831 = vadd.f32 %v5700, %v5830
    %v5832 = vand.u32 %v3849, 4294901760
    %5833 = vmatmul.f32.gmra.mxu0 %v5832
    %v5834 = vpop.f32.mrf.mxu0
    %v5835 = vadd.f32 %v5704, %v5834
    %v5836 = vand.u32 %v3852, 4294901760
    %5837 = vmatmul.f32.gmra.mxu0 %v5836
    %v5838 = vpop.f32.mrf.mxu0
    %v5839 = vadd.f32 %v5708, %v5838
    %v5840 = vand.u32 %v3855, 4294901760
    %5841 = vmatmul.f32.gmra.mxu0 %v5840
    %v5842 = vpop.f32.mrf.mxu0
    %v5843 = vadd.f32 %v5712, %v5842
    %v5844 = vand.u32 %v3858, 4294901760
    %5845 = vmatmul.f32.gmra.mxu0 %v5844
    %v5846 = vpop.f32.mrf.mxu0
    %v5847 = vadd.f32 %v5716, %v5846
    %v5848 = vand.u32 %v3861, 4294901760
    %5849 = vmatmul.f32.gmra.mxu0 %v5848
    %v5850 = vpop.f32.mrf.mxu0
    %v5851 = vadd.f32 %v5720, %v5850
    %v5852 = vand.u32 %v3864, 4294901760
    %5853 = vmatmul.f32.gmra.mxu0 %v5852
    %v5854 = vpop.f32.mrf.mxu0
    %v5855 = vadd.f32 %v5724, %v5854
    %v5856 = vand.u32 %v3867, 4294901760
    %5857 = vmatmul.f32.gmra.mxu0 %v5856
    %v5858 = vpop.f32.mrf.mxu0
    %v5859 = vadd.f32 %v5728, %v5858
    %v5860 = vand.u32 %v3870, 4294901760
    %5861 = vmatmul.f32.gmra.mxu0 %v5860
    %v5862 = vpop.f32.mrf.mxu0
    %v5863 = vadd.f32 %v5732, %v5862
    %v5864 = vand.u32 %v3873, 4294901760
    %5865 = vmatmul.f32.gmra.mxu0 %v5864
    %v5866 = vpop.f32.mrf.mxu0
    %v5867 = vadd.f32 %v5736, %v5866
    %v5868 = vand.u32 %v3876, 4294901760
    %5869 = vmatmul.f32.gmra.mxu0 %v5868
    %v5870 = vpop.f32.mrf.mxu0
    %v5871 = vadd.f32 %v5740, %v5870
    %v5872 = vand.u32 %v3879, 4294901760
    %5873 = vmatmul.f32.gmra.mxu0 %v5872
    %v5874 = vpop.f32.mrf.mxu0
    %v5875 = vadd.f32 %v5744, %v5874
    %v5876 = vand.u32 %v3882, 4294901760
    %5877 = vmatmul.f32.gmra.mxu0 %v5876
    %v5878 = vpop.f32.mrf.mxu0
    %v5879 = vadd.f32 %v5748, %v5878
    %v5880 = vand.u32 %v3885, 4294901760
    %5881 = vmatmul.f32.gmra.mxu0 %v5880
    %v5882 = vpop.f32.mrf.mxu0
    %v5883 = vadd.f32 %v5752, %v5882
    %5884 = vdwg.mxu0
    %5885 = vst [vmem:[#allocation2] sm:$0xff] %v4779
    %vm5886 = vcmask 785408
    %5887 = vst.msk [vmem:[#allocation2 + $0x8] sm:$0xff] %vm5886, %v5775
    %5888 = vst [vmem:[#allocation2 + $0x10] sm:$0xff] %v4783
    %5889 = vst.msk [vmem:[#allocation2 + $0x18] sm:$0xff] %vm5886, %v5779
    %5890 = vst [vmem:[#allocation2 + $0x20] sm:$0xff] %v4787
    %5891 = vst.msk [vmem:[#allocation2 + $0x28] sm:$0xff] %vm5886, %v5783
    %5892 = vst [vmem:[#allocation2 + $0x30] sm:$0xff] %v4791
    %5893 = vst.msk [vmem:[#allocation2 + $0x38] sm:$0xff] %vm5886, %v5787
    %5894 = vst [vmem:[#allocation2 + $0x40] sm:$0xff] %v4795
    %5895 = vst.msk [vmem:[#allocation2 + $0x48] sm:$0xff] %vm5886, %v5791
    %5896 = vst [vmem:[#allocation2 + $0x50] sm:$0xff] %v4799
    %5897 = vst.msk [vmem:[#allocation2 + $0x58] sm:$0xff] %vm5886, %v5795
    %5898 = vst [vmem:[#allocation2 + $0x60] sm:$0xff] %v4803
    %5899 = vst.msk [vmem:[#allocation2 + $0x68] sm:$0xff] %vm5886, %v5799
    %5900 = vst [vmem:[#allocation2 + $0x70] sm:$0xff] %v4807
    %5901 = vst.msk [vmem:[#allocation2 + $0x78] sm:$0xff] %vm5886, %v5803
    %5902 = vst [vmem:[#allocation2 + $0x80] sm:$0xff] %v4811
    %5903 = vst.msk [vmem:[#allocation2 + $0x88] sm:$0xff] %vm5886, %v5807
    %5904 = vst [vmem:[#allocation2 + $0x90] sm:$0xff] %v4815
    %5905 = vst.msk [vmem:[#allocation2 + $0x98] sm:$0xff] %vm5886, %v5811
    %5906 = vst [vmem:[#allocation2 + $0xa0] sm:$0xff] %v4819
    %5907 = vst.msk [vmem:[#allocation2 + $0xa8] sm:$0xff] %vm5886, %v5815
    %5908 = vst [vmem:[#allocation2 + $0xb0] sm:$0xff] %v4823
    %5909 = vst.msk [vmem:[#allocation2 + $0xb8] sm:$0xff] %vm5886, %v5819
    %5910 = vst [vmem:[#allocation2 + $0xc0] sm:$0xff] %v4827
    %5911 = vst.msk [vmem:[#allocation2 + $0xc8] sm:$0xff] %vm5886, %v5823
    %5912 = vst [vmem:[#allocation2 + $0xd0] sm:$0xff] %v4831
    %5913 = vst.msk [vmem:[#allocation2 + $0xd8] sm:$0xff] %vm5886, %v5827
    %5914 = vst [vmem:[#allocation2 + $0xe0] sm:$0xff] %v4835
    %5915 = vst.msk [vmem:[#allocation2 + $0xe8] sm:$0xff] %vm5886, %v5831
    %5916 = vst [vmem:[#allocation2 + $0xf0] sm:$0xff] %v4839
    %5917 = vst.msk [vmem:[#allocation2 + $0xf8] sm:$0xff] %vm5886, %v5835
    %5918 = vst [vmem:[#allocation2 + $0x100] sm:$0xff] %v4843
    %5919 = vst.msk [vmem:[#allocation2 + $0x108] sm:$0xff] %vm5886, %v5839
    %5920 = vst [vmem:[#allocation2 + $0x110] sm:$0xff] %v4847
    %5921 = vst.msk [vmem:[#allocation2 + $0x118] sm:$0xff] %vm5886, %v5843
    %5922 = vst [vmem:[#allocation2 + $0x120] sm:$0xff] %v4851
    %5923 = vst.msk [vmem:[#allocation2 + $0x128] sm:$0xff] %vm5886, %v5847
    %5924 = vst [vmem:[#allocation2 + $0x130] sm:$0xff] %v4855
    %5925 = vst.msk [vmem:[#allocation2 + $0x138] sm:$0xff] %vm5886, %v5851
    %5926 = vst [vmem:[#allocation2 + $0x140] sm:$0xff] %v4859
    %5927 = vst.msk [vmem:[#allocation2 + $0x148] sm:$0xff] %vm5886, %v5855
    %5928 = vst [vmem:[#allocation2 + $0x150] sm:$0xff] %v4863
    %5929 = vst.msk [vmem:[#allocation2 + $0x158] sm:$0xff] %vm5886, %v5859
    %5930 = vst [vmem:[#allocation2 + $0x160] sm:$0xff] %v4867
    %5931 = vst.msk [vmem:[#allocation2 + $0x168] sm:$0xff] %vm5886, %v5863
    %5932 = vst [vmem:[#allocation2 + $0x170] sm:$0xff] %v4871
    %5933 = vst.msk [vmem:[#allocation2 + $0x178] sm:$0xff] %vm5886, %v5867
    %5934 = vst [vmem:[#allocation2 + $0x180] sm:$0xff] %v4875
    %5935 = vst.msk [vmem:[#allocation2 + $0x188] sm:$0xff] %vm5886, %v5871
    %5936 = vst [vmem:[#allocation2 + $0x190] sm:$0xff] %v4879
    %5937 = vst.msk [vmem:[#allocation2 + $0x198] sm:$0xff] %vm5886, %v5875
    %5938 = vst [vmem:[#allocation2 + $0x1a0] sm:$0xff] %v4883
    %5939 = vst.msk [vmem:[#allocation2 + $0x1a8] sm:$0xff] %vm5886, %v5879
    %5940 = vst [vmem:[#allocation2 + $0x1b0] sm:$0xff] %v4887
    %5941 = vst.msk [vmem:[#allocation2 + $0x1b8] sm:$0xff] %vm5886, %v5883
    // Predicated region
    $region26: #{grad_cam.1} parent=1 // pred_check
      _
    $region27: #{grad_cam.1} parent=1 // pred_check_branch
      %5943 = sbr.rel (0) target = $region29
    $region28: #{grad_cam.1} parent=1 // pred_region
      %5945 = vsyncadd [#allocation3], 0
      %s5946 = sshll.u32 [#allocation2], 4
      %s5947 = int_to_ptr.vmem [resolvable:$true] %s5946
      %s5948 = sshll.u32 %s6, 4
      %s5949 = int_to_ptr.hbm [resolvable:$true] %s5948
      %5954 = dma.vmem_to_hbm [thread:$0]  %s5947, 7168, %s5949, [#allocation3], 256, 256, 16
    $region29: #{grad_cam.1} parent=1 // pred_fallthru
      _
    // Predicated region
    $region30: #{grad_cam.1} parent=1 // pred_check
      _
    $region31: #{grad_cam.1} parent=1 // pred_check_branch
      %5956 = sbr.rel (0) target = $region33
    $region32: #{grad_cam.1} parent=1 // pred_region
      %5958 = dma.done [#allocation3], 7168
    $region33: #{grad_cam.1} parent=1 // pred_fallthru
      _
    %5959 = vsyncpa [#allocation3], 1

</llo_original>
